<compile_context>
chip_gen: v7x
topology: tpu7x:2x2x1
jax: 0.10.0
libtpu: 0.0.40
codegen_flags: <defaults>
</compile_context>

<pallas_src>
import functools

import jax
import jax.numpy as jnp
from jax import lax
from jax.experimental import pallas as pl
from jax.experimental.pallas import tpu as pltpu


def _round_up(a, b):
    return (a + b - 1) // b * b


def _conv_bn_stats_kernel(x_ref, w_ref, b_ref, y_ref, sum_ref, sq_ref, *,
                          KH, KW, th, Wo, Ho, nt):
    """One row-slab of the conv + per-tile BN partial stats.

    x_ref : (1, th+KH-1, Wp, Cin)   bf16  halo-padded input slab (NHWC)
    w_ref : (KH*KW, Cin, Cout_p)    bf16  weight, resident
    b_ref : (1, Cout_p)             f32   bias, resident
    y_ref : (th*Wo, Cout_p)         conv output rows for this tile
    sum_ref, sq_ref : (1, 8, Cout_p) f32  sublane-partial sum / sum-of-squares
    """
    tile_m = th * Wo
    cout_p = w_ref.shape[-1]

    xt = x_ref[0]        # (th+KH-1, Wp, Cin)
    w = w_ref[...]       # (KH*KW, Cin, Cout_p)

    # Conv as KH*KW shifted matmuls accumulated in f32 (MXU, bf16 operands).
    acc = jnp.zeros((tile_m, cout_p), jnp.float32)
    for kh in range(KH):
        rows = xt[kh:kh + th]                                   # (th, Wp, Cin)
        for kw in range(KW):
            patch = rows[:, kw:kw + Wo, :].reshape(tile_m, -1)  # (tile_m, Cin)
            acc = acc + jnp.dot(patch, w[kh * KW + kw],
                                preferred_element_type=jnp.float32)
    acc = acc + b_ref[...]                                      # broadcast (1, Cout_p)

    y_ref[...] = acc.astype(y_ref.dtype)

    # BatchNorm2d(conv(x)) batch-stat side effect: mask rows that only exist
    # because Ho was padded up to a multiple of th (static check -> no code
    # emitted when the tiling is exact).
    if Ho % th != 0:
        t = pl.program_id(0)
        h_base = (t % nt) * th
        h_idx = lax.broadcasted_iota(jnp.int32, (th, Wo), 0).reshape(tile_m, 1)
        acc_s = jnp.where((h_base + h_idx) < Ho, acc, 0.0)
    else:
        acc_s = acc

    # Sublane-partial reduction: (tile_m, C) -> (tile_m//8, 8, C) -> (8, C).
    # Pure VPU adds; the single cross-sublane reduce happens once in the wrapper.
    sum_ref[0] = acc_s.reshape(tile_m // 8, 8, cout_p).sum(axis=0)
    sq_ref[0] = (acc_s * acc_s).reshape(tile_m // 8, 8, cout_p).sum(axis=0)


def reset_conv_forward(x, weight, bias, *, padding=1,
                       running_mean=None, running_var=None, momentum=0.1,
                       target_tile_rows=1024, compute_dtype=jnp.bfloat16,
                       out_dtype=jnp.float32, output_layout="NCHW"):
    """ResetConv.forward with rescale=False.

    Returns (conv(x), (new_running_mean, new_running_var)) -- the BN buffer update
    is returned functionally instead of mutating module state.
    """
    # TODO(synk): only stride=1 convolutions are supported by this fused path.
    # TODO(synk): rescale=True (apply BN to the output) is not implemented; the
    #             module default is rescale=False.
    N, Cin, H, W = x.shape
    Cout, Cin_w, KH, KW = weight.shape
    assert Cin_w == Cin
    Ho = H + 2 * padding - KH + 1
    Wo = W + 2 * padding - KW + 1

    # ---- tiling choices -----------------------------------------------------
    cout_p = _round_up(Cout, 128)                 # lane-dense output/weight/bias/stats
    th = max(1, min(Ho, max(1, target_tile_rows // Wo)))   # output rows per tile
    while (th * Wo) % 8 != 0:                     # keep tile_m sublane-aligned
        th += 1
    nt = -(-Ho // th)                             # row tiles per image
    Ho_pad = nt * th
    tile_m = th * Wo
    th_h = th + KH - 1                            # input slab height (tile + halo)
    Wp = W + 2 * padding
    num_tiles = N * nt

    # ---- layout prep: NHWC + halo row slabs (no 9x im2col in HBM) ------------
    x_nhwc = jnp.transpose(x, (0, 2, 3, 1))                       # (N, H, W, Cin)
    xp = jnp.pad(x_nhwc, ((0, 0),
                          (padding, padding + (Ho_pad - Ho)),
                          (padding, padding),
                          (0, 0)))                                # (N, Ho_pad+KH-1, Wp, Cin)
    slabs = [xp[:, i * th:i * th + th_h] for i in range(nt)]      # each (N, th_h, Wp, Cin)
    x_tiles = jnp.stack(slabs, axis=1).reshape(num_tiles, th_h, Wp, Cin)
    x_tiles = x_tiles.astype(compute_dtype)

    w_p = jnp.transpose(weight, (2, 3, 1, 0)).reshape(KH * KW, Cin, Cout)
    w_p = jnp.pad(w_p, ((0, 0), (0, 0), (0, cout_p - Cout))).astype(compute_dtype)
    b_p = jnp.pad(bias.astype(jnp.float32), (0, cout_p - Cout)).reshape(1, cout_p)

    kernel = functools.partial(_conv_bn_stats_kernel,
                               KH=KH, KW=KW, th=th, Wo=Wo, Ho=Ho, nt=nt)

    y_flat, sums, sqs = pl.pallas_call(
        kernel,
        out_shape=(
            jax.ShapeDtypeStruct((num_tiles * tile_m, cout_p), out_dtype),
            jax.ShapeDtypeStruct((num_tiles, 8, cout_p), jnp.float32),
            jax.ShapeDtypeStruct((num_tiles, 8, cout_p), jnp.float32),
        ),
        grid_spec=pltpu.PrefetchScalarGridSpec(
            num_scalar_prefetch=0,
            grid=(num_tiles,),
            in_specs=[
                pl.BlockSpec((1, th_h, Wp, Cin), lambda t: (t, 0, 0, 0)),   # input slab
                pl.BlockSpec((KH * KW, Cin, cout_p), lambda t: (0, 0, 0)),  # weight (resident)
                pl.BlockSpec((1, cout_p), lambda t: (0, 0)),                # bias (resident)
            ],
            out_specs=[
                pl.BlockSpec((tile_m, cout_p), lambda t: (t, 0)),           # conv rows
                pl.BlockSpec((1, 8, cout_p), lambda t: (t, 0, 0)),          # partial sum
                pl.BlockSpec((1, 8, cout_p), lambda t: (t, 0, 0)),          # partial sumsq
            ],
        ),
        compiler_params=pltpu.CompilerParams(
            # No cross-step carry -> fully parallel grid (splits over both TCs on v7x).
            dimension_semantics=("parallel",),
            # Above the 16/32 MiB scoped defaults, safely below v7x's 64 MiB physical.
            vmem_limit_bytes=48 * 1024 * 1024,
        ),
    )(x_tiles, w_p, b_p)

    # ---- reassemble conv output ----------------------------------------------
    y = y_flat.reshape(N, nt, th, Wo, cout_p)[..., :Cout]
    y = y.reshape(N, Ho_pad, Wo, Cout)[:, :Ho]                    # (N, Ho, Wo, Cout) NHWC
    if output_layout == "NCHW":
        # TODO(synk): keep the consumer in NHWC to avoid this extra HBM pass.
        y = jnp.transpose(y, (0, 3, 1, 2))

    # ---- BatchNorm2d(conv(x)) running-buffer update ---------------------------
    cnt = float(N * Ho * Wo)
    ch_sum = jnp.sum(sums, axis=(0, 1))[:Cout]
    ch_sq = jnp.sum(sqs, axis=(0, 1))[:Cout]
    mean = ch_sum / cnt
    var = jnp.maximum(ch_sq / cnt - mean * mean, 0.0)   # clamp E[y^2]-E[y]^2 cancellation

    if running_mean is None:
        running_mean = jnp.zeros((Cout,), jnp.float32)
    if running_var is None:
        running_var = jnp.ones((Cout,), jnp.float32)
    unbiased_var = var * (cnt / (cnt - 1.0))
    new_running_mean = (1.0 - momentum) * running_mean + momentum * mean
    new_running_var = (1.0 - momentum) * running_var + momentum * unbiased_var

    return y, (new_running_mean, new_running_var)


if __name__ == "__main__":
    # Small shapes consistent with the module: NCHW input, 3x3 conv, pad 1, stride 1.
    N, Cin, H, W = 2, 4, 16, 16
    Cout, KH, KW = 8, 3, 3

    key = jax.random.PRNGKey(0)
    kx, kw, kb = jax.random.split(key, 3)
    x = jax.random.normal(kx, (N, Cin, H, W), jnp.float32)
    weight = jax.random.normal(kw, (Cout, Cin, KH, KW), jnp.float32) * 0.1
    bias = jax.random.normal(kb, (Cout,), jnp.float32) * 0.1

    y, (rm, rv) = reset_conv_forward(x, weight, bias)
    y, rm, rv = jax.block_until_ready((y, rm, rv))

    # Reference: conv on the same bf16-quantized operands (kernel feeds the MXU in
    # bf16 with f32 accumulation), full-precision accumulate.
    xq = x.astype(jnp.bfloat16).astype(jnp.float32)
    wq = weight.astype(jnp.bfloat16).astype(jnp.float32)
    y_ref = lax.conv_general_dilated(
        xq, wq, window_strides=(1, 1), padding=((1, 1), (1, 1)),
        dimension_numbers=("NCHW", "OIHW", "NCHW"),
        precision=lax.Precision.HIGHEST) + bias.reshape(1, -1, 1, 1)
    assert y.shape == (N, Cout, H, W)
    assert jnp.allclose(y, y_ref, atol=2e-3, rtol=2e-3), "conv output mismatch"

    # BN batch-stat side effect: stats of the conv output (the tensor self.bn sees).
    cnt = N * H * W
    mean_ref = jnp.mean(y_ref, axis=(0, 2, 3))
    var_ref = jnp.var(y_ref, axis=(0, 2, 3)) * (cnt / (cnt - 1.0))   # unbiased
    assert jnp.allclose(rm, 0.1 * mean_ref, atol=1e-3, rtol=1e-3), "bn mean mismatch"
    assert jnp.allclose(rv, 0.9 + 0.1 * var_ref, atol=1e-3, rtol=1e-3), "bn var mismatch"

    print("KERNEL_OK")
</pallas_src>

<mosaic_0001>
module attributes {stable_mosaic.version = 11 : i64} {
  func.func @_conv_bn_stats_kernel(%arg0: i32, %arg1: memref<1x18x18x4xbf16, #tpu.memory_space<vmem>>, %arg2: memref<9x4x128xbf16, #tpu.memory_space<vmem>>, %arg3: memref<1x128xf32, #tpu.memory_space<vmem>>, %arg4: memref<256x128xf32, #tpu.memory_space<vmem>>, %arg5: memref<1x8x128xf32, #tpu.memory_space<vmem>>, %arg6: memref<1x8x128xf32, #tpu.memory_space<vmem>>) attributes {dimension_semantics = [#tpu.dimension_semantics<parallel>], iteration_bounds = array<i64: 2>, scalar_prefetch = 0 : i64, scratch_operands = 0 : i64, tpu.core_type = #tpu.core_type<tc>, window_params = [{transform_indices = @transform_0, window_bounds = array<i64: 1, 18, 18, 4>}, {pipeline_mode = #tpu.pipeline_mode<synchronous>, transform_indices = @transform_1, window_bounds = array<i64: 9, 4, 128>}, {pipeline_mode = #tpu.pipeline_mode<synchronous>, transform_indices = @transform_2, window_bounds = array<i64: 1, 128>}, {transform_indices = @transform_3, window_bounds = array<i64: 256, 128>}, {transform_indices = @transform_4, window_bounds = array<i64: 1, 8, 128>}, {transform_indices = @transform_5, window_bounds = array<i64: 1, 8, 128>}]} {
    %c0 = arith.constant 0 : index
    %c0_0 = arith.constant 0 : index
    %c0_1 = arith.constant 0 : index
    %c0_2 = arith.constant 0 : index
    %0 = vector.load %arg1[%c0, %c0_0, %c0_1, %c0_2] : memref<1x18x18x4xbf16, #tpu.memory_space<vmem>>, vector<1x18x18x4xbf16>
    %1 = vector.shape_cast %0 : vector<1x18x18x4xbf16> to vector<18x18x4xbf16>
    %c0_3 = arith.constant 0 : index
    %c0_4 = arith.constant 0 : index
    %c0_5 = arith.constant 0 : index
    %2 = vector.load %arg2[%c0_3, %c0_4, %c0_5] : memref<9x4x128xbf16, #tpu.memory_space<vmem>>, vector<9x4x128xbf16>
    %cst = arith.constant 0.000000e+00 : f32
    %3 = vector.broadcast %cst : f32 to vector<256x128xf32>
    %4 = vector.extract_strided_slice %1 {offsets = [0, 0, 0], sizes = [16, 18, 4], strides = [1, 1, 1]} : vector<18x18x4xbf16> to vector<16x18x4xbf16>
    %5 = vector.extract_strided_slice %4 {offsets = [0, 0, 0], sizes = [16, 16, 4], strides = [1, 1, 1]} : vector<16x18x4xbf16> to vector<16x16x4xbf16>
    %6 = vector.shape_cast %5 : vector<16x16x4xbf16> to vector<256x4xbf16>
    %7 = vector.extract_strided_slice %2 {offsets = [0, 0, 0], sizes = [1, 4, 128], strides = [1, 1, 1]} : vector<9x4x128xbf16> to vector<1x4x128xbf16>
    %8 = vector.shape_cast %7 : vector<1x4x128xbf16> to vector<4x128xbf16>
    %cst_6 = arith.constant dense<0.000000e+00> : vector<256x128xf32>
    %9 = tpu.matmul %6, %8, %cst_6 {dimension_numbers = #tpu.dot_dimension_numbers<[1], [0], [0], [1], [0, 0, 1, 1], [], []>} : vector<256x4xbf16>, vector<4x128xbf16>, vector<256x128xf32> -> vector<256x128xf32>
    %10 = arith.addf %3, %9 : vector<256x128xf32>
    %11 = vector.extract_strided_slice %4 {offsets = [0, 1, 0], sizes = [16, 16, 4], strides = [1, 1, 1]} : vector<16x18x4xbf16> to vector<16x16x4xbf16>
    %12 = vector.shape_cast %11 : vector<16x16x4xbf16> to vector<256x4xbf16>
    %13 = vector.extract_strided_slice %2 {offsets = [1, 0, 0], sizes = [1, 4, 128], strides = [1, 1, 1]} : vector<9x4x128xbf16> to vector<1x4x128xbf16>
    %14 = vector.shape_cast %13 : vector<1x4x128xbf16> to vector<4x128xbf16>
    %cst_7 = arith.constant dense<0.000000e+00> : vector<256x128xf32>
    %15 = tpu.matmul %12, %14, %cst_7 {dimension_numbers = #tpu.dot_dimension_numbers<[1], [0], [0], [1], [0, 0, 1, 1], [], []>} : vector<256x4xbf16>, vector<4x128xbf16>, vector<256x128xf32> -> vector<256x128xf32>
    %16 = arith.addf %10, %15 : vector<256x128xf32>
    %17 = vector.extract_strided_slice %4 {offsets = [0, 2, 0], sizes = [16, 16, 4], strides = [1, 1, 1]} : vector<16x18x4xbf16> to vector<16x16x4xbf16>
    %18 = vector.shape_cast %17 : vector<16x16x4xbf16> to vector<256x4xbf16>
    %19 = vector.extract_strided_slice %2 {offsets = [2, 0, 0], sizes = [1, 4, 128], strides = [1, 1, 1]} : vector<9x4x128xbf16> to vector<1x4x128xbf16>
    %20 = vector.shape_cast %19 : vector<1x4x128xbf16> to vector<4x128xbf16>
    %cst_8 = arith.constant dense<0.000000e+00> : vector<256x128xf32>
    %21 = tpu.matmul %18, %20, %cst_8 {dimension_numbers = #tpu.dot_dimension_numbers<[1], [0], [0], [1], [0, 0, 1, 1], [], []>} : vector<256x4xbf16>, vector<4x128xbf16>, vector<256x128xf32> -> vector<256x128xf32>
    %22 = arith.addf %16, %21 : vector<256x128xf32>
    %23 = vector.extract_strided_slice %1 {offsets = [1, 0, 0], sizes = [16, 18, 4], strides = [1, 1, 1]} : vector<18x18x4xbf16> to vector<16x18x4xbf16>
    %24 = vector.extract_strided_slice %23 {offsets = [0, 0, 0], sizes = [16, 16, 4], strides = [1, 1, 1]} : vector<16x18x4xbf16> to vector<16x16x4xbf16>
    %25 = vector.shape_cast %24 : vector<16x16x4xbf16> to vector<256x4xbf16>
    %26 = vector.extract_strided_slice %2 {offsets = [3, 0, 0], sizes = [1, 4, 128], strides = [1, 1, 1]} : vector<9x4x128xbf16> to vector<1x4x128xbf16>
    %27 = vector.shape_cast %26 : vector<1x4x128xbf16> to vector<4x128xbf16>
    %cst_9 = arith.constant dense<0.000000e+00> : vector<256x128xf32>
    %28 = tpu.matmul %25, %27, %cst_9 {dimension_numbers = #tpu.dot_dimension_numbers<[1], [0], [0], [1], [0, 0, 1, 1], [], []>} : vector<256x4xbf16>, vector<4x128xbf16>, vector<256x128xf32> -> vector<256x128xf32>
    %29 = arith.addf %22, %28 : vector<256x128xf32>
    %30 = vector.extract_strided_slice %23 {offsets = [0, 1, 0], sizes = [16, 16, 4], strides = [1, 1, 1]} : vector<16x18x4xbf16> to vector<16x16x4xbf16>
    %31 = vector.shape_cast %30 : vector<16x16x4xbf16> to vector<256x4xbf16>
    %32 = vector.extract_strided_slice %2 {offsets = [4, 0, 0], sizes = [1, 4, 128], strides = [1, 1, 1]} : vector<9x4x128xbf16> to vector<1x4x128xbf16>
    %33 = vector.shape_cast %32 : vector<1x4x128xbf16> to vector<4x128xbf16>
    %cst_10 = arith.constant dense<0.000000e+00> : vector<256x128xf32>
    %34 = tpu.matmul %31, %33, %cst_10 {dimension_numbers = #tpu.dot_dimension_numbers<[1], [0], [0], [1], [0, 0, 1, 1], [], []>} : vector<256x4xbf16>, vector<4x128xbf16>, vector<256x128xf32> -> vector<256x128xf32>
    %35 = arith.addf %29, %34 : vector<256x128xf32>
    %36 = vector.extract_strided_slice %23 {offsets = [0, 2, 0], sizes = [16, 16, 4], strides = [1, 1, 1]} : vector<16x18x4xbf16> to vector<16x16x4xbf16>
    %37 = vector.shape_cast %36 : vector<16x16x4xbf16> to vector<256x4xbf16>
    %38 = vector.extract_strided_slice %2 {offsets = [5, 0, 0], sizes = [1, 4, 128], strides = [1, 1, 1]} : vector<9x4x128xbf16> to vector<1x4x128xbf16>
    %39 = vector.shape_cast %38 : vector<1x4x128xbf16> to vector<4x128xbf16>
    %cst_11 = arith.constant dense<0.000000e+00> : vector<256x128xf32>
    %40 = tpu.matmul %37, %39, %cst_11 {dimension_numbers = #tpu.dot_dimension_numbers<[1], [0], [0], [1], [0, 0, 1, 1], [], []>} : vector<256x4xbf16>, vector<4x128xbf16>, vector<256x128xf32> -> vector<256x128xf32>
    %41 = arith.addf %35, %40 : vector<256x128xf32>
    %42 = vector.extract_strided_slice %1 {offsets = [2, 0, 0], sizes = [16, 18, 4], strides = [1, 1, 1]} : vector<18x18x4xbf16> to vector<16x18x4xbf16>
    %43 = vector.extract_strided_slice %42 {offsets = [0, 0, 0], sizes = [16, 16, 4], strides = [1, 1, 1]} : vector<16x18x4xbf16> to vector<16x16x4xbf16>
    %44 = vector.shape_cast %43 : vector<16x16x4xbf16> to vector<256x4xbf16>
    %45 = vector.extract_strided_slice %2 {offsets = [6, 0, 0], sizes = [1, 4, 128], strides = [1, 1, 1]} : vector<9x4x128xbf16> to vector<1x4x128xbf16>
    %46 = vector.shape_cast %45 : vector<1x4x128xbf16> to vector<4x128xbf16>
    %cst_12 = arith.constant dense<0.000000e+00> : vector<256x128xf32>
    %47 = tpu.matmul %44, %46, %cst_12 {dimension_numbers = #tpu.dot_dimension_numbers<[1], [0], [0], [1], [0, 0, 1, 1], [], []>} : vector<256x4xbf16>, vector<4x128xbf16>, vector<256x128xf32> -> vector<256x128xf32>
    %48 = arith.addf %41, %47 : vector<256x128xf32>
    %49 = vector.extract_strided_slice %42 {offsets = [0, 1, 0], sizes = [16, 16, 4], strides = [1, 1, 1]} : vector<16x18x4xbf16> to vector<16x16x4xbf16>
    %50 = vector.shape_cast %49 : vector<16x16x4xbf16> to vector<256x4xbf16>
    %51 = vector.extract_strided_slice %2 {offsets = [7, 0, 0], sizes = [1, 4, 128], strides = [1, 1, 1]} : vector<9x4x128xbf16> to vector<1x4x128xbf16>
    %52 = vector.shape_cast %51 : vector<1x4x128xbf16> to vector<4x128xbf16>
    %cst_13 = arith.constant dense<0.000000e+00> : vector<256x128xf32>
    %53 = tpu.matmul %50, %52, %cst_13 {dimension_numbers = #tpu.dot_dimension_numbers<[1], [0], [0], [1], [0, 0, 1, 1], [], []>} : vector<256x4xbf16>, vector<4x128xbf16>, vector<256x128xf32> -> vector<256x128xf32>
    %54 = arith.addf %48, %53 : vector<256x128xf32>
    %55 = vector.extract_strided_slice %42 {offsets = [0, 2, 0], sizes = [16, 16, 4], strides = [1, 1, 1]} : vector<16x18x4xbf16> to vector<16x16x4xbf16>
    %56 = vector.shape_cast %55 : vector<16x16x4xbf16> to vector<256x4xbf16>
    %57 = vector.extract_strided_slice %2 {offsets = [8, 0, 0], sizes = [1, 4, 128], strides = [1, 1, 1]} : vector<9x4x128xbf16> to vector<1x4x128xbf16>
    %58 = vector.shape_cast %57 : vector<1x4x128xbf16> to vector<4x128xbf16>
    %cst_14 = arith.constant dense<0.000000e+00> : vector<256x128xf32>
    %59 = tpu.matmul %56, %58, %cst_14 {dimension_numbers = #tpu.dot_dimension_numbers<[1], [0], [0], [1], [0, 0, 1, 1], [], []>} : vector<256x4xbf16>, vector<4x128xbf16>, vector<256x128xf32> -> vector<256x128xf32>
    %60 = arith.addf %54, %59 : vector<256x128xf32>
    %c0_15 = arith.constant 0 : index
    %c0_16 = arith.constant 0 : index
    %61 = vector.load %arg3[%c0_15, %c0_16] : memref<1x128xf32, #tpu.memory_space<vmem>>, vector<1x128xf32>
    %62 = vector.broadcast %61 : vector<1x128xf32> to vector<256x128xf32>
    %63 = arith.addf %60, %62 : vector<256x128xf32>
    %c0_17 = arith.constant 0 : index
    %c0_18 = arith.constant 0 : index
    %64 = vector.load %arg4[%c0_17, %c0_18] : memref<256x128xf32, #tpu.memory_space<vmem>>, vector<256x128xf32>
    tpu.vector_store %arg4[%c0_17, %c0_18], %63 {strides = array<i32>} : memref<256x128xf32, #tpu.memory_space<vmem>>, vector<256x128xf32>,
    %65 = vector.shape_cast %63 : vector<256x128xf32> to vector<32x8x128xf32>
    %cst_19 = arith.constant dense<0.000000e+00> : vector<8x128xf32>
    %66 = vector.multi_reduction <add>, %65, %cst_19 [0] : vector<32x8x128xf32> to vector<8x128xf32>
    %c0_20 = arith.constant 0 : index
    %c0_21 = arith.constant 0 : index
    %c0_22 = arith.constant 0 : index
    %67 = vector.load %arg5[%c0_20, %c0_21, %c0_22] : memref<1x8x128xf32, #tpu.memory_space<vmem>>, vector<1x8x128xf32>
    %68 = vector.shape_cast %67 : vector<1x8x128xf32> to vector<8x128xf32>
    %69 = vector.shape_cast %66 : vector<8x128xf32> to vector<1x8x128xf32>
    tpu.vector_store %arg5[%c0_20, %c0_21, %c0_22], %69 {strides = array<i32>} : memref<1x8x128xf32, #tpu.memory_space<vmem>>, vector<1x8x128xf32>,
    %70 = arith.mulf %63, %63 : vector<256x128xf32>
    %71 = vector.shape_cast %70 : vector<256x128xf32> to vector<32x8x128xf32>
    %cst_23 = arith.constant dense<0.000000e+00> : vector<8x128xf32>
    %72 = vector.multi_reduction <add>, %71, %cst_23 [0] : vector<32x8x128xf32> to vector<8x128xf32>
    %c0_24 = arith.constant 0 : index
    %c0_25 = arith.constant 0 : index
    %c0_26 = arith.constant 0 : index
    %73 = vector.load %arg6[%c0_24, %c0_25, %c0_26] : memref<1x8x128xf32, #tpu.memory_space<vmem>>, vector<1x8x128xf32>
    %74 = vector.shape_cast %73 : vector<1x8x128xf32> to vector<8x128xf32>
    %75 = vector.shape_cast %72 : vector<8x128xf32> to vector<1x8x128xf32>
    tpu.vector_store %arg6[%c0_24, %c0_25, %c0_26], %75 {strides = array<i32>} : memref<1x8x128xf32, #tpu.memory_space<vmem>>, vector<1x8x128xf32>,
    return
  }
  func.func @transform_0(%arg0: i32) -> (i32, i32, i32, i32) {
    %c0_i32 = arith.constant 0 : i32
    %c0_i32_0 = arith.constant 0 : i32
    %c0_i32_1 = arith.constant 0 : i32
    %c0_i32_2 = arith.constant 0 : i32
    return %arg0, %c0_i32, %c0_i32_0, %c0_i32_1 : i32, i32, i32, i32
  }
  func.func @transform_1(%arg0: i32) -> (i32, i32, i32) {
    %c0_i32 = arith.constant 0 : i32
    %c0_i32_0 = arith.constant 0 : i32
    %c0_i32_1 = arith.constant 0 : i32
    %c0_i32_2 = arith.constant 0 : i32
    return %c0_i32, %c0_i32_0, %c0_i32_1 : i32, i32, i32
  }
  func.func @transform_2(%arg0: i32) -> (i32, i32) {
    %c0_i32 = arith.constant 0 : i32
    %c0_i32_0 = arith.constant 0 : i32
    %c0_i32_1 = arith.constant 0 : i32
    return %c0_i32, %c0_i32_0 : i32, i32
  }
  func.func @transform_3(%arg0: i32) -> (i32, i32) {
    %c0_i32 = arith.constant 0 : i32
    %c0_i32_0 = arith.constant 0 : i32
    return %arg0, %c0_i32 : i32, i32
  }
  func.func @transform_4(%arg0: i32) -> (i32, i32, i32) {
    %c0_i32 = arith.constant 0 : i32
    %c0_i32_0 = arith.constant 0 : i32
    %c0_i32_1 = arith.constant 0 : i32
    return %arg0, %c0_i32, %c0_i32_0 : i32, i32, i32
  }
  func.func @transform_5(%arg0: i32) -> (i32, i32, i32) {
    %c0_i32 = arith.constant 0 : i32
    %c0_i32_0 = arith.constant 0 : i32
    %c0_i32_1 = arith.constant 0 : i32
    return %arg0, %c0_i32, %c0_i32_0 : i32, i32, i32
  }
}

</mosaic_0001>

<llo_original>
// kernel: tpu_custom_call.1
$region0: #{tpu_custom_call.1}
  #allocation0 [shape = 'u32[]', space=smem, size = 0x4, offset = 0x4, fixed_abs, tag = 'smem constant byte address 0x4 - core index']
  #allocation1 [shape = 'u32[144,128]{1,0:T(1,128)}', space=vmem, size = 0x12000, scoped, tag = 'internal scratch']
  %s0 = inlined_call_operand.vmem [shape: bf16[2,18,18,4], index: 0, kind: input, shape index: {}]
  %s1 = inlined_call_operand.vmem [shape: bf16[9,4,128], index: 1, kind: input, shape index: {}]
  %s2 = inlined_call_operand.vmem [shape: f32[1,128], index: 2, kind: input, shape index: {}]
  %s3 = inlined_call_operand.hbm [shape: f32[512,128], index: 3, kind: output, shape index: {0}]
  %s4 = inlined_call_operand.hbm [shape: f32[2,8,128], index: 4, kind: output, shape index: {1}]
  %s5 = inlined_call_operand.hbm [shape: f32[2,8,128], index: 5, kind: output, shape index: {2}]
  %6 = xla_tuple %s3, %s4, %s5
  %s7 = sld [smem:[#allocation0]]
  $region61: #{tpu_custom_call.1} parent=0
    _
  %s9 = ssub.s32 1, %s7
  %s10 = scalar_select 0, %s9, %s7
  $region1: #{tpu_custom_call.1} parent=0
    #allocation2 [shape = 'u8[262144]{0}', space=vmem, size = 0x40000, scoped, tag = 'output window, operand 0']
    #allocation3 [shape = 's32[2]{0}', space=sflag, size = 0x8, scoped, tag = 'scoped memory for tpu_custom_call.1']
    #allocation4 [shape = 'u8[8192]{0}', space=vmem, size = 0x2000, scoped, tag = 'output window, operand 1']
    #allocation5 [shape = 's32[2]{0}', space=sflag, size = 0x8, scoped, tag = 'scoped memory for tpu_custom_call.1']
    #allocation6 [shape = 'u8[8192]{0}', space=vmem, size = 0x2000, scoped, tag = 'output window, operand 2']
    %11 = vsyncpa [#allocation3], 0
    %s12 = scalar_lea.sflag [#allocation3], 1
    %13 = vsyncpa %s12, 0
    %14 = vsyncpa [#allocation5], 0
    %s15 = scalar_lea.sflag [#allocation5], 1
    %16 = vsyncpa %s15, 0
    loop: start=0, step=1, limit=4
    $region2: #{tpu_custom_call.1} parent=1 // loop_pre_header
      _
    $region3: #{tpu_custom_call.1} parent=1 // loop_header
      %s18 = sphi 0, %s22
      %p19 = scmp.ge.s32.totalorder %s18, 4
      %s28 = sphi 0, %s30
      %s31 = sphi 0, %s28
      %s32 = sphi 0, %s31
      %s48 = sphi 0, %s32
      %s52 = sphi 0, %s52
      %s54 = sphi 0, %s52
      %s55 = sphi 0, %s54
      %s69 = sphi 0, %s55
      %s73 = sphi 0, %s73
      %s75 = sphi 0, %s73
      %s76 = sphi 0, %s75
      %s90 = sphi 0, %s76
      %s96 = sphi 0, %s98
      %s99 = sphi 0, %s96
      %s100 = sphi 0, %s99
      %s116 = sphi 0, %s100
      %s122 = sphi 0, %s124
      %s125 = sphi 0, %s122
      %s126 = sphi 0, %s125
      %s142 = sphi 0, %s126
      %s148 = sphi 0, %s150
      %s151 = sphi 0, %s148
      %s152 = sphi 0, %s151
      %s168 = sphi 0, %s152
    $region4: #{tpu_custom_call.1} parent=1 // loop_header_branch
      %21 = sbr.rel (%p19) target = $region8
    $region5: #{tpu_custom_call.1} parent=1 // loop_body
      %s23 = ssub.s32 %s18, 1
      %s24 = ssub.s32 %s18, 2
      %s25 = sadd.s32 %s18, 1
      %s26 = ssub.s32 %s18, %s25
      %p27 = scmp.eq.s32.totalorder %s26, 0
      %s29 = sadd.s32 %s28, 1
      %s30 = scalar_select %p27, %s28, %s29
      %p33 = pneg %p27
      %p34 = scmp.eq.s32.totalorder %s18, 1
      %p35 = por %p33, %p34
      %p36 = scmp.ne.s32.totalorder %s28, %s31
      %p37 = scmp.eq.s32.totalorder %s18, 0
      %p38 = por %p36, %p37
      %p39 = scmp.ne.s32.totalorder %s28, %s31
      %p40 = scmp.eq.s32.totalorder %s23, 1
      %p41 = por %p39, %p40
      %p42 = scmp.ne.s32.totalorder %s31, %s32
      %p43 = scmp.eq.s32.totalorder %s23, 0
      %p44 = por %p42, %p43
      %p45 = scmp.ne.s32.totalorder %s31, %s32
      %p46 = scmp.eq.s32.totalorder %s24, 1
      %p47 = por %p45, %p46
      %p49 = scmp.ne.s32.totalorder %s32, %s48
      %p50 = scmp.eq.s32.totalorder %s24, 0
      %p51 = por %p49, %p50
      %s53 = sadd.s32 %s52, 1
      %p56 = scmp.eq.s32.totalorder %s18, 1
      %p57 = scmp.ne.s32.totalorder %s52, %s54
      %p58 = scmp.eq.s32.totalorder %s18, 0
      %p59 = por %p57, %p58
      %p60 = scmp.ne.s32.totalorder %s52, %s54
      %p61 = scmp.eq.s32.totalorder %s23, 1
      %p62 = por %p60, %p61
      %p63 = scmp.ne.s32.totalorder %s54, %s55
      %p64 = scmp.eq.s32.totalorder %s23, 0
      %p65 = por %p63, %p64
      %p66 = scmp.ne.s32.totalorder %s54, %s55
      %p67 = scmp.eq.s32.totalorder %s24, 1
      %p68 = por %p66, %p67
      %p70 = scmp.ne.s32.totalorder %s55, %s69
      %p71 = scmp.eq.s32.totalorder %s24, 0
      %p72 = por %p70, %p71
      %s74 = sadd.s32 %s73, 1
      %p77 = scmp.eq.s32.totalorder %s18, 1
      %p78 = scmp.ne.s32.totalorder %s73, %s75
      %p79 = scmp.eq.s32.totalorder %s18, 0
      %p80 = por %p78, %p79
      %p81 = scmp.ne.s32.totalorder %s73, %s75
      %p82 = scmp.eq.s32.totalorder %s23, 1
      %p83 = por %p81, %p82
      %p84 = scmp.ne.s32.totalorder %s75, %s76
      %p85 = scmp.eq.s32.totalorder %s23, 0
      %p86 = por %p84, %p85
      %p87 = scmp.ne.s32.totalorder %s75, %s76
      %p88 = scmp.eq.s32.totalorder %s24, 1
      %p89 = por %p87, %p88
      %p91 = scmp.ne.s32.totalorder %s76, %s90
      %p92 = scmp.eq.s32.totalorder %s24, 0
      %p93 = por %p91, %p92
      %s94 = ssub.s32 %s18, %s25
      %p95 = scmp.eq.s32.totalorder %s94, 0
      %s97 = sadd.s32 %s96, 1
      %s98 = scalar_select %p95, %s96, %s97
      %p101 = pneg %p95
      %p102 = scmp.eq.s32.totalorder %s18, 1
      %p103 = por %p101, %p102
      %p104 = scmp.ne.s32.totalorder %s96, %s99
      %p105 = scmp.eq.s32.totalorder %s18, 0
      %p106 = por %p104, %p105
      %p107 = scmp.ne.s32.totalorder %s96, %s99
      %p108 = scmp.eq.s32.totalorder %s23, 1
      %p109 = por %p107, %p108
      %p110 = scmp.ne.s32.totalorder %s99, %s100
      %p111 = scmp.eq.s32.totalorder %s23, 0
      %p112 = por %p110, %p111
      %p113 = scmp.ne.s32.totalorder %s99, %s100
      %p114 = scmp.eq.s32.totalorder %s24, 1
      %p115 = por %p113, %p114
      %p117 = scmp.ne.s32.totalorder %s100, %s116
      %p118 = scmp.eq.s32.totalorder %s24, 0
      %p119 = por %p117, %p118
      %s120 = ssub.s32 %s18, %s25
      %p121 = scmp.eq.s32.totalorder %s120, 0
      %s123 = sadd.s32 %s122, 1
      %s124 = scalar_select %p121, %s122, %s123
      %p127 = pneg %p121
      %p128 = scmp.eq.s32.totalorder %s18, 1
      %p129 = por %p127, %p128
      %p130 = scmp.ne.s32.totalorder %s122, %s125
      %p131 = scmp.eq.s32.totalorder %s18, 0
      %p132 = por %p130, %p131
      %p133 = scmp.ne.s32.totalorder %s122, %s125
      %p134 = scmp.eq.s32.totalorder %s23, 1
      %p135 = por %p133, %p134
      %p136 = scmp.ne.s32.totalorder %s125, %s126
      %p137 = scmp.eq.s32.totalorder %s23, 0
      %p138 = por %p136, %p137
      %p139 = scmp.ne.s32.totalorder %s125, %s126
      %p140 = scmp.eq.s32.totalorder %s24, 1
      %p141 = por %p139, %p140
      %p143 = scmp.ne.s32.totalorder %s126, %s142
      %p144 = scmp.eq.s32.totalorder %s24, 0
      %p145 = por %p143, %p144
      %s146 = ssub.s32 %s18, %s25
      %p147 = scmp.eq.s32.totalorder %s146, 0
      %s149 = sadd.s32 %s148, 1
      %s150 = scalar_select %p147, %s148, %s149
      %p153 = pneg %p147
      %p154 = scmp.eq.s32.totalorder %s18, 1
      %p155 = por %p153, %p154
      %p156 = scmp.ne.s32.totalorder %s148, %s151
      %p157 = scmp.eq.s32.totalorder %s18, 0
      %p158 = por %p156, %p157
      %p159 = scmp.ne.s32.totalorder %s148, %s151
      %p160 = scmp.eq.s32.totalorder %s23, 1
      %p161 = por %p159, %p160
      %p162 = scmp.ne.s32.totalorder %s151, %s152
      %p163 = scmp.eq.s32.totalorder %s23, 0
      %p164 = por %p162, %p163
      %p165 = scmp.ne.s32.totalorder %s151, %s152
      %p166 = scmp.eq.s32.totalorder %s24, 1
      %p167 = por %p165, %p166
      %p169 = scmp.ne.s32.totalorder %s152, %s168
      %p170 = scmp.eq.s32.totalorder %s24, 0
      %p171 = por %p169, %p170
      %p172 = scmp.le.s32.totalorder 1, %s18
      %p173 = scmp.lt.s32.totalorder %s18, 3
      %p174 = pnand %p172, %p173
      %p175 = pneg %p174
      // Predicated region
      $region9: #{tpu_custom_call.1} parent=5 // pred_check
        _
      $region10: #{tpu_custom_call.1} parent=5 // pred_check_branch
        %177 = sbr.rel (%p174) target = $region12
      $region11: #{tpu_custom_call.1} parent=5 // pred_region
        %s178 = ssub.s32 %s18, 1
        // Predicated region
        $region13: #{tpu_custom_call.1} parent=11 // pred_check
          %p179 = pneg %p65
        $region14: #{tpu_custom_call.1} parent=11 // pred_check_branch
          %181 = sbr.rel (%p179) target = $region16
        $region15: #{tpu_custom_call.1} parent=11 // pred_region
          _
        $region16: #{tpu_custom_call.1} parent=11 // pred_fallthru
          _
        // Predicated region
        $region17: #{tpu_custom_call.1} parent=11 // pred_check
          %p182 = pneg %p86
        $region18: #{tpu_custom_call.1} parent=11 // pred_check_branch
          %184 = sbr.rel (%p182) target = $region20
        $region19: #{tpu_custom_call.1} parent=11 // pred_region
          _
        $region20: #{tpu_custom_call.1} parent=11 // pred_fallthru
          _
      $region12: #{tpu_custom_call.1} parent=5 // pred_fallthru
        _
      %p185 = scmp.lt.s32.totalorder %s18, 2
      // Predicated region
      $region21: #{tpu_custom_call.1} parent=5 // pred_check
        %p186 = pneg %p185
      $region22: #{tpu_custom_call.1} parent=5 // pred_check_branch
        %188 = sbr.rel (%p186) target = $region24
      $region23: #{tpu_custom_call.1} parent=5 // pred_region
        // Predicated region
        $region25: #{tpu_custom_call.1} parent=23 // pred_check
          %p189 = pneg %p38
        $region26: #{tpu_custom_call.1} parent=23 // pred_check_branch
          %191 = sbr.rel (%p189) target = $region28
        $region27: #{tpu_custom_call.1} parent=23 // pred_region
          %p192 = scmp.lt.s32.totalorder %s18, 1
          %s193 = scalar_select %p192, %s18, 1
          %s194 = smul.addr %s193, 54
          %s195 = smul.addr %s194, 4
          %s196 = scalar_lea.vmem %s0, %s195
        $region28: #{tpu_custom_call.1} parent=23 // pred_fallthru
          _
      $region24: #{tpu_custom_call.1} parent=5 // pred_fallthru
        _
      %p197 = scmp.le.s32.totalorder 1, %s18
      %p198 = scmp.lt.s32.totalorder %s18, 3
      %p199 = pnand %p197, %p198
      %p200 = pneg %p199
      // Predicated region
      $region29: #{tpu_custom_call.1} parent=5 // pred_check
        _
      $region30: #{tpu_custom_call.1} parent=5 // pred_check_branch
        %202 = sbr.rel (%p199) target = $region32
      $region31: #{tpu_custom_call.1} parent=5 // pred_region
        %s203 = ssub.s32 %s18, 1
        %p204 = scmp.lt.s32.totalorder %s23, 1
        %s205 = scalar_select %p204, %s23, 1
        %s206 = smul.addr %s205, 54
        %s207 = smul.addr %s206, 4
        %s208 = scalar_lea.vmem %s0, %s207
        %p209 = pneg %p44
        %p210 = pneg %p41
        %p211 = pneg %p65
        %p212 = pneg %p62
        %p213 = pneg %p86
        %p214 = pneg %p83
        %p215 = pneg %p112
        %p216 = pneg %p109
        %s217 = sand.u32 %s99, 1
        %s218 = scalar_lea.sflag [#allocation3], %s217
        %s219 = sand.u32 %s99, 1
        %s220 = smul.addr %s219, 256
        %s221 = scalar_lea.vmem [#allocation2], %s220
        %p222 = pneg %p138
        %p223 = pneg %p135
        %s224 = sand.u32 %s23, 1
        %s225 = scalar_lea.sflag [#allocation5], %s224
        %s226 = sand.u32 %s125, 1
        %s227 = smul.addr %s226, 8
        %s228 = scalar_lea.vmem [#allocation4], %s227
        %p229 = pneg %p164
        %p230 = pneg %p161
        %s231 = sand.u32 %s23, 1
        %s232 = scalar_lea.sflag [#allocation5], %s231
        %s233 = sand.u32 %s151, 1
        %s234 = smul.addr %s233, 8
        %s235 = scalar_lea.vmem [#allocation6], %s234
        %p236 = scmp.lt.s32.totalorder %s23, 1
        %s237 = scalar_select %p236, %s23, 1
        %s238 = smul.addr %s237, 54
        %s239 = smul.addr %s238, 4
        %s240 = scalar_lea.vmem %s0, %s239
        %s241 = smul.u32 32, %s23
        %v243 = vld [vmem:[%s240] sm:$0xf]
        %v244 = vld [vmem:[%s240 + $0x4] sm:$0xf]
        %v245 = vld [vmem:[%s240 + $0x8] sm:$0x1]
        %v246 = vld [vmem:[%s240 + $0xc] sm:$0xf]
        %v247 = vld [vmem:[%s240 + $0x10] sm:$0xf]
        %v248 = vld [vmem:[%s240 + $0x14] sm:$0x1]
        %v249 = vld [vmem:[%s240 + $0x18] sm:$0xf]
        %v250 = vld [vmem:[%s240 + $0x1c] sm:$0xf]
        %v251 = vld [vmem:[%s240 + $0x20] sm:$0x1]
        %v252 = vld [vmem:[%s240 + $0x24] sm:$0xf]
        %v253 = vld [vmem:[%s240 + $0x28] sm:$0xf]
        %v254 = vld [vmem:[%s240 + $0x2c] sm:$0x1]
        %v255 = vld [vmem:[%s240 + $0x30] sm:$0xf]
        %v256 = vld [vmem:[%s240 + $0x34] sm:$0xf]
        %v257 = vld [vmem:[%s240 + $0x38] sm:$0x1]
        %v258 = vld [vmem:[%s240 + $0x3c] sm:$0xf]
        %v259 = vld [vmem:[%s240 + $0x40] sm:$0xf]
        %v260 = vld [vmem:[%s240 + $0x44] sm:$0x1]
        %v261 = vld [vmem:[%s240 + $0x48] sm:$0xf]
        %v262 = vld [vmem:[%s240 + $0x4c] sm:$0xf]
        %v263 = vld [vmem:[%s240 + $0x50] sm:$0x1]
        %v264 = vld [vmem:[%s240 + $0x54] sm:$0xf]
        %v265 = vld [vmem:[%s240 + $0x58] sm:$0xf]
        %v266 = vld [vmem:[%s240 + $0x5c] sm:$0x1]
        %v267 = vld [vmem:[%s240 + $0x60] sm:$0xf]
        %v268 = vld [vmem:[%s240 + $0x64] sm:$0xf]
        %v269 = vld [vmem:[%s240 + $0x68] sm:$0x1]
        %v270 = vld [vmem:[%s240 + $0x6c] sm:$0xf]
        %v271 = vld [vmem:[%s240 + $0x70] sm:$0xf]
        %v272 = vld [vmem:[%s240 + $0x74] sm:$0x1]
        %v273 = vld [vmem:[%s240 + $0x78] sm:$0xf]
        %v274 = vld [vmem:[%s240 + $0x7c] sm:$0xf]
        %v275 = vld [vmem:[%s240 + $0x80] sm:$0x1]
        %v276 = vld [vmem:[%s240 + $0x84] sm:$0xf]
        %v277 = vld [vmem:[%s240 + $0x88] sm:$0xf]
        %v278 = vld [vmem:[%s240 + $0x8c] sm:$0x1]
        %v279 = vld [vmem:[%s240 + $0x90] sm:$0xf]
        %v280 = vld [vmem:[%s240 + $0x94] sm:$0xf]
        %v281 = vld [vmem:[%s240 + $0x98] sm:$0x1]
        %v282 = vld [vmem:[%s240 + $0x9c] sm:$0xf]
        %v283 = vld [vmem:[%s240 + $0xa0] sm:$0xf]
        %v284 = vld [vmem:[%s240 + $0xa4] sm:$0x1]
        %v285 = vld [vmem:[%s240 + $0xa8] sm:$0xf]
        %v286 = vld [vmem:[%s240 + $0xac] sm:$0xf]
        %v287 = vld [vmem:[%s240 + $0xb0] sm:$0x1]
        %v288 = vld [vmem:[%s240 + $0xb4] sm:$0xf]
        %v289 = vld [vmem:[%s240 + $0xb8] sm:$0xf]
        %v290 = vld [vmem:[%s240 + $0xbc] sm:$0x1]
        %v291 = vld [vmem:[%s240 + $0xc0] sm:$0xf]
        %v292 = vld [vmem:[%s240 + $0xc4] sm:$0xf]
        %v293 = vld [vmem:[%s240 + $0xc8] sm:$0x1]
        %v294 = vld [vmem:[%s240 + $0xcc] sm:$0xf]
        %v295 = vld [vmem:[%s240 + $0xd0] sm:$0xf]
        %v296 = vld [vmem:[%s240 + $0xd4] sm:$0x1]
        %v297 = vld [vmem:[%s1] sm:$0x3]
        %v298 = vld [vmem:[%s1 + $0x2] sm:$0x3]
        %v299 = vld [vmem:[%s1 + $0x4] sm:$0x3]
        %v300 = vld [vmem:[%s1 + $0x6] sm:$0x3]
        %v301 = vld [vmem:[%s1 + $0x8] sm:$0x3]
        %v302 = vld [vmem:[%s1 + $0xa] sm:$0x3]
        %v303 = vld [vmem:[%s1 + $0xc] sm:$0x3]
        %v304 = vld [vmem:[%s1 + $0xe] sm:$0x3]
        %v305 = vld [vmem:[%s1 + $0x10] sm:$0x3]
        %vm306 = vsmask.f32 3328
        %vm307 = vsmask.f32 7440
        %vm308 = vmor %vm306, %vm307
        %v310 = vshrl.u32 %v243, 16
        %v312 = vrot.slane %v310, 4
        %v313 = vshll.u32 %v243, 16
        %v315 = vrot.slane %v313, 5
        %v316 = vor.u32 %v312, %v315
        %v317 = vrot.slane %v316, 4
        %v319 = vshll.u32 %v244, 16
        %v321 = vrot.slane %v319, 5
        %v322 = vsel %vm308, %v317, %v321
        %v323 = vshrl.u32 %v244, 16
        %v325 = vrot.slane %v323, 4
        %v326 = vor.u32 %v325, %v321
        %v327 = vrot.slane %v326, 4
        %v329 = vshll.u32 %v245, 16
        %v331 = vrot.slane %v329, 5
        %v332 = vsel %vm308, %v327, %v331
        %v334 = vshrl.u32 %v246, 16
        %v336 = vrot.slane %v334, 4
        %v337 = vshll.u32 %v246, 16
        %v339 = vrot.slane %v337, 5
        %v340 = vor.u32 %v336, %v339
        %v341 = vrot.slane %v340, 4
        %v343 = vshll.u32 %v247, 16
        %v345 = vrot.slane %v343, 5
        %v346 = vsel %vm308, %v341, %v345
        %v347 = vshrl.u32 %v247, 16
        %v349 = vrot.slane %v347, 4
        %v350 = vor.u32 %v349, %v345
        %v351 = vrot.slane %v350, 4
        %v353 = vshll.u32 %v248, 16
        %v355 = vrot.slane %v353, 5
        %v356 = vsel %vm308, %v351, %v355
        %v358 = vshrl.u32 %v249, 16
        %v360 = vrot.slane %v358, 4
        %v361 = vshll.u32 %v249, 16
        %v363 = vrot.slane %v361, 5
        %v364 = vor.u32 %v360, %v363
        %v365 = vrot.slane %v364, 4
        %v367 = vshll.u32 %v250, 16
        %v369 = vrot.slane %v367, 5
        %v370 = vsel %vm308, %v365, %v369
        %v371 = vshrl.u32 %v250, 16
        %v373 = vrot.slane %v371, 4
        %v374 = vor.u32 %v373, %v369
        %v375 = vrot.slane %v374, 4
        %v377 = vshll.u32 %v251, 16
        %v379 = vrot.slane %v377, 5
        %v380 = vsel %vm308, %v375, %v379
        %v382 = vshrl.u32 %v252, 16
        %v384 = vrot.slane %v382, 4
        %v385 = vshll.u32 %v252, 16
        %v387 = vrot.slane %v385, 5
        %v388 = vor.u32 %v384, %v387
        %v389 = vrot.slane %v388, 4
        %v391 = vshll.u32 %v253, 16
        %v393 = vrot.slane %v391, 5
        %v394 = vsel %vm308, %v389, %v393
        %v395 = vshrl.u32 %v253, 16
        %v397 = vrot.slane %v395, 4
        %v398 = vor.u32 %v397, %v393
        %v399 = vrot.slane %v398, 4
        %v401 = vshll.u32 %v254, 16
        %v403 = vrot.slane %v401, 5
        %v404 = vsel %vm308, %v399, %v403
        %v406 = vshrl.u32 %v255, 16
        %v408 = vrot.slane %v406, 4
        %v409 = vshll.u32 %v255, 16
        %v411 = vrot.slane %v409, 5
        %v412 = vor.u32 %v408, %v411
        %v413 = vrot.slane %v412, 4
        %v415 = vshll.u32 %v256, 16
        %v417 = vrot.slane %v415, 5
        %v418 = vsel %vm308, %v413, %v417
        %v419 = vshrl.u32 %v256, 16
        %v421 = vrot.slane %v419, 4
        %v422 = vor.u32 %v421, %v417
        %v423 = vrot.slane %v422, 4
        %v425 = vshll.u32 %v257, 16
        %v427 = vrot.slane %v425, 5
        %v428 = vsel %vm308, %v423, %v427
        %v430 = vshrl.u32 %v258, 16
        %v432 = vrot.slane %v430, 4
        %v433 = vshll.u32 %v258, 16
        %v435 = vrot.slane %v433, 5
        %v436 = vor.u32 %v432, %v435
        %v437 = vrot.slane %v436, 4
        %v439 = vshll.u32 %v259, 16
        %v441 = vrot.slane %v439, 5
        %v442 = vsel %vm308, %v437, %v441
        %v443 = vshrl.u32 %v259, 16
        %v445 = vrot.slane %v443, 4
        %v446 = vor.u32 %v445, %v441
        %v447 = vrot.slane %v446, 4
        %v449 = vshll.u32 %v260, 16
        %v451 = vrot.slane %v449, 5
        %v452 = vsel %vm308, %v447, %v451
        %v454 = vshrl.u32 %v261, 16
        %v456 = vrot.slane %v454, 4
        %v457 = vshll.u32 %v261, 16
        %v459 = vrot.slane %v457, 5
        %v460 = vor.u32 %v456, %v459
        %v461 = vrot.slane %v460, 4
        %v463 = vshll.u32 %v262, 16
        %v465 = vrot.slane %v463, 5
        %v466 = vsel %vm308, %v461, %v465
        %v467 = vshrl.u32 %v262, 16
        %v469 = vrot.slane %v467, 4
        %v470 = vor.u32 %v469, %v465
        %v471 = vrot.slane %v470, 4
        %v473 = vshll.u32 %v263, 16
        %v475 = vrot.slane %v473, 5
        %v476 = vsel %vm308, %v471, %v475
        %v478 = vshrl.u32 %v264, 16
        %v480 = vrot.slane %v478, 4
        %v481 = vshll.u32 %v264, 16
        %v483 = vrot.slane %v481, 5
        %v484 = vor.u32 %v480, %v483
        %v485 = vrot.slane %v484, 4
        %v487 = vshll.u32 %v265, 16
        %v489 = vrot.slane %v487, 5
        %v490 = vsel %vm308, %v485, %v489
        %v491 = vshrl.u32 %v265, 16
        %v493 = vrot.slane %v491, 4
        %v494 = vor.u32 %v493, %v489
        %v495 = vrot.slane %v494, 4
        %v497 = vshll.u32 %v266, 16
        %v499 = vrot.slane %v497, 5
        %v500 = vsel %vm308, %v495, %v499
        %v502 = vshrl.u32 %v267, 16
        %v504 = vrot.slane %v502, 4
        %v505 = vshll.u32 %v267, 16
        %v507 = vrot.slane %v505, 5
        %v508 = vor.u32 %v504, %v507
        %v509 = vrot.slane %v508, 4
        %v511 = vshll.u32 %v268, 16
        %v513 = vrot.slane %v511, 5
        %v514 = vsel %vm308, %v509, %v513
        %v515 = vshrl.u32 %v268, 16
        %v517 = vrot.slane %v515, 4
        %v518 = vor.u32 %v517, %v513
        %v519 = vrot.slane %v518, 4
        %v521 = vshll.u32 %v269, 16
        %v523 = vrot.slane %v521, 5
        %v524 = vsel %vm308, %v519, %v523
        %v526 = vshrl.u32 %v270, 16
        %v528 = vrot.slane %v526, 4
        %v529 = vshll.u32 %v270, 16
        %v531 = vrot.slane %v529, 5
        %v532 = vor.u32 %v528, %v531
        %v533 = vrot.slane %v532, 4
        %v535 = vshll.u32 %v271, 16
        %v537 = vrot.slane %v535, 5
        %v538 = vsel %vm308, %v533, %v537
        %v539 = vshrl.u32 %v271, 16
        %v541 = vrot.slane %v539, 4
        %v542 = vor.u32 %v541, %v537
        %v543 = vrot.slane %v542, 4
        %v545 = vshll.u32 %v272, 16
        %v547 = vrot.slane %v545, 5
        %v548 = vsel %vm308, %v543, %v547
        %v550 = vshrl.u32 %v273, 16
        %v552 = vrot.slane %v550, 4
        %v553 = vshll.u32 %v273, 16
        %v555 = vrot.slane %v553, 5
        %v556 = vor.u32 %v552, %v555
        %v557 = vrot.slane %v556, 4
        %v559 = vshll.u32 %v274, 16
        %v561 = vrot.slane %v559, 5
        %v562 = vsel %vm308, %v557, %v561
        %v563 = vshrl.u32 %v274, 16
        %v565 = vrot.slane %v563, 4
        %v566 = vor.u32 %v565, %v561
        %v567 = vrot.slane %v566, 4
        %v569 = vshll.u32 %v275, 16
        %v571 = vrot.slane %v569, 5
        %v572 = vsel %vm308, %v567, %v571
        %v574 = vshrl.u32 %v276, 16
        %v576 = vrot.slane %v574, 4
        %v577 = vshll.u32 %v276, 16
        %v579 = vrot.slane %v577, 5
        %v580 = vor.u32 %v576, %v579
        %v581 = vrot.slane %v580, 4
        %v583 = vshll.u32 %v277, 16
        %v585 = vrot.slane %v583, 5
        %v586 = vsel %vm308, %v581, %v585
        %v587 = vshrl.u32 %v277, 16
        %v589 = vrot.slane %v587, 4
        %v590 = vor.u32 %v589, %v585
        %v591 = vrot.slane %v590, 4
        %v593 = vshll.u32 %v278, 16
        %v595 = vrot.slane %v593, 5
        %v596 = vsel %vm308, %v591, %v595
        %v598 = vshrl.u32 %v279, 16
        %v600 = vrot.slane %v598, 4
        %v601 = vshll.u32 %v279, 16
        %v603 = vrot.slane %v601, 5
        %v604 = vor.u32 %v600, %v603
        %v605 = vrot.slane %v604, 4
        %v607 = vshll.u32 %v280, 16
        %v609 = vrot.slane %v607, 5
        %v610 = vsel %vm308, %v605, %v609
        %v611 = vshrl.u32 %v280, 16
        %v613 = vrot.slane %v611, 4
        %v614 = vor.u32 %v613, %v609
        %v615 = vrot.slane %v614, 4
        %v617 = vshll.u32 %v281, 16
        %v619 = vrot.slane %v617, 5
        %v620 = vsel %vm308, %v615, %v619
        %v622 = vshrl.u32 %v282, 16
        %v624 = vrot.slane %v622, 4
        %v625 = vshll.u32 %v282, 16
        %v627 = vrot.slane %v625, 5
        %v628 = vor.u32 %v624, %v627
        %v629 = vrot.slane %v628, 4
        %v631 = vshll.u32 %v283, 16
        %v633 = vrot.slane %v631, 5
        %v634 = vsel %vm308, %v629, %v633
        %v635 = vshrl.u32 %v283, 16
        %v637 = vrot.slane %v635, 4
        %v638 = vor.u32 %v637, %v633
        %v639 = vrot.slane %v638, 4
        %v641 = vshll.u32 %v284, 16
        %v643 = vrot.slane %v641, 5
        %v644 = vsel %vm308, %v639, %v643
        %v646 = vshrl.u32 %v285, 16
        %v648 = vrot.slane %v646, 4
        %v649 = vshll.u32 %v285, 16
        %v651 = vrot.slane %v649, 5
        %v652 = vor.u32 %v648, %v651
        %v653 = vrot.slane %v652, 4
        %v655 = vshll.u32 %v286, 16
        %v657 = vrot.slane %v655, 5
        %v658 = vsel %vm308, %v653, %v657
        %v659 = vshrl.u32 %v286, 16
        %v661 = vrot.slane %v659, 4
        %v662 = vor.u32 %v661, %v657
        %v663 = vrot.slane %v662, 4
        %v665 = vshll.u32 %v287, 16
        %v667 = vrot.slane %v665, 5
        %v668 = vsel %vm308, %v663, %v667
        %v670 = vshrl.u32 %v288, 16
        %v672 = vrot.slane %v670, 4
        %v673 = vshll.u32 %v288, 16
        %v675 = vrot.slane %v673, 5
        %v676 = vor.u32 %v672, %v675
        %v677 = vrot.slane %v676, 4
        %v679 = vshll.u32 %v289, 16
        %v681 = vrot.slane %v679, 5
        %v682 = vsel %vm308, %v677, %v681
        %v683 = vshrl.u32 %v289, 16
        %v685 = vrot.slane %v683, 4
        %v686 = vor.u32 %v685, %v681
        %v687 = vrot.slane %v686, 4
        %v689 = vshll.u32 %v290, 16
        %v691 = vrot.slane %v689, 5
        %v692 = vsel %vm308, %v687, %v691
        %v693 = vunpack.c.l.b16 %v322
        %v694 = vunpack.c.l.b16 %v332
        %v695 = vunpack.c.l.b16 %v346
        %v696 = vunpack.c.l.b16 %v356
        %v697 = vunpack.c.l.b16 %v370
        %v698 = vunpack.c.l.b16 %v380
        %v699 = vunpack.c.l.b16 %v394
        %v700 = vunpack.c.l.b16 %v404
        %v701 = vunpack.c.l.b16 %v418
        %v702 = vunpack.c.l.b16 %v428
        %v703 = vunpack.c.l.b16 %v442
        %v704 = vunpack.c.l.b16 %v452
        %v705 = vunpack.c.l.b16 %v466
        %v706 = vunpack.c.l.b16 %v476
        %v707 = vunpack.c.l.b16 %v490
        %v708 = vunpack.c.l.b16 %v500
        %v709 = vunpack.c.l.b16 %v514
        %v710 = vunpack.c.l.b16 %v524
        %v711 = vunpack.c.l.b16 %v538
        %v712 = vunpack.c.l.b16 %v548
        %v713 = vunpack.c.l.b16 %v562
        %v714 = vunpack.c.l.b16 %v572
        %v715 = vunpack.c.l.b16 %v586
        %v716 = vunpack.c.l.b16 %v596
        %v717 = vunpack.c.l.b16 %v610
        %v718 = vunpack.c.l.b16 %v620
        %v719 = vunpack.c.l.b16 %v634
        %v720 = vunpack.c.l.b16 %v644
        %v721 = vunpack.c.l.b16 %v658
        %v722 = vunpack.c.l.b16 %v668
        %v723 = vunpack.c.l.b16 %v682
        %v724 = vunpack.c.l.b16 %v692
        %v725 = vpack.c.b16 %v694, %v693
        %v726 = vpack.c.b16 %v696, %v695
        %v727 = vpack.c.b16 %v698, %v697
        %v728 = vpack.c.b16 %v700, %v699
        %v729 = vpack.c.b16 %v702, %v701
        %v730 = vpack.c.b16 %v704, %v703
        %v731 = vpack.c.b16 %v706, %v705
        %v732 = vpack.c.b16 %v708, %v707
        %v733 = vpack.c.b16 %v710, %v709
        %v734 = vpack.c.b16 %v712, %v711
        %v735 = vpack.c.b16 %v714, %v713
        %v736 = vpack.c.b16 %v716, %v715
        %v737 = vpack.c.b16 %v718, %v717
        %v738 = vpack.c.b16 %v720, %v719
        %v739 = vpack.c.b16 %v722, %v721
        %v740 = vpack.c.b16 %v724, %v723
        %vm741 = vcmask 31744
        %v743 = vsel %vm741, %v725, 0
        %v746 = vsel %vm741, %v726, 0
        %v749 = vsel %vm741, %v727, 0
        %v752 = vsel %vm741, %v728, 0
        %v755 = vsel %vm741, %v729, 0
        %v758 = vsel %vm741, %v730, 0
        %v761 = vsel %vm741, %v731, 0
        %v764 = vsel %vm741, %v732, 0
        %v767 = vsel %vm741, %v733, 0
        %v770 = vsel %vm741, %v734, 0
        %v773 = vsel %vm741, %v735, 0
        %v776 = vsel %vm741, %v736, 0
        %v779 = vsel %vm741, %v737, 0
        %v782 = vsel %vm741, %v738, 0
        %v785 = vsel %vm741, %v739, 0
        %v788 = vsel %vm741, %v740, 0
        %vm790 = vcmask 1041408
        %v792 = vsel %vm790, %v298, 0
        %794 = vmatprep.subr.bf16.mxu0 0
        %795 = vmatpush1.bf16.msra.mxu0 %v792
        %796 = vmatprep.subr.bf16.mxu0 0
        %797 = vmatpush1.bf16.msra.mxu0 0
        %798 = vmatprep.subr.bf16.mxu0 0
        %799 = vmatpush1.bf16.msra.mxu0 0
        %800 = vmatprep.subr.bf16.mxu0 0
        %801 = vmatpush1.bf16.msra.mxu0 0
        %802 = vmatprep.subr.bf16.mxu0 0
        %803 = vmatpush1.bf16.msra.mxu0 0
        %804 = vmatprep.subr.bf16.mxu0 0
        %805 = vmatpush1.bf16.msra.mxu0 0
        %806 = vmatprep.subr.bf16.mxu0 0
        %807 = vmatpush1.bf16.msra.mxu0 0
        %808 = vmatprep.subr.bf16.mxu0 0
        %809 = vmatpush1.bf16.msra.mxu0 0
        %810 = vmatprep.subr.bf16.mxu0 0
        %811 = vmatpush1.bf16.msra.mxu0 0
        %812 = vmatprep.subr.bf16.mxu0 0
        %813 = vmatpush1.bf16.msra.mxu0 0
        %814 = vmatprep.subr.bf16.mxu0 0
        %815 = vmatpush1.bf16.msra.mxu0 0
        %816 = vmatprep.subr.bf16.mxu0 0
        %817 = vmatpush1.bf16.msra.mxu0 0
        %818 = vmatprep.subr.bf16.mxu0 0
        %819 = vmatpush1.bf16.msra.mxu0 0
        %820 = vmatprep.subr.bf16.mxu0 0
        %821 = vmatpush1.bf16.msra.mxu0 0
        %822 = vmatprep.subr.bf16.mxu0 0
        %823 = vmatpush1.bf16.msra.mxu0 0
        %824 = vmatprep.subr.bf16.mxu0 0
        %825 = vmatpush1.bf16.msra.mxu0 0
        %826 = vmatprep.mubr.bf16.mxu0 0
        %827 = vmatmul.mubr.bf16.gmra.mrb[0].mxu0 %v743
        %v828 = vpop.f32.mrb[0].mxu0
        %v829 = vadd.f32 0.0, %v828
        %v830 = vpop.f32.mrb[0].mxu0
        %v831 = vpop.f32.mrb[0].mxu0
        %v832 = vadd.f32 0.0, %v831
        %v833 = vpop.f32.mrb[0].mxu0
        %834 = vmatprep.mubr.bf16.mxu0 0
        %835 = vmatmul.mubr.bf16.gmra.mrb[0].mxu0 %v746
        %v836 = vpop.f32.mrb[0].mxu0
        %v837 = vadd.f32 0.0, %v836
        %v838 = vpop.f32.mrb[0].mxu0
        %v839 = vpop.f32.mrb[0].mxu0
        %v840 = vadd.f32 0.0, %v839
        %v841 = vpop.f32.mrb[0].mxu0
        %842 = vmatprep.mubr.bf16.mxu0 0
        %843 = vmatmul.mubr.bf16.gmra.mrb[0].mxu0 %v749
        %v844 = vpop.f32.mrb[0].mxu0
        %v845 = vadd.f32 0.0, %v844
        %v846 = vpop.f32.mrb[0].mxu0
        %v847 = vpop.f32.mrb[0].mxu0
        %v848 = vadd.f32 0.0, %v847
        %v849 = vpop.f32.mrb[0].mxu0
        %850 = vmatprep.mubr.bf16.mxu0 0
        %851 = vmatmul.mubr.bf16.gmra.mrb[0].mxu0 %v752
        %v852 = vpop.f32.mrb[0].mxu0
        %v853 = vadd.f32 0.0, %v852
        %v854 = vpop.f32.mrb[0].mxu0
        %v855 = vpop.f32.mrb[0].mxu0
        %v856 = vadd.f32 0.0, %v855
        %v857 = vpop.f32.mrb[0].mxu0
        %858 = vmatprep.mubr.bf16.mxu0 0
        %859 = vmatmul.mubr.bf16.gmra.mrb[0].mxu0 %v755
        %v860 = vpop.f32.mrb[0].mxu0
        %v861 = vadd.f32 0.0, %v860
        %v862 = vpop.f32.mrb[0].mxu0
        %v863 = vpop.f32.mrb[0].mxu0
        %v864 = vadd.f32 0.0, %v863
        %v865 = vpop.f32.mrb[0].mxu0
        %866 = vmatprep.mubr.bf16.mxu0 0
        %867 = vmatmul.mubr.bf16.gmra.mrb[0].mxu0 %v758
        %v868 = vpop.f32.mrb[0].mxu0
        %v869 = vadd.f32 0.0, %v868
        %v870 = vpop.f32.mrb[0].mxu0
        %v871 = vpop.f32.mrb[0].mxu0
        %v872 = vadd.f32 0.0, %v871
        %v873 = vpop.f32.mrb[0].mxu0
        %874 = vmatprep.mubr.bf16.mxu0 0
        %875 = vmatmul.mubr.bf16.gmra.mrb[0].mxu0 %v761
        %v876 = vpop.f32.mrb[0].mxu0
        %v877 = vadd.f32 0.0, %v876
        %v878 = vpop.f32.mrb[0].mxu0
        %v879 = vpop.f32.mrb[0].mxu0
        %v880 = vadd.f32 0.0, %v879
        %v881 = vpop.f32.mrb[0].mxu0
        %882 = vmatprep.mubr.bf16.mxu0 0
        %883 = vmatmul.mubr.bf16.gmra.mrb[0].mxu0 %v764
        %v884 = vpop.f32.mrb[0].mxu0
        %v885 = vadd.f32 0.0, %v884
        %v886 = vpop.f32.mrb[0].mxu0
        %v887 = vpop.f32.mrb[0].mxu0
        %v888 = vadd.f32 0.0, %v887
        %v889 = vpop.f32.mrb[0].mxu0
        %890 = vmatprep.mubr.bf16.mxu0 0
        %891 = vmatmul.mubr.bf16.gmra.mrb[0].mxu0 %v767
        %v892 = vpop.f32.mrb[0].mxu0
        %v893 = vadd.f32 0.0, %v892
        %v894 = vpop.f32.mrb[0].mxu0
        %v895 = vpop.f32.mrb[0].mxu0
        %v896 = vadd.f32 0.0, %v895
        %v897 = vpop.f32.mrb[0].mxu0
        %898 = vmatprep.mubr.bf16.mxu0 0
        %899 = vmatmul.mubr.bf16.gmra.mrb[0].mxu0 %v770
        %v900 = vpop.f32.mrb[0].mxu0
        %v901 = vadd.f32 0.0, %v900
        %v902 = vpop.f32.mrb[0].mxu0
        %v903 = vpop.f32.mrb[0].mxu0
        %v904 = vadd.f32 0.0, %v903
        %v905 = vpop.f32.mrb[0].mxu0
        %906 = vmatprep.mubr.bf16.mxu0 0
        %907 = vmatmul.mubr.bf16.gmra.mrb[0].mxu0 %v773
        %v908 = vpop.f32.mrb[0].mxu0
        %v909 = vadd.f32 0.0, %v908
        %v910 = vpop.f32.mrb[0].mxu0
        %v911 = vpop.f32.mrb[0].mxu0
        %v912 = vadd.f32 0.0, %v911
        %v913 = vpop.f32.mrb[0].mxu0
        %914 = vmatprep.mubr.bf16.mxu0 0
        %915 = vmatmul.mubr.bf16.gmra.mrb[0].mxu0 %v776
        %v916 = vpop.f32.mrb[0].mxu0
        %v917 = vadd.f32 0.0, %v916
        %v918 = vpop.f32.mrb[0].mxu0
        %v919 = vpop.f32.mrb[0].mxu0
        %v920 = vadd.f32 0.0, %v919
        %v921 = vpop.f32.mrb[0].mxu0
        %922 = vmatprep.mubr.bf16.mxu0 0
        %923 = vmatmul.mubr.bf16.gmra.mrb[0].mxu0 %v779
        %v924 = vpop.f32.mrb[0].mxu0
        %v925 = vadd.f32 0.0, %v924
        %v926 = vpop.f32.mrb[0].mxu0
        %v927 = vpop.f32.mrb[0].mxu0
        %v928 = vadd.f32 0.0, %v927
        %v929 = vpop.f32.mrb[0].mxu0
        %930 = vmatprep.mubr.bf16.mxu0 0
        %931 = vmatmul.mubr.bf16.gmra.mrb[0].mxu0 %v782
        %v932 = vpop.f32.mrb[0].mxu0
        %v933 = vadd.f32 0.0, %v932
        %v934 = vpop.f32.mrb[0].mxu0
        %v935 = vpop.f32.mrb[0].mxu0
        %v936 = vadd.f32 0.0, %v935
        %v937 = vpop.f32.mrb[0].mxu0
        %938 = vmatprep.mubr.bf16.mxu0 0
        %939 = vmatmul.mubr.bf16.gmra.mrb[0].mxu0 %v785
        %v940 = vpop.f32.mrb[0].mxu0
        %v941 = vadd.f32 0.0, %v940
        %v942 = vpop.f32.mrb[0].mxu0
        %v943 = vpop.f32.mrb[0].mxu0
        %v944 = vadd.f32 0.0, %v943
        %v945 = vpop.f32.mrb[0].mxu0
        %946 = vmatprep.mubr.bf16.mxu0 0
        %947 = vmatmul.mubr.bf16.gmra.mrb[0].mxu0 %v788
        %v948 = vpop.f32.mrb[0].mxu0
        %v949 = vadd.f32 0.0, %v948
        %v950 = vpop.f32.mrb[0].mxu0
        %v951 = vpop.f32.mrb[0].mxu0
        %v952 = vadd.f32 0.0, %v951
        %v953 = vpop.f32.mrb[0].mxu0
        %954 = vdwg.mxu0
        %v987 = vunpack.c.l.b16 %v243
        %v988 = vunpack.c.l.b16 %v244
        %v989 = vunpack.c.l.b16 %v246
        %v990 = vunpack.c.l.b16 %v247
        %v991 = vunpack.c.l.b16 %v249
        %v992 = vunpack.c.l.b16 %v250
        %v993 = vunpack.c.l.b16 %v252
        %v994 = vunpack.c.l.b16 %v253
        %v995 = vunpack.c.l.b16 %v255
        %v996 = vunpack.c.l.b16 %v256
        %v997 = vunpack.c.l.b16 %v258
        %v998 = vunpack.c.l.b16 %v259
        %v999 = vunpack.c.l.b16 %v261
        %v1000 = vunpack.c.l.b16 %v262
        %v1001 = vunpack.c.l.b16 %v264
        %v1002 = vunpack.c.l.b16 %v265
        %v1003 = vunpack.c.l.b16 %v267
        %v1004 = vunpack.c.l.b16 %v268
        %v1005 = vunpack.c.l.b16 %v270
        %v1006 = vunpack.c.l.b16 %v271
        %v1007 = vunpack.c.l.b16 %v273
        %v1008 = vunpack.c.l.b16 %v274
        %v1009 = vunpack.c.l.b16 %v276
        %v1010 = vunpack.c.l.b16 %v277
        %v1011 = vunpack.c.l.b16 %v279
        %v1012 = vunpack.c.l.b16 %v280
        %v1013 = vunpack.c.l.b16 %v282
        %v1014 = vunpack.c.l.b16 %v283
        %v1015 = vunpack.c.l.b16 %v285
        %v1016 = vunpack.c.l.b16 %v286
        %v1017 = vunpack.c.l.b16 %v288
        %v1018 = vunpack.c.l.b16 %v289
        %v1019 = vpack.c.b16 %v988, %v987
        %v1020 = vpack.c.b16 %v990, %v989
        %v1021 = vpack.c.b16 %v992, %v991
        %v1022 = vpack.c.b16 %v994, %v993
        %v1023 = vpack.c.b16 %v996, %v995
        %v1024 = vpack.c.b16 %v998, %v997
        %v1025 = vpack.c.b16 %v1000, %v999
        %v1026 = vpack.c.b16 %v1002, %v1001
        %v1027 = vpack.c.b16 %v1004, %v1003
        %v1028 = vpack.c.b16 %v1006, %v1005
        %v1029 = vpack.c.b16 %v1008, %v1007
        %v1030 = vpack.c.b16 %v1010, %v1009
        %v1031 = vpack.c.b16 %v1012, %v1011
        %v1032 = vpack.c.b16 %v1014, %v1013
        %v1033 = vpack.c.b16 %v1016, %v1015
        %v1034 = vpack.c.b16 %v1018, %v1017
        %v1036 = vsel %vm741, %v1019, 0
        %v1039 = vsel %vm741, %v1020, 0
        %v1042 = vsel %vm741, %v1021, 0
        %v1045 = vsel %vm741, %v1022, 0
        %v1048 = vsel %vm741, %v1023, 0
        %v1051 = vsel %vm741, %v1024, 0
        %v1054 = vsel %vm741, %v1025, 0
        %v1057 = vsel %vm741, %v1026, 0
        %v1060 = vsel %vm741, %v1027, 0
        %v1063 = vsel %vm741, %v1028, 0
        %v1066 = vsel %vm741, %v1029, 0
        %v1069 = vsel %vm741, %v1030, 0
        %v1072 = vsel %vm741, %v1031, 0
        %v1075 = vsel %vm741, %v1032, 0
        %v1078 = vsel %vm741, %v1033, 0
        %v1081 = vsel %vm741, %v1034, 0
        %v1084 = vsel %vm790, %v297, 0
        %1086 = vmatprep.subr.bf16.mxu0 0
        %1087 = vmatpush1.bf16.msra.mxu0 %v1084
        %1088 = vmatprep.subr.bf16.mxu0 0
        %1089 = vmatpush1.bf16.msra.mxu0 0
        %1090 = vmatprep.subr.bf16.mxu0 0
        %1091 = vmatpush1.bf16.msra.mxu0 0
        %1092 = vmatprep.subr.bf16.mxu0 0
        %1093 = vmatpush1.bf16.msra.mxu0 0
        %1094 = vmatprep.subr.bf16.mxu0 0
        %1095 = vmatpush1.bf16.msra.mxu0 0
        %1096 = vmatprep.subr.bf16.mxu0 0
        %1097 = vmatpush1.bf16.msra.mxu0 0
        %1098 = vmatprep.subr.bf16.mxu0 0
        %1099 = vmatpush1.bf16.msra.mxu0 0
        %1100 = vmatprep.subr.bf16.mxu0 0
        %1101 = vmatpush1.bf16.msra.mxu0 0
        %1102 = vmatprep.subr.bf16.mxu0 0
        %1103 = vmatpush1.bf16.msra.mxu0 0
        %1104 = vmatprep.subr.bf16.mxu0 0
        %1105 = vmatpush1.bf16.msra.mxu0 0
        %1106 = vmatprep.subr.bf16.mxu0 0
        %1107 = vmatpush1.bf16.msra.mxu0 0
        %1108 = vmatprep.subr.bf16.mxu0 0
        %1109 = vmatpush1.bf16.msra.mxu0 0
        %1110 = vmatprep.subr.bf16.mxu0 0
        %1111 = vmatpush1.bf16.msra.mxu0 0
        %1112 = vmatprep.subr.bf16.mxu0 0
        %1113 = vmatpush1.bf16.msra.mxu0 0
        %1114 = vmatprep.subr.bf16.mxu0 0
        %1115 = vmatpush1.bf16.msra.mxu0 0
        %1116 = vmatprep.subr.bf16.mxu0 0
        %1117 = vmatpush1.bf16.msra.mxu0 0
        %1118 = vmatprep.mubr.bf16.mxu0 0
        %1119 = vmatmul.mubr.bf16.gmra.mrb[0].mxu0 %v1036
        %v1120 = vpop.f32.mrb[0].mxu0
        %v1121 = vadd.f32 %v829, %v1120
        %v1122 = vpop.f32.mrb[0].mxu0
        %v1123 = vpop.f32.mrb[0].mxu0
        %v1124 = vadd.f32 %v832, %v1123
        %v1125 = vpop.f32.mrb[0].mxu0
        %1126 = vmatprep.mubr.bf16.mxu0 0
        %1127 = vmatmul.mubr.bf16.gmra.mrb[0].mxu0 %v1039
        %v1128 = vpop.f32.mrb[0].mxu0
        %v1129 = vadd.f32 %v837, %v1128
        %v1130 = vpop.f32.mrb[0].mxu0
        %v1131 = vpop.f32.mrb[0].mxu0
        %v1132 = vadd.f32 %v840, %v1131
        %v1133 = vpop.f32.mrb[0].mxu0
        %1134 = vmatprep.mubr.bf16.mxu0 0
        %1135 = vmatmul.mubr.bf16.gmra.mrb[0].mxu0 %v1042
        %v1136 = vpop.f32.mrb[0].mxu0
        %v1137 = vadd.f32 %v845, %v1136
        %v1138 = vpop.f32.mrb[0].mxu0
        %v1139 = vpop.f32.mrb[0].mxu0
        %v1140 = vadd.f32 %v848, %v1139
        %v1141 = vpop.f32.mrb[0].mxu0
        %1142 = vmatprep.mubr.bf16.mxu0 0
        %1143 = vmatmul.mubr.bf16.gmra.mrb[0].mxu0 %v1045
        %v1144 = vpop.f32.mrb[0].mxu0
        %v1145 = vadd.f32 %v853, %v1144
        %v1146 = vpop.f32.mrb[0].mxu0
        %v1147 = vpop.f32.mrb[0].mxu0
        %v1148 = vadd.f32 %v856, %v1147
        %v1149 = vpop.f32.mrb[0].mxu0
        %1150 = vmatprep.mubr.bf16.mxu0 0
        %1151 = vmatmul.mubr.bf16.gmra.mrb[0].mxu0 %v1048
        %v1152 = vpop.f32.mrb[0].mxu0
        %v1153 = vadd.f32 %v861, %v1152
        %v1154 = vpop.f32.mrb[0].mxu0
        %v1155 = vpop.f32.mrb[0].mxu0
        %v1156 = vadd.f32 %v864, %v1155
        %v1157 = vpop.f32.mrb[0].mxu0
        %1158 = vmatprep.mubr.bf16.mxu0 0
        %1159 = vmatmul.mubr.bf16.gmra.mrb[0].mxu0 %v1051
        %v1160 = vpop.f32.mrb[0].mxu0
        %v1161 = vadd.f32 %v869, %v1160
        %v1162 = vpop.f32.mrb[0].mxu0
        %v1163 = vpop.f32.mrb[0].mxu0
        %v1164 = vadd.f32 %v872, %v1163
        %v1165 = vpop.f32.mrb[0].mxu0
        %1166 = vmatprep.mubr.bf16.mxu0 0
        %1167 = vmatmul.mubr.bf16.gmra.mrb[0].mxu0 %v1054
        %v1168 = vpop.f32.mrb[0].mxu0
        %v1169 = vadd.f32 %v877, %v1168
        %v1170 = vpop.f32.mrb[0].mxu0
        %v1171 = vpop.f32.mrb[0].mxu0
        %v1172 = vadd.f32 %v880, %v1171
        %v1173 = vpop.f32.mrb[0].mxu0
        %1174 = vmatprep.mubr.bf16.mxu0 0
        %1175 = vmatmul.mubr.bf16.gmra.mrb[0].mxu0 %v1057
        %v1176 = vpop.f32.mrb[0].mxu0
        %v1177 = vadd.f32 %v885, %v1176
        %v1178 = vpop.f32.mrb[0].mxu0
        %v1179 = vpop.f32.mrb[0].mxu0
        %v1180 = vadd.f32 %v888, %v1179
        %v1181 = vpop.f32.mrb[0].mxu0
        %1182 = vmatprep.mubr.bf16.mxu0 0
        %1183 = vmatmul.mubr.bf16.gmra.mrb[0].mxu0 %v1060
        %v1184 = vpop.f32.mrb[0].mxu0
        %v1185 = vadd.f32 %v893, %v1184
        %v1186 = vpop.f32.mrb[0].mxu0
        %v1187 = vpop.f32.mrb[0].mxu0
        %v1188 = vadd.f32 %v896, %v1187
        %v1189 = vpop.f32.mrb[0].mxu0
        %1190 = vmatprep.mubr.bf16.mxu0 0
        %1191 = vmatmul.mubr.bf16.gmra.mrb[0].mxu0 %v1063
        %v1192 = vpop.f32.mrb[0].mxu0
        %v1193 = vadd.f32 %v901, %v1192
        %v1194 = vpop.f32.mrb[0].mxu0
        %v1195 = vpop.f32.mrb[0].mxu0
        %v1196 = vadd.f32 %v904, %v1195
        %v1197 = vpop.f32.mrb[0].mxu0
        %1198 = vmatprep.mubr.bf16.mxu0 0
        %1199 = vmatmul.mubr.bf16.gmra.mrb[0].mxu0 %v1066
        %v1200 = vpop.f32.mrb[0].mxu0
        %v1201 = vadd.f32 %v909, %v1200
        %v1202 = vpop.f32.mrb[0].mxu0
        %v1203 = vpop.f32.mrb[0].mxu0
        %v1204 = vadd.f32 %v912, %v1203
        %v1205 = vpop.f32.mrb[0].mxu0
        %1206 = vmatprep.mubr.bf16.mxu0 0
        %1207 = vmatmul.mubr.bf16.gmra.mrb[0].mxu0 %v1069
        %v1208 = vpop.f32.mrb[0].mxu0
        %v1209 = vadd.f32 %v917, %v1208
        %v1210 = vpop.f32.mrb[0].mxu0
        %v1211 = vpop.f32.mrb[0].mxu0
        %v1212 = vadd.f32 %v920, %v1211
        %v1213 = vpop.f32.mrb[0].mxu0
        %1214 = vmatprep.mubr.bf16.mxu0 0
        %1215 = vmatmul.mubr.bf16.gmra.mrb[0].mxu0 %v1072
        %v1216 = vpop.f32.mrb[0].mxu0
        %v1217 = vadd.f32 %v925, %v1216
        %v1218 = vpop.f32.mrb[0].mxu0
        %v1219 = vpop.f32.mrb[0].mxu0
        %v1220 = vadd.f32 %v928, %v1219
        %v1221 = vpop.f32.mrb[0].mxu0
        %1222 = vmatprep.mubr.bf16.mxu0 0
        %1223 = vmatmul.mubr.bf16.gmra.mrb[0].mxu0 %v1075
        %v1224 = vpop.f32.mrb[0].mxu0
        %v1225 = vadd.f32 %v933, %v1224
        %v1226 = vpop.f32.mrb[0].mxu0
        %v1227 = vpop.f32.mrb[0].mxu0
        %v1228 = vadd.f32 %v936, %v1227
        %v1229 = vpop.f32.mrb[0].mxu0
        %1230 = vmatprep.mubr.bf16.mxu0 0
        %1231 = vmatmul.mubr.bf16.gmra.mrb[0].mxu0 %v1078
        %v1232 = vpop.f32.mrb[0].mxu0
        %v1233 = vadd.f32 %v941, %v1232
        %v1234 = vpop.f32.mrb[0].mxu0
        %v1235 = vpop.f32.mrb[0].mxu0
        %v1236 = vadd.f32 %v944, %v1235
        %v1237 = vpop.f32.mrb[0].mxu0
        %1238 = vmatprep.mubr.bf16.mxu0 0
        %1239 = vmatmul.mubr.bf16.gmra.mrb[0].mxu0 %v1081
        %v1240 = vpop.f32.mrb[0].mxu0
        %v1241 = vadd.f32 %v949, %v1240
        %v1242 = vpop.f32.mrb[0].mxu0
        %v1243 = vpop.f32.mrb[0].mxu0
        %v1244 = vadd.f32 %v952, %v1243
        %v1245 = vpop.f32.mrb[0].mxu0
        %1246 = vdwg.mxu0
        %vm1263 = vcmask 1042432
        %vm1264 = vcmask 1046532
        %vm1265 = vmor %vm1263, %vm1264
        %v1266 = vrot.slane %v243, 5
        %v1267 = vrot.slane %v1266, 4
        %v1268 = vrot.slane %v244, 5
        %v1269 = vsel %vm1265, %v1267, %v1268
        %v1270 = vrot.slane %v1268, 4
        %v1271 = vrot.slane %v245, 5
        %v1272 = vsel %vm1265, %v1270, %v1271
        %v1273 = vrot.slane %v246, 5
        %v1274 = vrot.slane %v1273, 4
        %v1275 = vrot.slane %v247, 5
        %v1276 = vsel %vm1265, %v1274, %v1275
        %v1277 = vrot.slane %v1275, 4
        %v1278 = vrot.slane %v248, 5
        %v1279 = vsel %vm1265, %v1277, %v1278
        %v1280 = vrot.slane %v249, 5
        %v1281 = vrot.slane %v1280, 4
        %v1282 = vrot.slane %v250, 5
        %v1283 = vsel %vm1265, %v1281, %v1282
        %v1284 = vrot.slane %v1282, 4
        %v1285 = vrot.slane %v251, 5
        %v1286 = vsel %vm1265, %v1284, %v1285
        %v1287 = vrot.slane %v252, 5
        %v1288 = vrot.slane %v1287, 4
        %v1289 = vrot.slane %v253, 5
        %v1290 = vsel %vm1265, %v1288, %v1289
        %v1291 = vrot.slane %v1289, 4
        %v1292 = vrot.slane %v254, 5
        %v1293 = vsel %vm1265, %v1291, %v1292
        %v1294 = vrot.slane %v255, 5
        %v1295 = vrot.slane %v1294, 4
        %v1296 = vrot.slane %v256, 5
        %v1297 = vsel %vm1265, %v1295, %v1296
        %v1298 = vrot.slane %v1296, 4
        %v1299 = vrot.slane %v257, 5
        %v1300 = vsel %vm1265, %v1298, %v1299
        %v1301 = vrot.slane %v258, 5
        %v1302 = vrot.slane %v1301, 4
        %v1303 = vrot.slane %v259, 5
        %v1304 = vsel %vm1265, %v1302, %v1303
        %v1305 = vrot.slane %v1303, 4
        %v1306 = vrot.slane %v260, 5
        %v1307 = vsel %vm1265, %v1305, %v1306
        %v1308 = vrot.slane %v261, 5
        %v1309 = vrot.slane %v1308, 4
        %v1310 = vrot.slane %v262, 5
        %v1311 = vsel %vm1265, %v1309, %v1310
        %v1312 = vrot.slane %v1310, 4
        %v1313 = vrot.slane %v263, 5
        %v1314 = vsel %vm1265, %v1312, %v1313
        %v1315 = vrot.slane %v264, 5
        %v1316 = vrot.slane %v1315, 4
        %v1317 = vrot.slane %v265, 5
        %v1318 = vsel %vm1265, %v1316, %v1317
        %v1319 = vrot.slane %v1317, 4
        %v1320 = vrot.slane %v266, 5
        %v1321 = vsel %vm1265, %v1319, %v1320
        %v1322 = vrot.slane %v267, 5
        %v1323 = vrot.slane %v1322, 4
        %v1324 = vrot.slane %v268, 5
        %v1325 = vsel %vm1265, %v1323, %v1324
        %v1326 = vrot.slane %v1324, 4
        %v1327 = vrot.slane %v269, 5
        %v1328 = vsel %vm1265, %v1326, %v1327
        %v1329 = vrot.slane %v270, 5
        %v1330 = vrot.slane %v1329, 4
        %v1331 = vrot.slane %v271, 5
        %v1332 = vsel %vm1265, %v1330, %v1331
        %v1333 = vrot.slane %v1331, 4
        %v1334 = vrot.slane %v272, 5
        %v1335 = vsel %vm1265, %v1333, %v1334
        %v1336 = vrot.slane %v273, 5
        %v1337 = vrot.slane %v1336, 4
        %v1338 = vrot.slane %v274, 5
        %v1339 = vsel %vm1265, %v1337, %v1338
        %v1340 = vrot.slane %v1338, 4
        %v1341 = vrot.slane %v275, 5
        %v1342 = vsel %vm1265, %v1340, %v1341
        %v1343 = vrot.slane %v276, 5
        %v1344 = vrot.slane %v1343, 4
        %v1345 = vrot.slane %v277, 5
        %v1346 = vsel %vm1265, %v1344, %v1345
        %v1347 = vrot.slane %v1345, 4
        %v1348 = vrot.slane %v278, 5
        %v1349 = vsel %vm1265, %v1347, %v1348
        %v1350 = vrot.slane %v279, 5
        %v1351 = vrot.slane %v1350, 4
        %v1352 = vrot.slane %v280, 5
        %v1353 = vsel %vm1265, %v1351, %v1352
        %v1354 = vrot.slane %v1352, 4
        %v1355 = vrot.slane %v281, 5
        %v1356 = vsel %vm1265, %v1354, %v1355
        %v1357 = vrot.slane %v282, 5
        %v1358 = vrot.slane %v1357, 4
        %v1359 = vrot.slane %v283, 5
        %v1360 = vsel %vm1265, %v1358, %v1359
        %v1361 = vrot.slane %v1359, 4
        %v1362 = vrot.slane %v284, 5
        %v1363 = vsel %vm1265, %v1361, %v1362
        %v1364 = vrot.slane %v285, 5
        %v1365 = vrot.slane %v1364, 4
        %v1366 = vrot.slane %v286, 5
        %v1367 = vsel %vm1265, %v1365, %v1366
        %v1368 = vrot.slane %v1366, 4
        %v1369 = vrot.slane %v287, 5
        %v1370 = vsel %vm1265, %v1368, %v1369
        %v1371 = vrot.slane %v288, 5
        %v1372 = vrot.slane %v1371, 4
        %v1373 = vrot.slane %v289, 5
        %v1374 = vsel %vm1265, %v1372, %v1373
        %v1375 = vrot.slane %v1373, 4
        %v1376 = vrot.slane %v290, 5
        %v1377 = vsel %vm1265, %v1375, %v1376
        %v1378 = vunpack.c.l.b16 %v1269
        %v1379 = vunpack.c.l.b16 %v1272
        %v1380 = vunpack.c.l.b16 %v1276
        %v1381 = vunpack.c.l.b16 %v1279
        %v1382 = vunpack.c.l.b16 %v1283
        %v1383 = vunpack.c.l.b16 %v1286
        %v1384 = vunpack.c.l.b16 %v1290
        %v1385 = vunpack.c.l.b16 %v1293
        %v1386 = vunpack.c.l.b16 %v1297
        %v1387 = vunpack.c.l.b16 %v1300
        %v1388 = vunpack.c.l.b16 %v1304
        %v1389 = vunpack.c.l.b16 %v1307
        %v1390 = vunpack.c.l.b16 %v1311
        %v1391 = vunpack.c.l.b16 %v1314
        %v1392 = vunpack.c.l.b16 %v1318
        %v1393 = vunpack.c.l.b16 %v1321
        %v1394 = vunpack.c.l.b16 %v1325
        %v1395 = vunpack.c.l.b16 %v1328
        %v1396 = vunpack.c.l.b16 %v1332
        %v1397 = vunpack.c.l.b16 %v1335
        %v1398 = vunpack.c.l.b16 %v1339
        %v1399 = vunpack.c.l.b16 %v1342
        %v1400 = vunpack.c.l.b16 %v1346
        %v1401 = vunpack.c.l.b16 %v1349
        %v1402 = vunpack.c.l.b16 %v1353
        %v1403 = vunpack.c.l.b16 %v1356
        %v1404 = vunpack.c.l.b16 %v1360
        %v1405 = vunpack.c.l.b16 %v1363
        %v1406 = vunpack.c.l.b16 %v1367
        %v1407 = vunpack.c.l.b16 %v1370
        %v1408 = vunpack.c.l.b16 %v1374
        %v1409 = vunpack.c.l.b16 %v1377
        %v1410 = vpack.c.b16 %v1379, %v1378
        %v1411 = vpack.c.b16 %v1381, %v1380
        %v1412 = vpack.c.b16 %v1383, %v1382
        %v1413 = vpack.c.b16 %v1385, %v1384
        %v1414 = vpack.c.b16 %v1387, %v1386
        %v1415 = vpack.c.b16 %v1389, %v1388
        %v1416 = vpack.c.b16 %v1391, %v1390
        %v1417 = vpack.c.b16 %v1393, %v1392
        %v1418 = vpack.c.b16 %v1395, %v1394
        %v1419 = vpack.c.b16 %v1397, %v1396
        %v1420 = vpack.c.b16 %v1399, %v1398
        %v1421 = vpack.c.b16 %v1401, %v1400
        %v1422 = vpack.c.b16 %v1403, %v1402
        %v1423 = vpack.c.b16 %v1405, %v1404
        %v1424 = vpack.c.b16 %v1407, %v1406
        %v1425 = vpack.c.b16 %v1409, %v1408
        %v1427 = vsel %vm741, %v1410, 0
        %v1430 = vsel %vm741, %v1411, 0
        %v1433 = vsel %vm741, %v1412, 0
        %v1436 = vsel %vm741, %v1413, 0
        %v1439 = vsel %vm741, %v1414, 0
        %v1442 = vsel %vm741, %v1415, 0
        %v1445 = vsel %vm741, %v1416, 0
        %v1448 = vsel %vm741, %v1417, 0
        %v1451 = vsel %vm741, %v1418, 0
        %v1454 = vsel %vm741, %v1419, 0
        %v1457 = vsel %vm741, %v1420, 0
        %v1460 = vsel %vm741, %v1421, 0
        %v1463 = vsel %vm741, %v1422, 0
        %v1466 = vsel %vm741, %v1423, 0
        %v1469 = vsel %vm741, %v1424, 0
        %v1472 = vsel %vm741, %v1425, 0
        %v1475 = vsel %vm790, %v299, 0
        %1477 = vmatprep.subr.bf16.mxu0 0
        %1478 = vmatpush1.bf16.msra.mxu0 %v1475
        %1479 = vmatprep.subr.bf16.mxu0 0
        %1480 = vmatpush1.bf16.msra.mxu0 0
        %1481 = vmatprep.subr.bf16.mxu0 0
        %1482 = vmatpush1.bf16.msra.mxu0 0
        %1483 = vmatprep.subr.bf16.mxu0 0
        %1484 = vmatpush1.bf16.msra.mxu0 0
        %1485 = vmatprep.subr.bf16.mxu0 0
        %1486 = vmatpush1.bf16.msra.mxu0 0
        %1487 = vmatprep.subr.bf16.mxu0 0
        %1488 = vmatpush1.bf16.msra.mxu0 0
        %1489 = vmatprep.subr.bf16.mxu0 0
        %1490 = vmatpush1.bf16.msra.mxu0 0
        %1491 = vmatprep.subr.bf16.mxu0 0
        %1492 = vmatpush1.bf16.msra.mxu0 0
        %1493 = vmatprep.subr.bf16.mxu0 0
        %1494 = vmatpush1.bf16.msra.mxu0 0
        %1495 = vmatprep.subr.bf16.mxu0 0
        %1496 = vmatpush1.bf16.msra.mxu0 0
        %1497 = vmatprep.subr.bf16.mxu0 0
        %1498 = vmatpush1.bf16.msra.mxu0 0
        %1499 = vmatprep.subr.bf16.mxu0 0
        %1500 = vmatpush1.bf16.msra.mxu0 0
        %1501 = vmatprep.subr.bf16.mxu0 0
        %1502 = vmatpush1.bf16.msra.mxu0 0
        %1503 = vmatprep.subr.bf16.mxu0 0
        %1504 = vmatpush1.bf16.msra.mxu0 0
        %1505 = vmatprep.subr.bf16.mxu0 0
        %1506 = vmatpush1.bf16.msra.mxu0 0
        %1507 = vmatprep.subr.bf16.mxu0 0
        %1508 = vmatpush1.bf16.msra.mxu0 0
        %1509 = vmatprep.mubr.bf16.mxu0 0
        %1510 = vmatmul.mubr.bf16.gmra.mrb[0].mxu0 %v1427
        %v1511 = vpop.f32.mrb[0].mxu0
        %v1512 = vadd.f32 0.0, %v1511
        %v1513 = vpop.f32.mrb[0].mxu0
        %v1514 = vpop.f32.mrb[0].mxu0
        %v1515 = vadd.f32 0.0, %v1514
        %v1516 = vpop.f32.mrb[0].mxu0
        %1517 = vmatprep.mubr.bf16.mxu0 0
        %1518 = vmatmul.mubr.bf16.gmra.mrb[0].mxu0 %v1430
        %v1519 = vpop.f32.mrb[0].mxu0
        %v1520 = vadd.f32 0.0, %v1519
        %v1521 = vpop.f32.mrb[0].mxu0
        %v1522 = vpop.f32.mrb[0].mxu0
        %v1523 = vadd.f32 0.0, %v1522
        %v1524 = vpop.f32.mrb[0].mxu0
        %1525 = vmatprep.mubr.bf16.mxu0 0
        %1526 = vmatmul.mubr.bf16.gmra.mrb[0].mxu0 %v1433
        %v1527 = vpop.f32.mrb[0].mxu0
        %v1528 = vadd.f32 0.0, %v1527
        %v1529 = vpop.f32.mrb[0].mxu0
        %v1530 = vpop.f32.mrb[0].mxu0
        %v1531 = vadd.f32 0.0, %v1530
        %v1532 = vpop.f32.mrb[0].mxu0
        %1533 = vmatprep.mubr.bf16.mxu0 0
        %1534 = vmatmul.mubr.bf16.gmra.mrb[0].mxu0 %v1436
        %v1535 = vpop.f32.mrb[0].mxu0
        %v1536 = vadd.f32 0.0, %v1535
        %v1537 = vpop.f32.mrb[0].mxu0
        %v1538 = vpop.f32.mrb[0].mxu0
        %v1539 = vadd.f32 0.0, %v1538
        %v1540 = vpop.f32.mrb[0].mxu0
        %1541 = vmatprep.mubr.bf16.mxu0 0
        %1542 = vmatmul.mubr.bf16.gmra.mrb[0].mxu0 %v1439
        %v1543 = vpop.f32.mrb[0].mxu0
        %v1544 = vadd.f32 0.0, %v1543
        %v1545 = vpop.f32.mrb[0].mxu0
        %v1546 = vpop.f32.mrb[0].mxu0
        %v1547 = vadd.f32 0.0, %v1546
        %v1548 = vpop.f32.mrb[0].mxu0
        %1549 = vmatprep.mubr.bf16.mxu0 0
        %1550 = vmatmul.mubr.bf16.gmra.mrb[0].mxu0 %v1442
        %v1551 = vpop.f32.mrb[0].mxu0
        %v1552 = vadd.f32 0.0, %v1551
        %v1553 = vpop.f32.mrb[0].mxu0
        %v1554 = vpop.f32.mrb[0].mxu0
        %v1555 = vadd.f32 0.0, %v1554
        %v1556 = vpop.f32.mrb[0].mxu0
        %1557 = vmatprep.mubr.bf16.mxu0 0
        %1558 = vmatmul.mubr.bf16.gmra.mrb[0].mxu0 %v1445
        %v1559 = vpop.f32.mrb[0].mxu0
        %v1560 = vadd.f32 0.0, %v1559
        %v1561 = vpop.f32.mrb[0].mxu0
        %v1562 = vpop.f32.mrb[0].mxu0
        %v1563 = vadd.f32 0.0, %v1562
        %v1564 = vpop.f32.mrb[0].mxu0
        %1565 = vmatprep.mubr.bf16.mxu0 0
        %1566 = vmatmul.mubr.bf16.gmra.mrb[0].mxu0 %v1448
        %v1567 = vpop.f32.mrb[0].mxu0
        %v1568 = vadd.f32 0.0, %v1567
        %v1569 = vpop.f32.mrb[0].mxu0
        %v1570 = vpop.f32.mrb[0].mxu0
        %v1571 = vadd.f32 0.0, %v1570
        %v1572 = vpop.f32.mrb[0].mxu0
        %1573 = vmatprep.mubr.bf16.mxu0 0
        %1574 = vmatmul.mubr.bf16.gmra.mrb[0].mxu0 %v1451
        %v1575 = vpop.f32.mrb[0].mxu0
        %v1576 = vadd.f32 0.0, %v1575
        %v1577 = vpop.f32.mrb[0].mxu0
        %v1578 = vpop.f32.mrb[0].mxu0
        %v1579 = vadd.f32 0.0, %v1578
        %v1580 = vpop.f32.mrb[0].mxu0
        %1581 = vmatprep.mubr.bf16.mxu0 0
        %1582 = vmatmul.mubr.bf16.gmra.mrb[0].mxu0 %v1454
        %v1583 = vpop.f32.mrb[0].mxu0
        %v1584 = vadd.f32 0.0, %v1583
        %v1585 = vpop.f32.mrb[0].mxu0
        %v1586 = vpop.f32.mrb[0].mxu0
        %v1587 = vadd.f32 0.0, %v1586
        %v1588 = vpop.f32.mrb[0].mxu0
        %1589 = vmatprep.mubr.bf16.mxu0 0
        %1590 = vmatmul.mubr.bf16.gmra.mrb[0].mxu0 %v1457
        %v1591 = vpop.f32.mrb[0].mxu0
        %v1592 = vadd.f32 0.0, %v1591
        %v1593 = vpop.f32.mrb[0].mxu0
        %v1594 = vpop.f32.mrb[0].mxu0
        %v1595 = vadd.f32 0.0, %v1594
        %v1596 = vpop.f32.mrb[0].mxu0
        %1597 = vmatprep.mubr.bf16.mxu0 0
        %1598 = vmatmul.mubr.bf16.gmra.mrb[0].mxu0 %v1460
        %v1599 = vpop.f32.mrb[0].mxu0
        %v1600 = vadd.f32 0.0, %v1599
        %v1601 = vpop.f32.mrb[0].mxu0
        %v1602 = vpop.f32.mrb[0].mxu0
        %v1603 = vadd.f32 0.0, %v1602
        %v1604 = vpop.f32.mrb[0].mxu0
        %1605 = vmatprep.mubr.bf16.mxu0 0
        %1606 = vmatmul.mubr.bf16.gmra.mrb[0].mxu0 %v1463
        %v1607 = vpop.f32.mrb[0].mxu0
        %v1608 = vadd.f32 0.0, %v1607
        %v1609 = vpop.f32.mrb[0].mxu0
        %v1610 = vpop.f32.mrb[0].mxu0
        %v1611 = vadd.f32 0.0, %v1610
        %v1612 = vpop.f32.mrb[0].mxu0
        %1613 = vmatprep.mubr.bf16.mxu0 0
        %1614 = vmatmul.mubr.bf16.gmra.mrb[0].mxu0 %v1466
        %v1615 = vpop.f32.mrb[0].mxu0
        %v1616 = vadd.f32 0.0, %v1615
        %v1617 = vpop.f32.mrb[0].mxu0
        %v1618 = vpop.f32.mrb[0].mxu0
        %v1619 = vadd.f32 0.0, %v1618
        %v1620 = vpop.f32.mrb[0].mxu0
        %1621 = vmatprep.mubr.bf16.mxu0 0
        %1622 = vmatmul.mubr.bf16.gmra.mrb[0].mxu0 %v1469
        %v1623 = vpop.f32.mrb[0].mxu0
        %v1624 = vadd.f32 0.0, %v1623
        %v1625 = vpop.f32.mrb[0].mxu0
        %v1626 = vpop.f32.mrb[0].mxu0
        %v1627 = vadd.f32 0.0, %v1626
        %v1628 = vpop.f32.mrb[0].mxu0
        %1629 = vmatprep.mubr.bf16.mxu0 0
        %1630 = vmatmul.mubr.bf16.gmra.mrb[0].mxu0 %v1472
        %v1631 = vpop.f32.mrb[0].mxu0
        %v1632 = vadd.f32 0.0, %v1631
        %v1633 = vpop.f32.mrb[0].mxu0
        %v1634 = vpop.f32.mrb[0].mxu0
        %v1635 = vadd.f32 0.0, %v1634
        %v1636 = vpop.f32.mrb[0].mxu0
        %1637 = vdwg.mxu0
        %v1638 = vadd.f32 %v1121, %v1512
        %v1639 = vadd.f32 %v1124, %v1515
        %v1640 = vadd.f32 %v1129, %v1520
        %v1641 = vadd.f32 %v1132, %v1523
        %v1642 = vadd.f32 %v1137, %v1528
        %v1643 = vadd.f32 %v1140, %v1531
        %v1644 = vadd.f32 %v1145, %v1536
        %v1645 = vadd.f32 %v1148, %v1539
        %v1646 = vadd.f32 %v1153, %v1544
        %v1647 = vadd.f32 %v1156, %v1547
        %v1648 = vadd.f32 %v1161, %v1552
        %v1649 = vadd.f32 %v1164, %v1555
        %v1650 = vadd.f32 %v1169, %v1560
        %v1651 = vadd.f32 %v1172, %v1563
        %v1652 = vadd.f32 %v1177, %v1568
        %v1653 = vadd.f32 %v1180, %v1571
        %v1654 = vadd.f32 %v1185, %v1576
        %v1655 = vadd.f32 %v1188, %v1579
        %v1656 = vadd.f32 %v1193, %v1584
        %v1657 = vadd.f32 %v1196, %v1587
        %v1658 = vadd.f32 %v1201, %v1592
        %v1659 = vadd.f32 %v1204, %v1595
        %v1660 = vadd.f32 %v1209, %v1600
        %v1661 = vadd.f32 %v1212, %v1603
        %v1662 = vadd.f32 %v1217, %v1608
        %v1663 = vadd.f32 %v1220, %v1611
        %v1664 = vadd.f32 %v1225, %v1616
        %v1665 = vadd.f32 %v1228, %v1619
        %v1666 = vadd.f32 %v1233, %v1624
        %v1667 = vadd.f32 %v1236, %v1627
        %v1668 = vadd.f32 %v1241, %v1632
        %v1669 = vadd.f32 %v1244, %v1635
        %v1672 = vunpack.c.l.b16 %v291
        %v1673 = vunpack.c.l.b16 %v292
        %v1674 = vpack.c.b16 %v1673, %v1672
        %v1676 = vsel %vm741, %v1674, 0
        %v1679 = vsel %vm790, %v300, 0
        %1681 = vmatprep.subr.bf16.mxu0 0
        %1682 = vmatpush1.bf16.msra.mxu0 %v1679
        %1683 = vmatprep.subr.bf16.mxu0 0
        %1684 = vmatpush1.bf16.msra.mxu0 0
        %1685 = vmatprep.subr.bf16.mxu0 0
        %1686 = vmatpush1.bf16.msra.mxu0 0
        %1687 = vmatprep.subr.bf16.mxu0 0
        %1688 = vmatpush1.bf16.msra.mxu0 0
        %1689 = vmatprep.subr.bf16.mxu0 0
        %1690 = vmatpush1.bf16.msra.mxu0 0
        %1691 = vmatprep.subr.bf16.mxu0 0
        %1692 = vmatpush1.bf16.msra.mxu0 0
        %1693 = vmatprep.subr.bf16.mxu0 0
        %1694 = vmatpush1.bf16.msra.mxu0 0
        %1695 = vmatprep.subr.bf16.mxu0 0
        %1696 = vmatpush1.bf16.msra.mxu0 0
        %1697 = vmatprep.subr.bf16.mxu0 0
        %1698 = vmatpush1.bf16.msra.mxu0 0
        %1699 = vmatprep.subr.bf16.mxu0 0
        %1700 = vmatpush1.bf16.msra.mxu0 0
        %1701 = vmatprep.subr.bf16.mxu0 0
        %1702 = vmatpush1.bf16.msra.mxu0 0
        %1703 = vmatprep.subr.bf16.mxu0 0
        %1704 = vmatpush1.bf16.msra.mxu0 0
        %1705 = vmatprep.subr.bf16.mxu0 0
        %1706 = vmatpush1.bf16.msra.mxu0 0
        %1707 = vmatprep.subr.bf16.mxu0 0
        %1708 = vmatpush1.bf16.msra.mxu0 0
        %1709 = vmatprep.subr.bf16.mxu0 0
        %1710 = vmatpush1.bf16.msra.mxu0 0
        %1711 = vmatprep.subr.bf16.mxu0 0
        %1712 = vmatpush1.bf16.msra.mxu0 0
        %1713 = vmatprep.mubr.bf16.mxu0 0
        %1714 = vmatmul.mubr.bf16.gmra.mrb[0].mxu0 %v1039
        %v1715 = vpop.f32.mrb[0].mxu0
        %v1716 = vadd.f32 0.0, %v1715
        %v1717 = vpop.f32.mrb[0].mxu0
        %v1718 = vpop.f32.mrb[0].mxu0
        %v1719 = vadd.f32 0.0, %v1718
        %v1720 = vpop.f32.mrb[0].mxu0
        %1721 = vmatprep.mubr.bf16.mxu0 0
        %1722 = vmatmul.mubr.bf16.gmra.mrb[0].mxu0 %v1042
        %v1723 = vpop.f32.mrb[0].mxu0
        %v1724 = vadd.f32 0.0, %v1723
        %v1725 = vpop.f32.mrb[0].mxu0
        %v1726 = vpop.f32.mrb[0].mxu0
        %v1727 = vadd.f32 0.0, %v1726
        %v1728 = vpop.f32.mrb[0].mxu0
        %1729 = vmatprep.mubr.bf16.mxu0 0
        %1730 = vmatmul.mubr.bf16.gmra.mrb[0].mxu0 %v1045
        %v1731 = vpop.f32.mrb[0].mxu0
        %v1732 = vadd.f32 0.0, %v1731
        %v1733 = vpop.f32.mrb[0].mxu0
        %v1734 = vpop.f32.mrb[0].mxu0
        %v1735 = vadd.f32 0.0, %v1734
        %v1736 = vpop.f32.mrb[0].mxu0
        %1737 = vmatprep.mubr.bf16.mxu0 0
        %1738 = vmatmul.mubr.bf16.gmra.mrb[0].mxu0 %v1048
        %v1739 = vpop.f32.mrb[0].mxu0
        %v1740 = vadd.f32 0.0, %v1739
        %v1741 = vpop.f32.mrb[0].mxu0
        %v1742 = vpop.f32.mrb[0].mxu0
        %v1743 = vadd.f32 0.0, %v1742
        %v1744 = vpop.f32.mrb[0].mxu0
        %1745 = vmatprep.mubr.bf16.mxu0 0
        %1746 = vmatmul.mubr.bf16.gmra.mrb[0].mxu0 %v1051
        %v1747 = vpop.f32.mrb[0].mxu0
        %v1748 = vadd.f32 0.0, %v1747
        %v1749 = vpop.f32.mrb[0].mxu0
        %v1750 = vpop.f32.mrb[0].mxu0
        %v1751 = vadd.f32 0.0, %v1750
        %v1752 = vpop.f32.mrb[0].mxu0
        %1753 = vmatprep.mubr.bf16.mxu0 0
        %1754 = vmatmul.mubr.bf16.gmra.mrb[0].mxu0 %v1054
        %v1755 = vpop.f32.mrb[0].mxu0
        %v1756 = vadd.f32 0.0, %v1755
        %v1757 = vpop.f32.mrb[0].mxu0
        %v1758 = vpop.f32.mrb[0].mxu0
        %v1759 = vadd.f32 0.0, %v1758
        %v1760 = vpop.f32.mrb[0].mxu0
        %1761 = vmatprep.mubr.bf16.mxu0 0
        %1762 = vmatmul.mubr.bf16.gmra.mrb[0].mxu0 %v1057
        %v1763 = vpop.f32.mrb[0].mxu0
        %v1764 = vadd.f32 0.0, %v1763
        %v1765 = vpop.f32.mrb[0].mxu0
        %v1766 = vpop.f32.mrb[0].mxu0
        %v1767 = vadd.f32 0.0, %v1766
        %v1768 = vpop.f32.mrb[0].mxu0
        %1769 = vmatprep.mubr.bf16.mxu0 0
        %1770 = vmatmul.mubr.bf16.gmra.mrb[0].mxu0 %v1060
        %v1771 = vpop.f32.mrb[0].mxu0
        %v1772 = vadd.f32 0.0, %v1771
        %v1773 = vpop.f32.mrb[0].mxu0
        %v1774 = vpop.f32.mrb[0].mxu0
        %v1775 = vadd.f32 0.0, %v1774
        %v1776 = vpop.f32.mrb[0].mxu0
        %1777 = vmatprep.mubr.bf16.mxu0 0
        %1778 = vmatmul.mubr.bf16.gmra.mrb[0].mxu0 %v1063
        %v1779 = vpop.f32.mrb[0].mxu0
        %v1780 = vadd.f32 0.0, %v1779
        %v1781 = vpop.f32.mrb[0].mxu0
        %v1782 = vpop.f32.mrb[0].mxu0
        %v1783 = vadd.f32 0.0, %v1782
        %v1784 = vpop.f32.mrb[0].mxu0
        %1785 = vmatprep.mubr.bf16.mxu0 0
        %1786 = vmatmul.mubr.bf16.gmra.mrb[0].mxu0 %v1066
        %v1787 = vpop.f32.mrb[0].mxu0
        %v1788 = vadd.f32 0.0, %v1787
        %v1789 = vpop.f32.mrb[0].mxu0
        %v1790 = vpop.f32.mrb[0].mxu0
        %v1791 = vadd.f32 0.0, %v1790
        %v1792 = vpop.f32.mrb[0].mxu0
        %1793 = vmatprep.mubr.bf16.mxu0 0
        %1794 = vmatmul.mubr.bf16.gmra.mrb[0].mxu0 %v1069
        %v1795 = vpop.f32.mrb[0].mxu0
        %v1796 = vadd.f32 0.0, %v1795
        %v1797 = vpop.f32.mrb[0].mxu0
        %v1798 = vpop.f32.mrb[0].mxu0
        %v1799 = vadd.f32 0.0, %v1798
        %v1800 = vpop.f32.mrb[0].mxu0
        %1801 = vmatprep.mubr.bf16.mxu0 0
        %1802 = vmatmul.mubr.bf16.gmra.mrb[0].mxu0 %v1072
        %v1803 = vpop.f32.mrb[0].mxu0
        %v1804 = vadd.f32 0.0, %v1803
        %v1805 = vpop.f32.mrb[0].mxu0
        %v1806 = vpop.f32.mrb[0].mxu0
        %v1807 = vadd.f32 0.0, %v1806
        %v1808 = vpop.f32.mrb[0].mxu0
        %1809 = vmatprep.mubr.bf16.mxu0 0
        %1810 = vmatmul.mubr.bf16.gmra.mrb[0].mxu0 %v1075
        %v1811 = vpop.f32.mrb[0].mxu0
        %v1812 = vadd.f32 0.0, %v1811
        %v1813 = vpop.f32.mrb[0].mxu0
        %v1814 = vpop.f32.mrb[0].mxu0
        %v1815 = vadd.f32 0.0, %v1814
        %v1816 = vpop.f32.mrb[0].mxu0
        %1817 = vmatprep.mubr.bf16.mxu0 0
        %1818 = vmatmul.mubr.bf16.gmra.mrb[0].mxu0 %v1078
        %v1819 = vpop.f32.mrb[0].mxu0
        %v1820 = vadd.f32 0.0, %v1819
        %v1821 = vpop.f32.mrb[0].mxu0
        %v1822 = vpop.f32.mrb[0].mxu0
        %v1823 = vadd.f32 0.0, %v1822
        %v1824 = vpop.f32.mrb[0].mxu0
        %1825 = vmatprep.mubr.bf16.mxu0 0
        %1826 = vmatmul.mubr.bf16.gmra.mrb[0].mxu0 %v1081
        %v1827 = vpop.f32.mrb[0].mxu0
        %v1828 = vadd.f32 0.0, %v1827
        %v1829 = vpop.f32.mrb[0].mxu0
        %v1830 = vpop.f32.mrb[0].mxu0
        %v1831 = vadd.f32 0.0, %v1830
        %v1832 = vpop.f32.mrb[0].mxu0
        %1833 = vmatprep.mubr.bf16.mxu0 0
        %1834 = vmatmul.mubr.bf16.gmra.mrb[0].mxu0 %v1676
        %v1835 = vpop.f32.mrb[0].mxu0
        %v1836 = vadd.f32 0.0, %v1835
        %v1837 = vpop.f32.mrb[0].mxu0
        %v1838 = vpop.f32.mrb[0].mxu0
        %v1839 = vadd.f32 0.0, %v1838
        %v1840 = vpop.f32.mrb[0].mxu0
        %1841 = vdwg.mxu0
        %v1842 = vadd.f32 %v1638, %v1716
        %v1843 = vadd.f32 %v1639, %v1719
        %v1844 = vadd.f32 %v1640, %v1724
        %v1845 = vadd.f32 %v1641, %v1727
        %v1846 = vadd.f32 %v1642, %v1732
        %v1847 = vadd.f32 %v1643, %v1735
        %v1848 = vadd.f32 %v1644, %v1740
        %v1849 = vadd.f32 %v1645, %v1743
        %v1850 = vadd.f32 %v1646, %v1748
        %v1851 = vadd.f32 %v1647, %v1751
        %v1852 = vadd.f32 %v1648, %v1756
        %v1853 = vadd.f32 %v1649, %v1759
        %v1854 = vadd.f32 %v1650, %v1764
        %v1855 = vadd.f32 %v1651, %v1767
        %v1856 = vadd.f32 %v1652, %v1772
        %v1857 = vadd.f32 %v1653, %v1775
        %v1858 = vadd.f32 %v1654, %v1780
        %v1859 = vadd.f32 %v1655, %v1783
        %v1860 = vadd.f32 %v1656, %v1788
        %v1861 = vadd.f32 %v1657, %v1791
        %v1862 = vadd.f32 %v1658, %v1796
        %v1863 = vadd.f32 %v1659, %v1799
        %v1864 = vadd.f32 %v1660, %v1804
        %v1865 = vadd.f32 %v1661, %v1807
        %v1866 = vadd.f32 %v1662, %v1812
        %v1867 = vadd.f32 %v1663, %v1815
        %v1868 = vadd.f32 %v1664, %v1820
        %v1869 = vadd.f32 %v1665, %v1823
        %v1870 = vadd.f32 %v1666, %v1828
        %v1871 = vadd.f32 %v1667, %v1831
        %v1872 = vadd.f32 %v1668, %v1836
        %v1873 = vadd.f32 %v1669, %v1839
        %v1875 = vshrl.u32 %v291, 16
        %v1877 = vrot.slane %v1875, 4
        %v1878 = vshll.u32 %v291, 16
        %v1880 = vrot.slane %v1878, 5
        %v1881 = vor.u32 %v1877, %v1880
        %v1882 = vrot.slane %v1881, 4
        %v1884 = vshll.u32 %v292, 16
        %v1886 = vrot.slane %v1884, 5
        %v1887 = vsel %vm308, %v1882, %v1886
        %v1888 = vshrl.u32 %v292, 16
        %v1890 = vrot.slane %v1888, 4
        %v1891 = vor.u32 %v1890, %v1886
        %v1892 = vrot.slane %v1891, 4
        %v1894 = vshll.u32 %v293, 16
        %v1896 = vrot.slane %v1894, 5
        %v1897 = vsel %vm308, %v1892, %v1896
        %v1898 = vunpack.c.l.b16 %v1887
        %v1899 = vunpack.c.l.b16 %v1897
        %v1900 = vpack.c.b16 %v1899, %v1898
        %v1902 = vsel %vm741, %v1900, 0
        %v1905 = vsel %vm790, %v301, 0
        %1907 = vmatprep.subr.bf16.mxu0 0
        %1908 = vmatpush1.bf16.msra.mxu0 %v1905
        %1909 = vmatprep.subr.bf16.mxu0 0
        %1910 = vmatpush1.bf16.msra.mxu0 0
        %1911 = vmatprep.subr.bf16.mxu0 0
        %1912 = vmatpush1.bf16.msra.mxu0 0
        %1913 = vmatprep.subr.bf16.mxu0 0
        %1914 = vmatpush1.bf16.msra.mxu0 0
        %1915 = vmatprep.subr.bf16.mxu0 0
        %1916 = vmatpush1.bf16.msra.mxu0 0
        %1917 = vmatprep.subr.bf16.mxu0 0
        %1918 = vmatpush1.bf16.msra.mxu0 0
        %1919 = vmatprep.subr.bf16.mxu0 0
        %1920 = vmatpush1.bf16.msra.mxu0 0
        %1921 = vmatprep.subr.bf16.mxu0 0
        %1922 = vmatpush1.bf16.msra.mxu0 0
        %1923 = vmatprep.subr.bf16.mxu0 0
        %1924 = vmatpush1.bf16.msra.mxu0 0
        %1925 = vmatprep.subr.bf16.mxu0 0
        %1926 = vmatpush1.bf16.msra.mxu0 0
        %1927 = vmatprep.subr.bf16.mxu0 0
        %1928 = vmatpush1.bf16.msra.mxu0 0
        %1929 = vmatprep.subr.bf16.mxu0 0
        %1930 = vmatpush1.bf16.msra.mxu0 0
        %1931 = vmatprep.subr.bf16.mxu0 0
        %1932 = vmatpush1.bf16.msra.mxu0 0
        %1933 = vmatprep.subr.bf16.mxu0 0
        %1934 = vmatpush1.bf16.msra.mxu0 0
        %1935 = vmatprep.subr.bf16.mxu0 0
        %1936 = vmatpush1.bf16.msra.mxu0 0
        %1937 = vmatprep.subr.bf16.mxu0 0
        %1938 = vmatpush1.bf16.msra.mxu0 0
        %1939 = vmatprep.mubr.bf16.mxu0 0
        %1940 = vmatmul.mubr.bf16.gmra.mrb[0].mxu0 %v746
        %v1941 = vpop.f32.mrb[0].mxu0
        %v1942 = vadd.f32 0.0, %v1941
        %v1943 = vpop.f32.mrb[0].mxu0
        %v1944 = vpop.f32.mrb[0].mxu0
        %v1945 = vadd.f32 0.0, %v1944
        %v1946 = vpop.f32.mrb[0].mxu0
        %1947 = vmatprep.mubr.bf16.mxu0 0
        %1948 = vmatmul.mubr.bf16.gmra.mrb[0].mxu0 %v749
        %v1949 = vpop.f32.mrb[0].mxu0
        %v1950 = vadd.f32 0.0, %v1949
        %v1951 = vpop.f32.mrb[0].mxu0
        %v1952 = vpop.f32.mrb[0].mxu0
        %v1953 = vadd.f32 0.0, %v1952
        %v1954 = vpop.f32.mrb[0].mxu0
        %1955 = vmatprep.mubr.bf16.mxu0 0
        %1956 = vmatmul.mubr.bf16.gmra.mrb[0].mxu0 %v752
        %v1957 = vpop.f32.mrb[0].mxu0
        %v1958 = vadd.f32 0.0, %v1957
        %v1959 = vpop.f32.mrb[0].mxu0
        %v1960 = vpop.f32.mrb[0].mxu0
        %v1961 = vadd.f32 0.0, %v1960
        %v1962 = vpop.f32.mrb[0].mxu0
        %1963 = vmatprep.mubr.bf16.mxu0 0
        %1964 = vmatmul.mubr.bf16.gmra.mrb[0].mxu0 %v755
        %v1965 = vpop.f32.mrb[0].mxu0
        %v1966 = vadd.f32 0.0, %v1965
        %v1967 = vpop.f32.mrb[0].mxu0
        %v1968 = vpop.f32.mrb[0].mxu0
        %v1969 = vadd.f32 0.0, %v1968
        %v1970 = vpop.f32.mrb[0].mxu0
        %1971 = vmatprep.mubr.bf16.mxu0 0
        %1972 = vmatmul.mubr.bf16.gmra.mrb[0].mxu0 %v758
        %v1973 = vpop.f32.mrb[0].mxu0
        %v1974 = vadd.f32 0.0, %v1973
        %v1975 = vpop.f32.mrb[0].mxu0
        %v1976 = vpop.f32.mrb[0].mxu0
        %v1977 = vadd.f32 0.0, %v1976
        %v1978 = vpop.f32.mrb[0].mxu0
        %1979 = vmatprep.mubr.bf16.mxu0 0
        %1980 = vmatmul.mubr.bf16.gmra.mrb[0].mxu0 %v761
        %v1981 = vpop.f32.mrb[0].mxu0
        %v1982 = vadd.f32 0.0, %v1981
        %v1983 = vpop.f32.mrb[0].mxu0
        %v1984 = vpop.f32.mrb[0].mxu0
        %v1985 = vadd.f32 0.0, %v1984
        %v1986 = vpop.f32.mrb[0].mxu0
        %1987 = vmatprep.mubr.bf16.mxu0 0
        %1988 = vmatmul.mubr.bf16.gmra.mrb[0].mxu0 %v764
        %v1989 = vpop.f32.mrb[0].mxu0
        %v1990 = vadd.f32 0.0, %v1989
        %v1991 = vpop.f32.mrb[0].mxu0
        %v1992 = vpop.f32.mrb[0].mxu0
        %v1993 = vadd.f32 0.0, %v1992
        %v1994 = vpop.f32.mrb[0].mxu0
        %1995 = vmatprep.mubr.bf16.mxu0 0
        %1996 = vmatmul.mubr.bf16.gmra.mrb[0].mxu0 %v767
        %v1997 = vpop.f32.mrb[0].mxu0
        %v1998 = vadd.f32 0.0, %v1997
        %v1999 = vpop.f32.mrb[0].mxu0
        %v2000 = vpop.f32.mrb[0].mxu0
        %v2001 = vadd.f32 0.0, %v2000
        %v2002 = vpop.f32.mrb[0].mxu0
        %2003 = vmatprep.mubr.bf16.mxu0 0
        %2004 = vmatmul.mubr.bf16.gmra.mrb[0].mxu0 %v770
        %v2005 = vpop.f32.mrb[0].mxu0
        %v2006 = vadd.f32 0.0, %v2005
        %v2007 = vpop.f32.mrb[0].mxu0
        %v2008 = vpop.f32.mrb[0].mxu0
        %v2009 = vadd.f32 0.0, %v2008
        %v2010 = vpop.f32.mrb[0].mxu0
        %2011 = vmatprep.mubr.bf16.mxu0 0
        %2012 = vmatmul.mubr.bf16.gmra.mrb[0].mxu0 %v773
        %v2013 = vpop.f32.mrb[0].mxu0
        %v2014 = vadd.f32 0.0, %v2013
        %v2015 = vpop.f32.mrb[0].mxu0
        %v2016 = vpop.f32.mrb[0].mxu0
        %v2017 = vadd.f32 0.0, %v2016
        %v2018 = vpop.f32.mrb[0].mxu0
        %2019 = vmatprep.mubr.bf16.mxu0 0
        %2020 = vmatmul.mubr.bf16.gmra.mrb[0].mxu0 %v776
        %v2021 = vpop.f32.mrb[0].mxu0
        %v2022 = vadd.f32 0.0, %v2021
        %v2023 = vpop.f32.mrb[0].mxu0
        %v2024 = vpop.f32.mrb[0].mxu0
        %v2025 = vadd.f32 0.0, %v2024
        %v2026 = vpop.f32.mrb[0].mxu0
        %2027 = vmatprep.mubr.bf16.mxu0 0
        %2028 = vmatmul.mubr.bf16.gmra.mrb[0].mxu0 %v779
        %v2029 = vpop.f32.mrb[0].mxu0
        %v2030 = vadd.f32 0.0, %v2029
        %v2031 = vpop.f32.mrb[0].mxu0
        %v2032 = vpop.f32.mrb[0].mxu0
        %v2033 = vadd.f32 0.0, %v2032
        %v2034 = vpop.f32.mrb[0].mxu0
        %2035 = vmatprep.mubr.bf16.mxu0 0
        %2036 = vmatmul.mubr.bf16.gmra.mrb[0].mxu0 %v782
        %v2037 = vpop.f32.mrb[0].mxu0
        %v2038 = vadd.f32 0.0, %v2037
        %v2039 = vpop.f32.mrb[0].mxu0
        %v2040 = vpop.f32.mrb[0].mxu0
        %v2041 = vadd.f32 0.0, %v2040
        %v2042 = vpop.f32.mrb[0].mxu0
        %2043 = vmatprep.mubr.bf16.mxu0 0
        %2044 = vmatmul.mubr.bf16.gmra.mrb[0].mxu0 %v785
        %v2045 = vpop.f32.mrb[0].mxu0
        %v2046 = vadd.f32 0.0, %v2045
        %v2047 = vpop.f32.mrb[0].mxu0
        %v2048 = vpop.f32.mrb[0].mxu0
        %v2049 = vadd.f32 0.0, %v2048
        %v2050 = vpop.f32.mrb[0].mxu0
        %2051 = vmatprep.mubr.bf16.mxu0 0
        %2052 = vmatmul.mubr.bf16.gmra.mrb[0].mxu0 %v788
        %v2053 = vpop.f32.mrb[0].mxu0
        %v2054 = vadd.f32 0.0, %v2053
        %v2055 = vpop.f32.mrb[0].mxu0
        %v2056 = vpop.f32.mrb[0].mxu0
        %v2057 = vadd.f32 0.0, %v2056
        %v2058 = vpop.f32.mrb[0].mxu0
        %2059 = vmatprep.mubr.bf16.mxu0 0
        %2060 = vmatmul.mubr.bf16.gmra.mrb[0].mxu0 %v1902
        %v2061 = vpop.f32.mrb[0].mxu0
        %v2062 = vadd.f32 0.0, %v2061
        %v2063 = vpop.f32.mrb[0].mxu0
        %v2064 = vpop.f32.mrb[0].mxu0
        %v2065 = vadd.f32 0.0, %v2064
        %v2066 = vpop.f32.mrb[0].mxu0
        %2067 = vdwg.mxu0
        %v2068 = vadd.f32 %v1842, %v1942
        %v2069 = vadd.f32 %v1843, %v1945
        %v2070 = vadd.f32 %v1844, %v1950
        %v2071 = vadd.f32 %v1845, %v1953
        %v2072 = vadd.f32 %v1846, %v1958
        %v2073 = vadd.f32 %v1847, %v1961
        %v2074 = vadd.f32 %v1848, %v1966
        %v2075 = vadd.f32 %v1849, %v1969
        %v2076 = vadd.f32 %v1850, %v1974
        %v2077 = vadd.f32 %v1851, %v1977
        %v2078 = vadd.f32 %v1852, %v1982
        %v2079 = vadd.f32 %v1853, %v1985
        %v2080 = vadd.f32 %v1854, %v1990
        %v2081 = vadd.f32 %v1855, %v1993
        %v2082 = vadd.f32 %v1856, %v1998
        %v2083 = vadd.f32 %v1857, %v2001
        %v2084 = vadd.f32 %v1858, %v2006
        %v2085 = vadd.f32 %v1859, %v2009
        %v2086 = vadd.f32 %v1860, %v2014
        %v2087 = vadd.f32 %v1861, %v2017
        %v2088 = vadd.f32 %v1862, %v2022
        %v2089 = vadd.f32 %v1863, %v2025
        %v2090 = vadd.f32 %v1864, %v2030
        %v2091 = vadd.f32 %v1865, %v2033
        %v2092 = vadd.f32 %v1866, %v2038
        %v2093 = vadd.f32 %v1867, %v2041
        %v2094 = vadd.f32 %v1868, %v2046
        %v2095 = vadd.f32 %v1869, %v2049
        %v2096 = vadd.f32 %v1870, %v2054
        %v2097 = vadd.f32 %v1871, %v2057
        %v2098 = vadd.f32 %v1872, %v2062
        %v2099 = vadd.f32 %v1873, %v2065
        %v2101 = vrot.slane %v291, 5
        %v2102 = vrot.slane %v2101, 4
        %v2103 = vrot.slane %v292, 5
        %v2104 = vsel %vm1265, %v2102, %v2103
        %v2105 = vrot.slane %v2103, 4
        %v2106 = vrot.slane %v293, 5
        %v2107 = vsel %vm1265, %v2105, %v2106
        %v2108 = vunpack.c.l.b16 %v2104
        %v2109 = vunpack.c.l.b16 %v2107
        %v2110 = vpack.c.b16 %v2109, %v2108
        %v2112 = vsel %vm741, %v2110, 0
        %v2115 = vsel %vm790, %v302, 0
        %2117 = vmatprep.subr.bf16.mxu0 0
        %2118 = vmatpush1.bf16.msra.mxu0 %v2115
        %2119 = vmatprep.subr.bf16.mxu0 0
        %2120 = vmatpush1.bf16.msra.mxu0 0
        %2121 = vmatprep.subr.bf16.mxu0 0
        %2122 = vmatpush1.bf16.msra.mxu0 0
        %2123 = vmatprep.subr.bf16.mxu0 0
        %2124 = vmatpush1.bf16.msra.mxu0 0
        %2125 = vmatprep.subr.bf16.mxu0 0
        %2126 = vmatpush1.bf16.msra.mxu0 0
        %2127 = vmatprep.subr.bf16.mxu0 0
        %2128 = vmatpush1.bf16.msra.mxu0 0
        %2129 = vmatprep.subr.bf16.mxu0 0
        %2130 = vmatpush1.bf16.msra.mxu0 0
        %2131 = vmatprep.subr.bf16.mxu0 0
        %2132 = vmatpush1.bf16.msra.mxu0 0
        %2133 = vmatprep.subr.bf16.mxu0 0
        %2134 = vmatpush1.bf16.msra.mxu0 0
        %2135 = vmatprep.subr.bf16.mxu0 0
        %2136 = vmatpush1.bf16.msra.mxu0 0
        %2137 = vmatprep.subr.bf16.mxu0 0
        %2138 = vmatpush1.bf16.msra.mxu0 0
        %2139 = vmatprep.subr.bf16.mxu0 0
        %2140 = vmatpush1.bf16.msra.mxu0 0
        %2141 = vmatprep.subr.bf16.mxu0 0
        %2142 = vmatpush1.bf16.msra.mxu0 0
        %2143 = vmatprep.subr.bf16.mxu0 0
        %2144 = vmatpush1.bf16.msra.mxu0 0
        %2145 = vmatprep.subr.bf16.mxu0 0
        %2146 = vmatpush1.bf16.msra.mxu0 0
        %2147 = vmatprep.subr.bf16.mxu0 0
        %2148 = vmatpush1.bf16.msra.mxu0 0
        %2149 = vmatprep.mubr.bf16.mxu0 0
        %2150 = vmatmul.mubr.bf16.gmra.mrb[0].mxu0 %v1430
        %v2151 = vpop.f32.mrb[0].mxu0
        %v2152 = vadd.f32 0.0, %v2151
        %v2153 = vpop.f32.mrb[0].mxu0
        %v2154 = vpop.f32.mrb[0].mxu0
        %v2155 = vadd.f32 0.0, %v2154
        %v2156 = vpop.f32.mrb[0].mxu0
        %2157 = vmatprep.mubr.bf16.mxu0 0
        %2158 = vmatmul.mubr.bf16.gmra.mrb[0].mxu0 %v1433
        %v2159 = vpop.f32.mrb[0].mxu0
        %v2160 = vadd.f32 0.0, %v2159
        %v2161 = vpop.f32.mrb[0].mxu0
        %v2162 = vpop.f32.mrb[0].mxu0
        %v2163 = vadd.f32 0.0, %v2162
        %v2164 = vpop.f32.mrb[0].mxu0
        %2165 = vmatprep.mubr.bf16.mxu0 0
        %2166 = vmatmul.mubr.bf16.gmra.mrb[0].mxu0 %v1436
        %v2167 = vpop.f32.mrb[0].mxu0
        %v2168 = vadd.f32 0.0, %v2167
        %v2169 = vpop.f32.mrb[0].mxu0
        %v2170 = vpop.f32.mrb[0].mxu0
        %v2171 = vadd.f32 0.0, %v2170
        %v2172 = vpop.f32.mrb[0].mxu0
        %2173 = vmatprep.mubr.bf16.mxu0 0
        %2174 = vmatmul.mubr.bf16.gmra.mrb[0].mxu0 %v1439
        %v2175 = vpop.f32.mrb[0].mxu0
        %v2176 = vadd.f32 0.0, %v2175
        %v2177 = vpop.f32.mrb[0].mxu0
        %v2178 = vpop.f32.mrb[0].mxu0
        %v2179 = vadd.f32 0.0, %v2178
        %v2180 = vpop.f32.mrb[0].mxu0
        %2181 = vmatprep.mubr.bf16.mxu0 0
        %2182 = vmatmul.mubr.bf16.gmra.mrb[0].mxu0 %v1442
        %v2183 = vpop.f32.mrb[0].mxu0
        %v2184 = vadd.f32 0.0, %v2183
        %v2185 = vpop.f32.mrb[0].mxu0
        %v2186 = vpop.f32.mrb[0].mxu0
        %v2187 = vadd.f32 0.0, %v2186
        %v2188 = vpop.f32.mrb[0].mxu0
        %2189 = vmatprep.mubr.bf16.mxu0 0
        %2190 = vmatmul.mubr.bf16.gmra.mrb[0].mxu0 %v1445
        %v2191 = vpop.f32.mrb[0].mxu0
        %v2192 = vadd.f32 0.0, %v2191
        %v2193 = vpop.f32.mrb[0].mxu0
        %v2194 = vpop.f32.mrb[0].mxu0
        %v2195 = vadd.f32 0.0, %v2194
        %v2196 = vpop.f32.mrb[0].mxu0
        %2197 = vmatprep.mubr.bf16.mxu0 0
        %2198 = vmatmul.mubr.bf16.gmra.mrb[0].mxu0 %v1448
        %v2199 = vpop.f32.mrb[0].mxu0
        %v2200 = vadd.f32 0.0, %v2199
        %v2201 = vpop.f32.mrb[0].mxu0
        %v2202 = vpop.f32.mrb[0].mxu0
        %v2203 = vadd.f32 0.0, %v2202
        %v2204 = vpop.f32.mrb[0].mxu0
        %2205 = vmatprep.mubr.bf16.mxu0 0
        %2206 = vmatmul.mubr.bf16.gmra.mrb[0].mxu0 %v1451
        %v2207 = vpop.f32.mrb[0].mxu0
        %v2208 = vadd.f32 0.0, %v2207
        %v2209 = vpop.f32.mrb[0].mxu0
        %v2210 = vpop.f32.mrb[0].mxu0
        %v2211 = vadd.f32 0.0, %v2210
        %v2212 = vpop.f32.mrb[0].mxu0
        %2213 = vmatprep.mubr.bf16.mxu0 0
        %2214 = vmatmul.mubr.bf16.gmra.mrb[0].mxu0 %v1454
        %v2215 = vpop.f32.mrb[0].mxu0
        %v2216 = vadd.f32 0.0, %v2215
        %v2217 = vpop.f32.mrb[0].mxu0
        %v2218 = vpop.f32.mrb[0].mxu0
        %v2219 = vadd.f32 0.0, %v2218
        %v2220 = vpop.f32.mrb[0].mxu0
        %2221 = vmatprep.mubr.bf16.mxu0 0
        %2222 = vmatmul.mubr.bf16.gmra.mrb[0].mxu0 %v1457
        %v2223 = vpop.f32.mrb[0].mxu0
        %v2224 = vadd.f32 0.0, %v2223
        %v2225 = vpop.f32.mrb[0].mxu0
        %v2226 = vpop.f32.mrb[0].mxu0
        %v2227 = vadd.f32 0.0, %v2226
        %v2228 = vpop.f32.mrb[0].mxu0
        %2229 = vmatprep.mubr.bf16.mxu0 0
        %2230 = vmatmul.mubr.bf16.gmra.mrb[0].mxu0 %v1460
        %v2231 = vpop.f32.mrb[0].mxu0
        %v2232 = vadd.f32 0.0, %v2231
        %v2233 = vpop.f32.mrb[0].mxu0
        %v2234 = vpop.f32.mrb[0].mxu0
        %v2235 = vadd.f32 0.0, %v2234
        %v2236 = vpop.f32.mrb[0].mxu0
        %2237 = vmatprep.mubr.bf16.mxu0 0
        %2238 = vmatmul.mubr.bf16.gmra.mrb[0].mxu0 %v1463
        %v2239 = vpop.f32.mrb[0].mxu0
        %v2240 = vadd.f32 0.0, %v2239
        %v2241 = vpop.f32.mrb[0].mxu0
        %v2242 = vpop.f32.mrb[0].mxu0
        %v2243 = vadd.f32 0.0, %v2242
        %v2244 = vpop.f32.mrb[0].mxu0
        %2245 = vmatprep.mubr.bf16.mxu0 0
        %2246 = vmatmul.mubr.bf16.gmra.mrb[0].mxu0 %v1466
        %v2247 = vpop.f32.mrb[0].mxu0
        %v2248 = vadd.f32 0.0, %v2247
        %v2249 = vpop.f32.mrb[0].mxu0
        %v2250 = vpop.f32.mrb[0].mxu0
        %v2251 = vadd.f32 0.0, %v2250
        %v2252 = vpop.f32.mrb[0].mxu0
        %2253 = vmatprep.mubr.bf16.mxu0 0
        %2254 = vmatmul.mubr.bf16.gmra.mrb[0].mxu0 %v1469
        %v2255 = vpop.f32.mrb[0].mxu0
        %v2256 = vadd.f32 0.0, %v2255
        %v2257 = vpop.f32.mrb[0].mxu0
        %v2258 = vpop.f32.mrb[0].mxu0
        %v2259 = vadd.f32 0.0, %v2258
        %v2260 = vpop.f32.mrb[0].mxu0
        %2261 = vmatprep.mubr.bf16.mxu0 0
        %2262 = vmatmul.mubr.bf16.gmra.mrb[0].mxu0 %v1472
        %v2263 = vpop.f32.mrb[0].mxu0
        %v2264 = vadd.f32 0.0, %v2263
        %v2265 = vpop.f32.mrb[0].mxu0
        %v2266 = vpop.f32.mrb[0].mxu0
        %v2267 = vadd.f32 0.0, %v2266
        %v2268 = vpop.f32.mrb[0].mxu0
        %2269 = vmatprep.mubr.bf16.mxu0 0
        %2270 = vmatmul.mubr.bf16.gmra.mrb[0].mxu0 %v2112
        %v2271 = vpop.f32.mrb[0].mxu0
        %v2272 = vadd.f32 0.0, %v2271
        %v2273 = vpop.f32.mrb[0].mxu0
        %v2274 = vpop.f32.mrb[0].mxu0
        %v2275 = vadd.f32 0.0, %v2274
        %v2276 = vpop.f32.mrb[0].mxu0
        %2277 = vdwg.mxu0
        %v2278 = vadd.f32 %v2068, %v2152
        %v2279 = vadd.f32 %v2069, %v2155
        %v2280 = vadd.f32 %v2070, %v2160
        %v2281 = vadd.f32 %v2071, %v2163
        %v2282 = vadd.f32 %v2072, %v2168
        %v2283 = vadd.f32 %v2073, %v2171
        %v2284 = vadd.f32 %v2074, %v2176
        %v2285 = vadd.f32 %v2075, %v2179
        %v2286 = vadd.f32 %v2076, %v2184
        %v2287 = vadd.f32 %v2077, %v2187
        %v2288 = vadd.f32 %v2078, %v2192
        %v2289 = vadd.f32 %v2079, %v2195
        %v2290 = vadd.f32 %v2080, %v2200
        %v2291 = vadd.f32 %v2081, %v2203
        %v2292 = vadd.f32 %v2082, %v2208
        %v2293 = vadd.f32 %v2083, %v2211
        %v2294 = vadd.f32 %v2084, %v2216
        %v2295 = vadd.f32 %v2085, %v2219
        %v2296 = vadd.f32 %v2086, %v2224
        %v2297 = vadd.f32 %v2087, %v2227
        %v2298 = vadd.f32 %v2088, %v2232
        %v2299 = vadd.f32 %v2089, %v2235
        %v2300 = vadd.f32 %v2090, %v2240
        %v2301 = vadd.f32 %v2091, %v2243
        %v2302 = vadd.f32 %v2092, %v2248
        %v2303 = vadd.f32 %v2093, %v2251
        %v2304 = vadd.f32 %v2094, %v2256
        %v2305 = vadd.f32 %v2095, %v2259
        %v2306 = vadd.f32 %v2096, %v2264
        %v2307 = vadd.f32 %v2097, %v2267
        %v2308 = vadd.f32 %v2098, %v2272
        %v2309 = vadd.f32 %v2099, %v2275
        %v2312 = vunpack.c.l.b16 %v294
        %v2313 = vunpack.c.l.b16 %v295
        %v2314 = vpack.c.b16 %v2313, %v2312
        %v2316 = vsel %vm741, %v2314, 0
        %v2319 = vsel %vm790, %v303, 0
        %2321 = vmatprep.subr.bf16.mxu0 0
        %2322 = vmatpush1.bf16.msra.mxu0 %v2319
        %2323 = vmatprep.subr.bf16.mxu0 0
        %2324 = vmatpush1.bf16.msra.mxu0 0
        %2325 = vmatprep.subr.bf16.mxu0 0
        %2326 = vmatpush1.bf16.msra.mxu0 0
        %2327 = vmatprep.subr.bf16.mxu0 0
        %2328 = vmatpush1.bf16.msra.mxu0 0
        %2329 = vmatprep.subr.bf16.mxu0 0
        %2330 = vmatpush1.bf16.msra.mxu0 0
        %2331 = vmatprep.subr.bf16.mxu0 0
        %2332 = vmatpush1.bf16.msra.mxu0 0
        %2333 = vmatprep.subr.bf16.mxu0 0
        %2334 = vmatpush1.bf16.msra.mxu0 0
        %2335 = vmatprep.subr.bf16.mxu0 0
        %2336 = vmatpush1.bf16.msra.mxu0 0
        %2337 = vmatprep.subr.bf16.mxu0 0
        %2338 = vmatpush1.bf16.msra.mxu0 0
        %2339 = vmatprep.subr.bf16.mxu0 0
        %2340 = vmatpush1.bf16.msra.mxu0 0
        %2341 = vmatprep.subr.bf16.mxu0 0
        %2342 = vmatpush1.bf16.msra.mxu0 0
        %2343 = vmatprep.subr.bf16.mxu0 0
        %2344 = vmatpush1.bf16.msra.mxu0 0
        %2345 = vmatprep.subr.bf16.mxu0 0
        %2346 = vmatpush1.bf16.msra.mxu0 0
        %2347 = vmatprep.subr.bf16.mxu0 0
        %2348 = vmatpush1.bf16.msra.mxu0 0
        %2349 = vmatprep.subr.bf16.mxu0 0
        %2350 = vmatpush1.bf16.msra.mxu0 0
        %2351 = vmatprep.subr.bf16.mxu0 0
        %2352 = vmatpush1.bf16.msra.mxu0 0
        %2353 = vmatprep.mubr.bf16.mxu0 0
        %2354 = vmatmul.mubr.bf16.gmra.mrb[0].mxu0 %v1042
        %v2355 = vpop.f32.mrb[0].mxu0
        %v2356 = vadd.f32 0.0, %v2355
        %v2357 = vpop.f32.mrb[0].mxu0
        %v2358 = vpop.f32.mrb[0].mxu0
        %v2359 = vadd.f32 0.0, %v2358
        %v2360 = vpop.f32.mrb[0].mxu0
        %2361 = vmatprep.mubr.bf16.mxu0 0
        %2362 = vmatmul.mubr.bf16.gmra.mrb[0].mxu0 %v1045
        %v2363 = vpop.f32.mrb[0].mxu0
        %v2364 = vadd.f32 0.0, %v2363
        %v2365 = vpop.f32.mrb[0].mxu0
        %v2366 = vpop.f32.mrb[0].mxu0
        %v2367 = vadd.f32 0.0, %v2366
        %v2368 = vpop.f32.mrb[0].mxu0
        %2369 = vmatprep.mubr.bf16.mxu0 0
        %2370 = vmatmul.mubr.bf16.gmra.mrb[0].mxu0 %v1048
        %v2371 = vpop.f32.mrb[0].mxu0
        %v2372 = vadd.f32 0.0, %v2371
        %v2373 = vpop.f32.mrb[0].mxu0
        %v2374 = vpop.f32.mrb[0].mxu0
        %v2375 = vadd.f32 0.0, %v2374
        %v2376 = vpop.f32.mrb[0].mxu0
        %2377 = vmatprep.mubr.bf16.mxu0 0
        %2378 = vmatmul.mubr.bf16.gmra.mrb[0].mxu0 %v1051
        %v2379 = vpop.f32.mrb[0].mxu0
        %v2380 = vadd.f32 0.0, %v2379
        %v2381 = vpop.f32.mrb[0].mxu0
        %v2382 = vpop.f32.mrb[0].mxu0
        %v2383 = vadd.f32 0.0, %v2382
        %v2384 = vpop.f32.mrb[0].mxu0
        %2385 = vmatprep.mubr.bf16.mxu0 0
        %2386 = vmatmul.mubr.bf16.gmra.mrb[0].mxu0 %v1054
        %v2387 = vpop.f32.mrb[0].mxu0
        %v2388 = vadd.f32 0.0, %v2387
        %v2389 = vpop.f32.mrb[0].mxu0
        %v2390 = vpop.f32.mrb[0].mxu0
        %v2391 = vadd.f32 0.0, %v2390
        %v2392 = vpop.f32.mrb[0].mxu0
        %2393 = vmatprep.mubr.bf16.mxu0 0
        %2394 = vmatmul.mubr.bf16.gmra.mrb[0].mxu0 %v1057
        %v2395 = vpop.f32.mrb[0].mxu0
        %v2396 = vadd.f32 0.0, %v2395
        %v2397 = vpop.f32.mrb[0].mxu0
        %v2398 = vpop.f32.mrb[0].mxu0
        %v2399 = vadd.f32 0.0, %v2398
        %v2400 = vpop.f32.mrb[0].mxu0
        %2401 = vmatprep.mubr.bf16.mxu0 0
        %2402 = vmatmul.mubr.bf16.gmra.mrb[0].mxu0 %v1060
        %v2403 = vpop.f32.mrb[0].mxu0
        %v2404 = vadd.f32 0.0, %v2403
        %v2405 = vpop.f32.mrb[0].mxu0
        %v2406 = vpop.f32.mrb[0].mxu0
        %v2407 = vadd.f32 0.0, %v2406
        %v2408 = vpop.f32.mrb[0].mxu0
        %2409 = vmatprep.mubr.bf16.mxu0 0
        %2410 = vmatmul.mubr.bf16.gmra.mrb[0].mxu0 %v1063
        %v2411 = vpop.f32.mrb[0].mxu0
        %v2412 = vadd.f32 0.0, %v2411
        %v2413 = vpop.f32.mrb[0].mxu0
        %v2414 = vpop.f32.mrb[0].mxu0
        %v2415 = vadd.f32 0.0, %v2414
        %v2416 = vpop.f32.mrb[0].mxu0
        %2417 = vmatprep.mubr.bf16.mxu0 0
        %2418 = vmatmul.mubr.bf16.gmra.mrb[0].mxu0 %v1066
        %v2419 = vpop.f32.mrb[0].mxu0
        %v2420 = vadd.f32 0.0, %v2419
        %v2421 = vpop.f32.mrb[0].mxu0
        %v2422 = vpop.f32.mrb[0].mxu0
        %v2423 = vadd.f32 0.0, %v2422
        %v2424 = vpop.f32.mrb[0].mxu0
        %2425 = vmatprep.mubr.bf16.mxu0 0
        %2426 = vmatmul.mubr.bf16.gmra.mrb[0].mxu0 %v1069
        %v2427 = vpop.f32.mrb[0].mxu0
        %v2428 = vadd.f32 0.0, %v2427
        %v2429 = vpop.f32.mrb[0].mxu0
        %v2430 = vpop.f32.mrb[0].mxu0
        %v2431 = vadd.f32 0.0, %v2430
        %v2432 = vpop.f32.mrb[0].mxu0
        %2433 = vmatprep.mubr.bf16.mxu0 0
        %2434 = vmatmul.mubr.bf16.gmra.mrb[0].mxu0 %v1072
        %v2435 = vpop.f32.mrb[0].mxu0
        %v2436 = vadd.f32 0.0, %v2435
        %v2437 = vpop.f32.mrb[0].mxu0
        %v2438 = vpop.f32.mrb[0].mxu0
        %v2439 = vadd.f32 0.0, %v2438
        %v2440 = vpop.f32.mrb[0].mxu0
        %2441 = vmatprep.mubr.bf16.mxu0 0
        %2442 = vmatmul.mubr.bf16.gmra.mrb[0].mxu0 %v1075
        %v2443 = vpop.f32.mrb[0].mxu0
        %v2444 = vadd.f32 0.0, %v2443
        %v2445 = vpop.f32.mrb[0].mxu0
        %v2446 = vpop.f32.mrb[0].mxu0
        %v2447 = vadd.f32 0.0, %v2446
        %v2448 = vpop.f32.mrb[0].mxu0
        %2449 = vmatprep.mubr.bf16.mxu0 0
        %2450 = vmatmul.mubr.bf16.gmra.mrb[0].mxu0 %v1078
        %v2451 = vpop.f32.mrb[0].mxu0
        %v2452 = vadd.f32 0.0, %v2451
        %v2453 = vpop.f32.mrb[0].mxu0
        %v2454 = vpop.f32.mrb[0].mxu0
        %v2455 = vadd.f32 0.0, %v2454
        %v2456 = vpop.f32.mrb[0].mxu0
        %2457 = vmatprep.mubr.bf16.mxu0 0
        %2458 = vmatmul.mubr.bf16.gmra.mrb[0].mxu0 %v1081
        %v2459 = vpop.f32.mrb[0].mxu0
        %v2460 = vadd.f32 0.0, %v2459
        %v2461 = vpop.f32.mrb[0].mxu0
        %v2462 = vpop.f32.mrb[0].mxu0
        %v2463 = vadd.f32 0.0, %v2462
        %v2464 = vpop.f32.mrb[0].mxu0
        %2465 = vmatprep.mubr.bf16.mxu0 0
        %2466 = vmatmul.mubr.bf16.gmra.mrb[0].mxu0 %v1676
        %v2467 = vpop.f32.mrb[0].mxu0
        %v2468 = vadd.f32 0.0, %v2467
        %v2469 = vpop.f32.mrb[0].mxu0
        %v2470 = vpop.f32.mrb[0].mxu0
        %v2471 = vadd.f32 0.0, %v2470
        %v2472 = vpop.f32.mrb[0].mxu0
        %2473 = vmatprep.mubr.bf16.mxu0 0
        %2474 = vmatmul.mubr.bf16.gmra.mrb[0].mxu0 %v2316
        %v2475 = vpop.f32.mrb[0].mxu0
        %v2476 = vadd.f32 0.0, %v2475
        %v2477 = vpop.f32.mrb[0].mxu0
        %v2478 = vpop.f32.mrb[0].mxu0
        %v2479 = vadd.f32 0.0, %v2478
        %v2480 = vpop.f32.mrb[0].mxu0
        %2481 = vdwg.mxu0
        %v2482 = vadd.f32 %v2278, %v2356
        %v2483 = vadd.f32 %v2279, %v2359
        %v2484 = vadd.f32 %v2280, %v2364
        %v2485 = vadd.f32 %v2281, %v2367
        %v2486 = vadd.f32 %v2282, %v2372
        %v2487 = vadd.f32 %v2283, %v2375
        %v2488 = vadd.f32 %v2284, %v2380
        %v2489 = vadd.f32 %v2285, %v2383
        %v2490 = vadd.f32 %v2286, %v2388
        %v2491 = vadd.f32 %v2287, %v2391
        %v2492 = vadd.f32 %v2288, %v2396
        %v2493 = vadd.f32 %v2289, %v2399
        %v2494 = vadd.f32 %v2290, %v2404
        %v2495 = vadd.f32 %v2291, %v2407
        %v2496 = vadd.f32 %v2292, %v2412
        %v2497 = vadd.f32 %v2293, %v2415
        %v2498 = vadd.f32 %v2294, %v2420
        %v2499 = vadd.f32 %v2295, %v2423
        %v2500 = vadd.f32 %v2296, %v2428
        %v2501 = vadd.f32 %v2297, %v2431
        %v2502 = vadd.f32 %v2298, %v2436
        %v2503 = vadd.f32 %v2299, %v2439
        %v2504 = vadd.f32 %v2300, %v2444
        %v2505 = vadd.f32 %v2301, %v2447
        %v2506 = vadd.f32 %v2302, %v2452
        %v2507 = vadd.f32 %v2303, %v2455
        %v2508 = vadd.f32 %v2304, %v2460
        %v2509 = vadd.f32 %v2305, %v2463
        %v2510 = vadd.f32 %v2306, %v2468
        %v2511 = vadd.f32 %v2307, %v2471
        %v2512 = vadd.f32 %v2308, %v2476
        %v2513 = vadd.f32 %v2309, %v2479
        %v2515 = vshrl.u32 %v294, 16
        %v2517 = vrot.slane %v2515, 4
        %v2518 = vshll.u32 %v294, 16
        %v2520 = vrot.slane %v2518, 5
        %v2521 = vor.u32 %v2517, %v2520
        %v2522 = vrot.slane %v2521, 4
        %v2524 = vshll.u32 %v295, 16
        %v2526 = vrot.slane %v2524, 5
        %v2527 = vsel %vm308, %v2522, %v2526
        %v2528 = vshrl.u32 %v295, 16
        %v2530 = vrot.slane %v2528, 4
        %v2531 = vor.u32 %v2530, %v2526
        %v2532 = vrot.slane %v2531, 4
        %v2534 = vshll.u32 %v296, 16
        %v2536 = vrot.slane %v2534, 5
        %v2537 = vsel %vm308, %v2532, %v2536
        %v2538 = vunpack.c.l.b16 %v2527
        %v2539 = vunpack.c.l.b16 %v2537
        %v2540 = vpack.c.b16 %v2539, %v2538
        %v2542 = vsel %vm741, %v2540, 0
        %v2545 = vsel %vm790, %v304, 0
        %2547 = vmatprep.subr.bf16.mxu0 0
        %2548 = vmatpush1.bf16.msra.mxu0 %v2545
        %2549 = vmatprep.subr.bf16.mxu0 0
        %2550 = vmatpush1.bf16.msra.mxu0 0
        %2551 = vmatprep.subr.bf16.mxu0 0
        %2552 = vmatpush1.bf16.msra.mxu0 0
        %2553 = vmatprep.subr.bf16.mxu0 0
        %2554 = vmatpush1.bf16.msra.mxu0 0
        %2555 = vmatprep.subr.bf16.mxu0 0
        %2556 = vmatpush1.bf16.msra.mxu0 0
        %2557 = vmatprep.subr.bf16.mxu0 0
        %2558 = vmatpush1.bf16.msra.mxu0 0
        %2559 = vmatprep.subr.bf16.mxu0 0
        %2560 = vmatpush1.bf16.msra.mxu0 0
        %2561 = vmatprep.subr.bf16.mxu0 0
        %2562 = vmatpush1.bf16.msra.mxu0 0
        %2563 = vmatprep.subr.bf16.mxu0 0
        %2564 = vmatpush1.bf16.msra.mxu0 0
        %2565 = vmatprep.subr.bf16.mxu0 0
        %2566 = vmatpush1.bf16.msra.mxu0 0
        %2567 = vmatprep.subr.bf16.mxu0 0
        %2568 = vmatpush1.bf16.msra.mxu0 0
        %2569 = vmatprep.subr.bf16.mxu0 0
        %2570 = vmatpush1.bf16.msra.mxu0 0
        %2571 = vmatprep.subr.bf16.mxu0 0
        %2572 = vmatpush1.bf16.msra.mxu0 0
        %2573 = vmatprep.subr.bf16.mxu0 0
        %2574 = vmatpush1.bf16.msra.mxu0 0
        %2575 = vmatprep.subr.bf16.mxu0 0
        %2576 = vmatpush1.bf16.msra.mxu0 0
        %2577 = vmatprep.subr.bf16.mxu0 0
        %2578 = vmatpush1.bf16.msra.mxu0 0
        %2579 = vmatprep.mubr.bf16.mxu0 0
        %2580 = vmatmul.mubr.bf16.gmra.mrb[0].mxu0 %v749
        %v2581 = vpop.f32.mrb[0].mxu0
        %v2582 = vadd.f32 0.0, %v2581
        %v2583 = vpop.f32.mrb[0].mxu0
        %v2584 = vpop.f32.mrb[0].mxu0
        %v2585 = vadd.f32 0.0, %v2584
        %v2586 = vpop.f32.mrb[0].mxu0
        %2587 = vmatprep.mubr.bf16.mxu0 0
        %2588 = vmatmul.mubr.bf16.gmra.mrb[0].mxu0 %v752
        %v2589 = vpop.f32.mrb[0].mxu0
        %v2590 = vadd.f32 0.0, %v2589
        %v2591 = vpop.f32.mrb[0].mxu0
        %v2592 = vpop.f32.mrb[0].mxu0
        %v2593 = vadd.f32 0.0, %v2592
        %v2594 = vpop.f32.mrb[0].mxu0
        %2595 = vmatprep.mubr.bf16.mxu0 0
        %2596 = vmatmul.mubr.bf16.gmra.mrb[0].mxu0 %v755
        %v2597 = vpop.f32.mrb[0].mxu0
        %v2598 = vadd.f32 0.0, %v2597
        %v2599 = vpop.f32.mrb[0].mxu0
        %v2600 = vpop.f32.mrb[0].mxu0
        %v2601 = vadd.f32 0.0, %v2600
        %v2602 = vpop.f32.mrb[0].mxu0
        %2603 = vmatprep.mubr.bf16.mxu0 0
        %2604 = vmatmul.mubr.bf16.gmra.mrb[0].mxu0 %v758
        %v2605 = vpop.f32.mrb[0].mxu0
        %v2606 = vadd.f32 0.0, %v2605
        %v2607 = vpop.f32.mrb[0].mxu0
        %v2608 = vpop.f32.mrb[0].mxu0
        %v2609 = vadd.f32 0.0, %v2608
        %v2610 = vpop.f32.mrb[0].mxu0
        %2611 = vmatprep.mubr.bf16.mxu0 0
        %2612 = vmatmul.mubr.bf16.gmra.mrb[0].mxu0 %v761
        %v2613 = vpop.f32.mrb[0].mxu0
        %v2614 = vadd.f32 0.0, %v2613
        %v2615 = vpop.f32.mrb[0].mxu0
        %v2616 = vpop.f32.mrb[0].mxu0
        %v2617 = vadd.f32 0.0, %v2616
        %v2618 = vpop.f32.mrb[0].mxu0
        %2619 = vmatprep.mubr.bf16.mxu0 0
        %2620 = vmatmul.mubr.bf16.gmra.mrb[0].mxu0 %v764
        %v2621 = vpop.f32.mrb[0].mxu0
        %v2622 = vadd.f32 0.0, %v2621
        %v2623 = vpop.f32.mrb[0].mxu0
        %v2624 = vpop.f32.mrb[0].mxu0
        %v2625 = vadd.f32 0.0, %v2624
        %v2626 = vpop.f32.mrb[0].mxu0
        %2627 = vmatprep.mubr.bf16.mxu0 0
        %2628 = vmatmul.mubr.bf16.gmra.mrb[0].mxu0 %v767
        %v2629 = vpop.f32.mrb[0].mxu0
        %v2630 = vadd.f32 0.0, %v2629
        %v2631 = vpop.f32.mrb[0].mxu0
        %v2632 = vpop.f32.mrb[0].mxu0
        %v2633 = vadd.f32 0.0, %v2632
        %v2634 = vpop.f32.mrb[0].mxu0
        %2635 = vmatprep.mubr.bf16.mxu0 0
        %2636 = vmatmul.mubr.bf16.gmra.mrb[0].mxu0 %v770
        %v2637 = vpop.f32.mrb[0].mxu0
        %v2638 = vadd.f32 0.0, %v2637
        %v2639 = vpop.f32.mrb[0].mxu0
        %v2640 = vpop.f32.mrb[0].mxu0
        %v2641 = vadd.f32 0.0, %v2640
        %v2642 = vpop.f32.mrb[0].mxu0
        %2643 = vmatprep.mubr.bf16.mxu0 0
        %2644 = vmatmul.mubr.bf16.gmra.mrb[0].mxu0 %v773
        %v2645 = vpop.f32.mrb[0].mxu0
        %v2646 = vadd.f32 0.0, %v2645
        %v2647 = vpop.f32.mrb[0].mxu0
        %v2648 = vpop.f32.mrb[0].mxu0
        %v2649 = vadd.f32 0.0, %v2648
        %v2650 = vpop.f32.mrb[0].mxu0
        %2651 = vmatprep.mubr.bf16.mxu0 0
        %2652 = vmatmul.mubr.bf16.gmra.mrb[0].mxu0 %v776
        %v2653 = vpop.f32.mrb[0].mxu0
        %v2654 = vadd.f32 0.0, %v2653
        %v2655 = vpop.f32.mrb[0].mxu0
        %v2656 = vpop.f32.mrb[0].mxu0
        %v2657 = vadd.f32 0.0, %v2656
        %v2658 = vpop.f32.mrb[0].mxu0
        %2659 = vmatprep.mubr.bf16.mxu0 0
        %2660 = vmatmul.mubr.bf16.gmra.mrb[0].mxu0 %v779
        %v2661 = vpop.f32.mrb[0].mxu0
        %v2662 = vadd.f32 0.0, %v2661
        %v2663 = vpop.f32.mrb[0].mxu0
        %v2664 = vpop.f32.mrb[0].mxu0
        %v2665 = vadd.f32 0.0, %v2664
        %v2666 = vpop.f32.mrb[0].mxu0
        %2667 = vmatprep.mubr.bf16.mxu0 0
        %2668 = vmatmul.mubr.bf16.gmra.mrb[0].mxu0 %v782
        %v2669 = vpop.f32.mrb[0].mxu0
        %v2670 = vadd.f32 0.0, %v2669
        %v2671 = vpop.f32.mrb[0].mxu0
        %v2672 = vpop.f32.mrb[0].mxu0
        %v2673 = vadd.f32 0.0, %v2672
        %v2674 = vpop.f32.mrb[0].mxu0
        %2675 = vmatprep.mubr.bf16.mxu0 0
        %2676 = vmatmul.mubr.bf16.gmra.mrb[0].mxu0 %v785
        %v2677 = vpop.f32.mrb[0].mxu0
        %v2678 = vadd.f32 0.0, %v2677
        %v2679 = vpop.f32.mrb[0].mxu0
        %v2680 = vpop.f32.mrb[0].mxu0
        %v2681 = vadd.f32 0.0, %v2680
        %v2682 = vpop.f32.mrb[0].mxu0
        %2683 = vmatprep.mubr.bf16.mxu0 0
        %2684 = vmatmul.mubr.bf16.gmra.mrb[0].mxu0 %v788
        %v2685 = vpop.f32.mrb[0].mxu0
        %v2686 = vadd.f32 0.0, %v2685
        %v2687 = vpop.f32.mrb[0].mxu0
        %v2688 = vpop.f32.mrb[0].mxu0
        %v2689 = vadd.f32 0.0, %v2688
        %v2690 = vpop.f32.mrb[0].mxu0
        %2691 = vmatprep.mubr.bf16.mxu0 0
        %2692 = vmatmul.mubr.bf16.gmra.mrb[0].mxu0 %v1902
        %v2693 = vpop.f32.mrb[0].mxu0
        %v2694 = vadd.f32 0.0, %v2693
        %v2695 = vpop.f32.mrb[0].mxu0
        %v2696 = vpop.f32.mrb[0].mxu0
        %v2697 = vadd.f32 0.0, %v2696
        %v2698 = vpop.f32.mrb[0].mxu0
        %2699 = vmatprep.mubr.bf16.mxu0 0
        %2700 = vmatmul.mubr.bf16.gmra.mrb[0].mxu0 %v2542
        %v2701 = vpop.f32.mrb[0].mxu0
        %v2702 = vadd.f32 0.0, %v2701
        %v2703 = vpop.f32.mrb[0].mxu0
        %v2704 = vpop.f32.mrb[0].mxu0
        %v2705 = vadd.f32 0.0, %v2704
        %v2706 = vpop.f32.mrb[0].mxu0
        %2707 = vdwg.mxu0
        %v2708 = vadd.f32 %v2482, %v2582
        %v2709 = vadd.f32 %v2483, %v2585
        %v2710 = vadd.f32 %v2484, %v2590
        %v2711 = vadd.f32 %v2485, %v2593
        %v2712 = vadd.f32 %v2486, %v2598
        %v2713 = vadd.f32 %v2487, %v2601
        %v2714 = vadd.f32 %v2488, %v2606
        %v2715 = vadd.f32 %v2489, %v2609
        %v2716 = vadd.f32 %v2490, %v2614
        %v2717 = vadd.f32 %v2491, %v2617
        %v2718 = vadd.f32 %v2492, %v2622
        %v2719 = vadd.f32 %v2493, %v2625
        %v2720 = vadd.f32 %v2494, %v2630
        %v2721 = vadd.f32 %v2495, %v2633
        %v2722 = vadd.f32 %v2496, %v2638
        %v2723 = vadd.f32 %v2497, %v2641
        %v2724 = vadd.f32 %v2498, %v2646
        %v2725 = vadd.f32 %v2499, %v2649
        %v2726 = vadd.f32 %v2500, %v2654
        %v2727 = vadd.f32 %v2501, %v2657
        %v2728 = vadd.f32 %v2502, %v2662
        %v2729 = vadd.f32 %v2503, %v2665
        %v2730 = vadd.f32 %v2504, %v2670
        %v2731 = vadd.f32 %v2505, %v2673
        %v2732 = vadd.f32 %v2506, %v2678
        %v2733 = vadd.f32 %v2507, %v2681
        %v2734 = vadd.f32 %v2508, %v2686
        %v2735 = vadd.f32 %v2509, %v2689
        %v2736 = vadd.f32 %v2510, %v2694
        %v2737 = vadd.f32 %v2511, %v2697
        %v2738 = vadd.f32 %v2512, %v2702
        %v2739 = vadd.f32 %v2513, %v2705
        %v2741 = vrot.slane %v294, 5
        %v2742 = vrot.slane %v2741, 4
        %v2743 = vrot.slane %v295, 5
        %v2744 = vsel %vm1265, %v2742, %v2743
        %v2745 = vrot.slane %v2743, 4
        %v2746 = vrot.slane %v296, 5
        %v2747 = vsel %vm1265, %v2745, %v2746
        %v2748 = vunpack.c.l.b16 %v2744
        %v2749 = vunpack.c.l.b16 %v2747
        %v2750 = vpack.c.b16 %v2749, %v2748
        %v2752 = vsel %vm741, %v2750, 0
        %v2755 = vsel %vm790, %v305, 0
        %2757 = vmatprep.subr.bf16.mxu0 0
        %2758 = vmatpush1.bf16.msra.mxu0 %v2755
        %2759 = vmatprep.subr.bf16.mxu0 0
        %2760 = vmatpush1.bf16.msra.mxu0 0
        %2761 = vmatprep.subr.bf16.mxu0 0
        %2762 = vmatpush1.bf16.msra.mxu0 0
        %2763 = vmatprep.subr.bf16.mxu0 0
        %2764 = vmatpush1.bf16.msra.mxu0 0
        %2765 = vmatprep.subr.bf16.mxu0 0
        %2766 = vmatpush1.bf16.msra.mxu0 0
        %2767 = vmatprep.subr.bf16.mxu0 0
        %2768 = vmatpush1.bf16.msra.mxu0 0
        %2769 = vmatprep.subr.bf16.mxu0 0
        %2770 = vmatpush1.bf16.msra.mxu0 0
        %2771 = vmatprep.subr.bf16.mxu0 0
        %2772 = vmatpush1.bf16.msra.mxu0 0
        %2773 = vmatprep.subr.bf16.mxu0 0
        %2774 = vmatpush1.bf16.msra.mxu0 0
        %2775 = vmatprep.subr.bf16.mxu0 0
        %2776 = vmatpush1.bf16.msra.mxu0 0
        %2777 = vmatprep.subr.bf16.mxu0 0
        %2778 = vmatpush1.bf16.msra.mxu0 0
        %2779 = vmatprep.subr.bf16.mxu0 0
        %2780 = vmatpush1.bf16.msra.mxu0 0
        %2781 = vmatprep.subr.bf16.mxu0 0
        %2782 = vmatpush1.bf16.msra.mxu0 0
        %2783 = vmatprep.subr.bf16.mxu0 0
        %2784 = vmatpush1.bf16.msra.mxu0 0
        %2785 = vmatprep.subr.bf16.mxu0 0
        %2786 = vmatpush1.bf16.msra.mxu0 0
        %2787 = vmatprep.subr.bf16.mxu0 0
        %2788 = vmatpush1.bf16.msra.mxu0 0
        %2789 = vmatprep.mubr.bf16.mxu0 0
        %2790 = vmatmul.mubr.bf16.gmra.mrb[0].mxu0 %v1433
        %v2791 = vpop.f32.mrb[0].mxu0
        %v2792 = vadd.f32 0.0, %v2791
        %v2793 = vpop.f32.mrb[0].mxu0
        %v2794 = vpop.f32.mrb[0].mxu0
        %v2795 = vadd.f32 0.0, %v2794
        %v2796 = vpop.f32.mrb[0].mxu0
        %2797 = vmatprep.mubr.bf16.mxu0 0
        %2798 = vmatmul.mubr.bf16.gmra.mrb[0].mxu0 %v1436
        %v2799 = vpop.f32.mrb[0].mxu0
        %v2800 = vadd.f32 0.0, %v2799
        %v2801 = vpop.f32.mrb[0].mxu0
        %v2802 = vpop.f32.mrb[0].mxu0
        %v2803 = vadd.f32 0.0, %v2802
        %v2804 = vpop.f32.mrb[0].mxu0
        %2805 = vmatprep.mubr.bf16.mxu0 0
        %2806 = vmatmul.mubr.bf16.gmra.mrb[0].mxu0 %v1439
        %v2807 = vpop.f32.mrb[0].mxu0
        %v2808 = vadd.f32 0.0, %v2807
        %v2809 = vpop.f32.mrb[0].mxu0
        %v2810 = vpop.f32.mrb[0].mxu0
        %v2811 = vadd.f32 0.0, %v2810
        %v2812 = vpop.f32.mrb[0].mxu0
        %2813 = vmatprep.mubr.bf16.mxu0 0
        %2814 = vmatmul.mubr.bf16.gmra.mrb[0].mxu0 %v1442
        %v2815 = vpop.f32.mrb[0].mxu0
        %v2816 = vadd.f32 0.0, %v2815
        %v2817 = vpop.f32.mrb[0].mxu0
        %v2818 = vpop.f32.mrb[0].mxu0
        %v2819 = vadd.f32 0.0, %v2818
        %v2820 = vpop.f32.mrb[0].mxu0
        %2821 = vmatprep.mubr.bf16.mxu0 0
        %2822 = vmatmul.mubr.bf16.gmra.mrb[0].mxu0 %v1445
        %v2823 = vpop.f32.mrb[0].mxu0
        %v2824 = vadd.f32 0.0, %v2823
        %v2825 = vpop.f32.mrb[0].mxu0
        %v2826 = vpop.f32.mrb[0].mxu0
        %v2827 = vadd.f32 0.0, %v2826
        %v2828 = vpop.f32.mrb[0].mxu0
        %2829 = vmatprep.mubr.bf16.mxu0 0
        %2830 = vmatmul.mubr.bf16.gmra.mrb[0].mxu0 %v1448
        %v2831 = vpop.f32.mrb[0].mxu0
        %v2832 = vadd.f32 0.0, %v2831
        %v2833 = vpop.f32.mrb[0].mxu0
        %v2834 = vpop.f32.mrb[0].mxu0
        %v2835 = vadd.f32 0.0, %v2834
        %v2836 = vpop.f32.mrb[0].mxu0
        %2837 = vmatprep.mubr.bf16.mxu0 0
        %2838 = vmatmul.mubr.bf16.gmra.mrb[0].mxu0 %v1451
        %v2839 = vpop.f32.mrb[0].mxu0
        %v2840 = vadd.f32 0.0, %v2839
        %v2841 = vpop.f32.mrb[0].mxu0
        %v2842 = vpop.f32.mrb[0].mxu0
        %v2843 = vadd.f32 0.0, %v2842
        %v2844 = vpop.f32.mrb[0].mxu0
        %2845 = vmatprep.mubr.bf16.mxu0 0
        %2846 = vmatmul.mubr.bf16.gmra.mrb[0].mxu0 %v1454
        %v2847 = vpop.f32.mrb[0].mxu0
        %v2848 = vadd.f32 0.0, %v2847
        %v2849 = vpop.f32.mrb[0].mxu0
        %v2850 = vpop.f32.mrb[0].mxu0
        %v2851 = vadd.f32 0.0, %v2850
        %v2852 = vpop.f32.mrb[0].mxu0
        %2853 = vmatprep.mubr.bf16.mxu0 0
        %2854 = vmatmul.mubr.bf16.gmra.mrb[0].mxu0 %v1457
        %v2855 = vpop.f32.mrb[0].mxu0
        %v2856 = vadd.f32 0.0, %v2855
        %v2857 = vpop.f32.mrb[0].mxu0
        %v2858 = vpop.f32.mrb[0].mxu0
        %v2859 = vadd.f32 0.0, %v2858
        %v2860 = vpop.f32.mrb[0].mxu0
        %2861 = vmatprep.mubr.bf16.mxu0 0
        %2862 = vmatmul.mubr.bf16.gmra.mrb[0].mxu0 %v1460
        %v2863 = vpop.f32.mrb[0].mxu0
        %v2864 = vadd.f32 0.0, %v2863
        %v2865 = vpop.f32.mrb[0].mxu0
        %v2866 = vpop.f32.mrb[0].mxu0
        %v2867 = vadd.f32 0.0, %v2866
        %v2868 = vpop.f32.mrb[0].mxu0
        %2869 = vmatprep.mubr.bf16.mxu0 0
        %2870 = vmatmul.mubr.bf16.gmra.mrb[0].mxu0 %v1463
        %v2871 = vpop.f32.mrb[0].mxu0
        %v2872 = vadd.f32 0.0, %v2871
        %v2873 = vpop.f32.mrb[0].mxu0
        %v2874 = vpop.f32.mrb[0].mxu0
        %v2875 = vadd.f32 0.0, %v2874
        %v2876 = vpop.f32.mrb[0].mxu0
        %2877 = vmatprep.mubr.bf16.mxu0 0
        %2878 = vmatmul.mubr.bf16.gmra.mrb[0].mxu0 %v1466
        %v2879 = vpop.f32.mrb[0].mxu0
        %v2880 = vadd.f32 0.0, %v2879
        %v2881 = vpop.f32.mrb[0].mxu0
        %v2882 = vpop.f32.mrb[0].mxu0
        %v2883 = vadd.f32 0.0, %v2882
        %v2884 = vpop.f32.mrb[0].mxu0
        %2885 = vmatprep.mubr.bf16.mxu0 0
        %2886 = vmatmul.mubr.bf16.gmra.mrb[0].mxu0 %v1469
        %v2887 = vpop.f32.mrb[0].mxu0
        %v2888 = vadd.f32 0.0, %v2887
        %v2889 = vpop.f32.mrb[0].mxu0
        %v2890 = vpop.f32.mrb[0].mxu0
        %v2891 = vadd.f32 0.0, %v2890
        %v2892 = vpop.f32.mrb[0].mxu0
        %2893 = vmatprep.mubr.bf16.mxu0 0
        %2894 = vmatmul.mubr.bf16.gmra.mrb[0].mxu0 %v1472
        %v2895 = vpop.f32.mrb[0].mxu0
        %v2896 = vadd.f32 0.0, %v2895
        %v2897 = vpop.f32.mrb[0].mxu0
        %v2898 = vpop.f32.mrb[0].mxu0
        %v2899 = vadd.f32 0.0, %v2898
        %v2900 = vpop.f32.mrb[0].mxu0
        %2901 = vmatprep.mubr.bf16.mxu0 0
        %2902 = vmatmul.mubr.bf16.gmra.mrb[0].mxu0 %v2112
        %v2903 = vpop.f32.mrb[0].mxu0
        %v2904 = vadd.f32 0.0, %v2903
        %v2905 = vpop.f32.mrb[0].mxu0
        %v2906 = vpop.f32.mrb[0].mxu0
        %v2907 = vadd.f32 0.0, %v2906
        %v2908 = vpop.f32.mrb[0].mxu0
        %2909 = vmatprep.mubr.bf16.mxu0 0
        %2910 = vmatmul.mubr.bf16.gmra.mrb[0].mxu0 %v2752
        %v2911 = vpop.f32.mrb[0].mxu0
        %v2912 = vadd.f32 0.0, %v2911
        %v2913 = vpop.f32.mrb[0].mxu0
        %v2914 = vpop.f32.mrb[0].mxu0
        %v2915 = vadd.f32 0.0, %v2914
        %v2916 = vpop.f32.mrb[0].mxu0
        %2917 = vdwg.mxu0
        %v2918 = vadd.f32 %v2708, %v2792
        %v2919 = vadd.f32 %v2709, %v2795
        %v2920 = vadd.f32 %v2710, %v2800
        %v2921 = vadd.f32 %v2711, %v2803
        %v2922 = vadd.f32 %v2712, %v2808
        %v2923 = vadd.f32 %v2713, %v2811
        %v2924 = vadd.f32 %v2714, %v2816
        %v2925 = vadd.f32 %v2715, %v2819
        %v2926 = vadd.f32 %v2716, %v2824
        %v2927 = vadd.f32 %v2717, %v2827
        %v2928 = vadd.f32 %v2718, %v2832
        %v2929 = vadd.f32 %v2719, %v2835
        %v2930 = vadd.f32 %v2720, %v2840
        %v2931 = vadd.f32 %v2721, %v2843
        %v2932 = vadd.f32 %v2722, %v2848
        %v2933 = vadd.f32 %v2723, %v2851
        %v2934 = vadd.f32 %v2724, %v2856
        %v2935 = vadd.f32 %v2725, %v2859
        %v2936 = vadd.f32 %v2726, %v2864
        %v2937 = vadd.f32 %v2727, %v2867
        %v2938 = vadd.f32 %v2728, %v2872
        %v2939 = vadd.f32 %v2729, %v2875
        %v2940 = vadd.f32 %v2730, %v2880
        %v2941 = vadd.f32 %v2731, %v2883
        %v2942 = vadd.f32 %v2732, %v2888
        %v2943 = vadd.f32 %v2733, %v2891
        %v2944 = vadd.f32 %v2734, %v2896
        %v2945 = vadd.f32 %v2735, %v2899
        %v2946 = vadd.f32 %v2736, %v2904
        %v2947 = vadd.f32 %v2737, %v2907
        %v2948 = vadd.f32 %v2738, %v2912
        %v2949 = vadd.f32 %v2739, %v2915
        %v2950 = vld [vmem:[%s2] sm:$0x1]
        %v2952 = vlaneseq
        %v2953 = vshrl.u32 %v2952, 7
        %v2954 = vsub.s32 0, %v2953
        %v2955 = vrot.slane %v2950, %v2954
        %v2957 = vadd.f32 %v2918, %v2955
        %v2958 = vadd.f32 %v2919, %v2955
        %v2959 = vadd.f32 %v2920, %v2955
        %v2960 = vadd.f32 %v2921, %v2955
        %v2961 = vadd.f32 %v2922, %v2955
        %v2962 = vadd.f32 %v2923, %v2955
        %v2963 = vadd.f32 %v2924, %v2955
        %v2964 = vadd.f32 %v2925, %v2955
        %v2965 = vadd.f32 %v2926, %v2955
        %v2966 = vadd.f32 %v2927, %v2955
        %v2967 = vadd.f32 %v2928, %v2955
        %v2968 = vadd.f32 %v2929, %v2955
        %v2969 = vadd.f32 %v2930, %v2955
        %v2970 = vadd.f32 %v2931, %v2955
        %v2971 = vadd.f32 %v2932, %v2955
        %v2972 = vadd.f32 %v2933, %v2955
        %v2973 = vadd.f32 %v2934, %v2955
        %v2974 = vadd.f32 %v2935, %v2955
        %v2975 = vadd.f32 %v2936, %v2955
        %v2976 = vadd.f32 %v2937, %v2955
        %v2977 = vadd.f32 %v2938, %v2955
        %v2978 = vadd.f32 %v2939, %v2955
        %v2979 = vadd.f32 %v2940, %v2955
        %v2980 = vadd.f32 %v2941, %v2955
        %v2981 = vadd.f32 %v2942, %v2955
        %v2982 = vadd.f32 %v2943, %v2955
        %v2983 = vadd.f32 %v2944, %v2955
        %v2984 = vadd.f32 %v2945, %v2955
        %v2985 = vadd.f32 %v2946, %v2955
        %v2986 = vadd.f32 %v2947, %v2955
        %v2987 = vadd.f32 %v2948, %v2955
        %v2988 = vadd.f32 %v2949, %v2955
        %2989 = vst [vmem:[%s221] sm:$0xff] %v2957
        %2990 = vst [vmem:[%s221 + $0x8] sm:$0xff] %v2958
        %2991 = vst [vmem:[%s221 + $0x10] sm:$0xff] %v2959
        %2992 = vst [vmem:[%s221 + $0x18] sm:$0xff] %v2960
        %2993 = vst [vmem:[%s221 + $0x20] sm:$0xff] %v2961
        %2994 = vst [vmem:[%s221 + $0x28] sm:$0xff] %v2962
        %2995 = vst [vmem:[%s221 + $0x30] sm:$0xff] %v2963
        %2996 = vst [vmem:[%s221 + $0x38] sm:$0xff] %v2964
        %2997 = vst [vmem:[%s221 + $0x40] sm:$0xff] %v2965
        %2998 = vst [vmem:[%s221 + $0x48] sm:$0xff] %v2966
        %2999 = vst [vmem:[%s221 + $0x50] sm:$0xff] %v2967
        %3000 = vst [vmem:[%s221 + $0x58] sm:$0xff] %v2968
        %3001 = vst [vmem:[%s221 + $0x60] sm:$0xff] %v2969
        %3002 = vst [vmem:[%s221 + $0x68] sm:$0xff] %v2970
        %3003 = vst [vmem:[%s221 + $0x70] sm:$0xff] %v2971
        %3004 = vst [vmem:[%s221 + $0x78] sm:$0xff] %v2972
        %3005 = vst [vmem:[%s221 + $0x80] sm:$0xff] %v2973
        %3006 = vst [vmem:[%s221 + $0x88] sm:$0xff] %v2974
        %3007 = vst [vmem:[%s221 + $0x90] sm:$0xff] %v2975
        %3008 = vst [vmem:[%s221 + $0x98] sm:$0xff] %v2976
        %3009 = vst [vmem:[%s221 + $0xa0] sm:$0xff] %v2977
        %3010 = vst [vmem:[%s221 + $0xa8] sm:$0xff] %v2978
        %3011 = vst [vmem:[%s221 + $0xb0] sm:$0xff] %v2979
        %3012 = vst [vmem:[%s221 + $0xb8] sm:$0xff] %v2980
        %3013 = vst [vmem:[%s221 + $0xc0] sm:$0xff] %v2981
        %3014 = vst [vmem:[%s221 + $0xc8] sm:$0xff] %v2982
        %3015 = vst [vmem:[%s221 + $0xd0] sm:$0xff] %v2983
        %3016 = vst [vmem:[%s221 + $0xd8] sm:$0xff] %v2984
        %3017 = vst [vmem:[%s221 + $0xe0] sm:$0xff] %v2985
        %3018 = vst [vmem:[%s221 + $0xe8] sm:$0xff] %v2986
        %3019 = vst [vmem:[%s221 + $0xf0] sm:$0xff] %v2987
        %3020 = vst [vmem:[%s221 + $0xf8] sm:$0xff] %v2988
        %v3021 = vadd.f32 %v2957, %v2958
        %v3022 = vadd.f32 %v3021, %v2959
        %v3023 = vadd.f32 %v3022, %v2960
        %v3024 = vadd.f32 %v3023, %v2961
        %v3025 = vadd.f32 %v3024, %v2962
        %v3026 = vadd.f32 %v3025, %v2963
        %v3027 = vadd.f32 %v3026, %v2964
        %v3028 = vadd.f32 %v3027, %v2965
        %v3029 = vadd.f32 %v3028, %v2966
        %v3030 = vadd.f32 %v3029, %v2967
        %v3031 = vadd.f32 %v3030, %v2968
        %v3032 = vadd.f32 %v3031, %v2969
        %v3033 = vadd.f32 %v3032, %v2970
        %v3034 = vadd.f32 %v3033, %v2971
        %v3035 = vadd.f32 %v3034, %v2972
        %v3036 = vadd.f32 %v3035, %v2973
        %v3037 = vadd.f32 %v3036, %v2974
        %v3038 = vadd.f32 %v3037, %v2975
        %v3039 = vadd.f32 %v3038, %v2976
        %v3040 = vadd.f32 %v3039, %v2977
        %v3041 = vadd.f32 %v3040, %v2978
        %v3042 = vadd.f32 %v3041, %v2979
        %v3043 = vadd.f32 %v3042, %v2980
        %v3044 = vadd.f32 %v3043, %v2981
        %v3045 = vadd.f32 %v3044, %v2982
        %v3046 = vadd.f32 %v3045, %v2983
        %v3047 = vadd.f32 %v3046, %v2984
        %v3048 = vadd.f32 %v3047, %v2985
        %v3049 = vadd.f32 %v3048, %v2986
        %v3050 = vadd.f32 %v3049, %v2987
        %v3051 = vadd.f32 %v3050, %v2988
        %3052 = vst [vmem:[%s228] sm:$0xff] %v3051
        %v3053 = vmul.f32 %v2957, %v2957
        %v3054 = vmul.f32 %v2958, %v2958
        %v3055 = vmul.f32 %v2959, %v2959
        %v3056 = vmul.f32 %v2960, %v2960
        %v3057 = vmul.f32 %v2961, %v2961
        %v3058 = vmul.f32 %v2962, %v2962
        %v3059 = vmul.f32 %v2963, %v2963
        %v3060 = vmul.f32 %v2964, %v2964
        %v3061 = vmul.f32 %v2965, %v2965
        %v3062 = vmul.f32 %v2966, %v2966
        %v3063 = vmul.f32 %v2967, %v2967
        %v3064 = vmul.f32 %v2968, %v2968
        %v3065 = vmul.f32 %v2969, %v2969
        %v3066 = vmul.f32 %v2970, %v2970
        %v3067 = vmul.f32 %v2971, %v2971
        %v3068 = vmul.f32 %v2972, %v2972
        %v3069 = vmul.f32 %v2973, %v2973
        %v3070 = vmul.f32 %v2974, %v2974
        %v3071 = vmul.f32 %v2975, %v2975
        %v3072 = vmul.f32 %v2976, %v2976
        %v3073 = vmul.f32 %v2977, %v2977
        %v3074 = vmul.f32 %v2978, %v2978
        %v3075 = vmul.f32 %v2979, %v2979
        %v3076 = vmul.f32 %v2980, %v2980
        %v3077 = vmul.f32 %v2981, %v2981
        %v3078 = vmul.f32 %v2982, %v2982
        %v3079 = vmul.f32 %v2983, %v2983
        %v3080 = vmul.f32 %v2984, %v2984
        %v3081 = vmul.f32 %v2985, %v2985
        %v3082 = vmul.f32 %v2986, %v2986
        %v3083 = vmul.f32 %v2987, %v2987
        %v3084 = vmul.f32 %v2988, %v2988
        %v3085 = vadd.f32 %v3053, %v3054
        %v3086 = vadd.f32 %v3085, %v3055
        %v3087 = vadd.f32 %v3086, %v3056
        %v3088 = vadd.f32 %v3087, %v3057
        %v3089 = vadd.f32 %v3088, %v3058
        %v3090 = vadd.f32 %v3089, %v3059
        %v3091 = vadd.f32 %v3090, %v3060
        %v3092 = vadd.f32 %v3091, %v3061
        %v3093 = vadd.f32 %v3092, %v3062
        %v3094 = vadd.f32 %v3093, %v3063
        %v3095 = vadd.f32 %v3094, %v3064
        %v3096 = vadd.f32 %v3095, %v3065
        %v3097 = vadd.f32 %v3096, %v3066
        %v3098 = vadd.f32 %v3097, %v3067
        %v3099 = vadd.f32 %v3098, %v3068
        %v3100 = vadd.f32 %v3099, %v3069
        %v3101 = vadd.f32 %v3100, %v3070
        %v3102 = vadd.f32 %v3101, %v3071
        %v3103 = vadd.f32 %v3102, %v3072
        %v3104 = vadd.f32 %v3103, %v3073
        %v3105 = vadd.f32 %v3104, %v3074
        %v3106 = vadd.f32 %v3105, %v3075
        %v3107 = vadd.f32 %v3106, %v3076
        %v3108 = vadd.f32 %v3107, %v3077
        %v3109 = vadd.f32 %v3108, %v3078
        %v3110 = vadd.f32 %v3109, %v3079
        %v3111 = vadd.f32 %v3110, %v3080
        %v3112 = vadd.f32 %v3111, %v3081
        %v3113 = vadd.f32 %v3112, %v3082
        %v3114 = vadd.f32 %v3113, %v3083
        %v3115 = vadd.f32 %v3114, %v3084
        %3116 = vst [vmem:[%s235] sm:$0xff] %v3115
        %s3117 = sand.u32 %s99, 1
        %s3118 = scalar_lea.sflag [#allocation3], %s3117
        %s3119 = sand.u32 %s99, 1
        %s3120 = smul.addr %s3119, 256
        %s3121 = scalar_lea.vmem [#allocation2], %s3120
        %s3122 = sand.u32 %s23, 1
        %s3123 = scalar_lea.sflag [#allocation5], %s3122
        %s3124 = sand.u32 %s125, 1
        %s3125 = smul.addr %s3124, 8
        %s3126 = scalar_lea.vmem [#allocation4], %s3125
        %s3127 = sand.u32 %s23, 1
        %s3128 = scalar_lea.sflag [#allocation5], %s3127
        %s3129 = sand.u32 %s151, 1
        %s3130 = smul.addr %s3129, 8
        %s3131 = scalar_lea.vmem [#allocation6], %s3130
        // Predicated region
        $region33: #{tpu_custom_call.1} parent=31 // pred_check
          %p3132 = pneg %p109
        $region34: #{tpu_custom_call.1} parent=31 // pred_check_branch
          %3134 = sbr.rel (%p3132) target = $region36
        $region35: #{tpu_custom_call.1} parent=31 // pred_region
          %s3135 = smul.u32 32, %s23
          %s3137 = ssub.s32 4096, 4096
          %3138 = vsyncadd %s3118, %s3137
          %s3139 = smul.addr %s3135, 128
          %s3140 = scalar_lea.hbm %s3, %s3139
          %s3141 = sshll.u32 %s3121, 4
          %s3142 = int_to_ptr.vmem [resolvable:$true] %s3141
          %3147 = dma.vmem_to_hbm [thread:$0]  %s3142, 4096, %s3140, %s3118, 128, 128, 8
        $region36: #{tpu_custom_call.1} parent=31 // pred_fallthru
          _
        // Predicated region
        $region37: #{tpu_custom_call.1} parent=31 // pred_check
          %p3148 = pneg %p135
        $region38: #{tpu_custom_call.1} parent=31 // pred_check_branch
          %3150 = sbr.rel (%p3148) target = $region40
        $region39: #{tpu_custom_call.1} parent=31 // pred_region
          %s3152 = ssub.s32 128, 128
          %3153 = vsyncadd %s3123, %s3152
          %s3154 = smul.addr %s23, 128
          %s3155 = scalar_lea.hbm %s4, %s3154
          %s3157 = sshll.u32 %s3126, 4
          %s3158 = int_to_ptr.vmem [resolvable:$true] %s3157
          %3160 = dma.vmem_to_hbm [thread:$0]  %s3158, 128, %s3155, %s3123
        $region40: #{tpu_custom_call.1} parent=31 // pred_fallthru
          _
        // Predicated region
        $region41: #{tpu_custom_call.1} parent=31 // pred_check
          %p3161 = pneg %p161
        $region42: #{tpu_custom_call.1} parent=31 // pred_check_branch
          %3163 = sbr.rel (%p3161) target = $region44
        $region43: #{tpu_custom_call.1} parent=31 // pred_region
          %s3165 = ssub.s32 128, 128
          %3166 = vsyncadd %s3128, %s3165
          %s3167 = smul.addr %s23, 128
          %s3168 = scalar_lea.hbm %s5, %s3167
          %s3170 = sshll.u32 %s3131, 4
          %s3171 = int_to_ptr.vmem [resolvable:$true] %s3170
          %3173 = dma.vmem_to_hbm [thread:$0]  %s3171, 128, %s3168, %s3128
        $region44: #{tpu_custom_call.1} parent=31 // pred_fallthru
          _
      $region32: #{tpu_custom_call.1} parent=5 // pred_fallthru
        _
      %p3174 = scmp.le.s32.totalorder 2, %s18
      // Predicated region
      $region45: #{tpu_custom_call.1} parent=5 // pred_check
        %p3175 = pneg %p3174
      $region46: #{tpu_custom_call.1} parent=5 // pred_check_branch
        %3177 = sbr.rel (%p3175) target = $region48
      $region47: #{tpu_custom_call.1} parent=5 // pred_region
        %s3178 = ssub.s32 %s18, 2
        // Predicated region
        $region49: #{tpu_custom_call.1} parent=47 // pred_check
          %p3179 = pneg %p115
        $region50: #{tpu_custom_call.1} parent=47 // pred_check_branch
          %3181 = sbr.rel (%p3179) target = $region52
        $region51: #{tpu_custom_call.1} parent=47 // pred_region
          %s3182 = sand.u32 %s100, 1
          %s3183 = scalar_lea.sflag [#allocation3], %s3182
          %s3184 = sand.u32 %s100, 1
          %s3185 = smul.addr %s3184, 256
          %s3186 = scalar_lea.vmem [#allocation2], %s3185
          %3187 = dma.done %s3183, 4096
        $region52: #{tpu_custom_call.1} parent=47 // pred_fallthru
          _
        // Predicated region
        $region53: #{tpu_custom_call.1} parent=47 // pred_check
          %p3188 = pneg %p141
        $region54: #{tpu_custom_call.1} parent=47 // pred_check_branch
          %3190 = sbr.rel (%p3188) target = $region56
        $region55: #{tpu_custom_call.1} parent=47 // pred_region
          %s3191 = sand.u32 %s24, 1
          %s3192 = scalar_lea.sflag [#allocation5], %s3191
          %s3193 = sand.u32 %s126, 1
          %s3194 = smul.addr %s3193, 8
          %s3195 = scalar_lea.vmem [#allocation4], %s3194
          %3196 = dma.done %s3192, 128
        $region56: #{tpu_custom_call.1} parent=47 // pred_fallthru
          _
        // Predicated region
        $region57: #{tpu_custom_call.1} parent=47 // pred_check
          %p3197 = pneg %p167
        $region58: #{tpu_custom_call.1} parent=47 // pred_check_branch
          %3199 = sbr.rel (%p3197) target = $region60
        $region59: #{tpu_custom_call.1} parent=47 // pred_region
          %s3200 = sand.u32 %s24, 1
          %s3201 = scalar_lea.sflag [#allocation5], %s3200
          %s3202 = sand.u32 %s152, 1
          %s3203 = smul.addr %s3202, 8
          %s3204 = scalar_lea.vmem [#allocation6], %s3203
          %3205 = dma.done %s3201, 128
        $region60: #{tpu_custom_call.1} parent=47 // pred_fallthru
          _
      $region48: #{tpu_custom_call.1} parent=5 // pred_fallthru
        _
    $region6: #{tpu_custom_call.1} parent=1 // loop_footer
      %s22 = sadd.s32 1, %s18
    $region7: #{tpu_custom_call.1} parent=1 // loop_footer_branch
      %17 = sbr.rel target = $region3
    $region8: #{tpu_custom_call.1} parent=1 // loop_exit
      _
    %3206 = vsyncpa [#allocation3], 1
    %s3207 = scalar_lea.sflag [#allocation3], 1
    %3208 = vsyncpa %s3207, 1
    %3209 = vsyncpa [#allocation5], 1
    %s3210 = scalar_lea.sflag [#allocation5], 1
    %3211 = vsyncpa %s3210, 1

</llo_original>
